<compile_context>
chip_gen: v7x
topology: tpu7x:2x2x1
jax: 0.10.0
libtpu: 0.0.40
codegen_flags: <defaults>
</compile_context>

<pallas_src>
import numpy as np
import jax
import jax.numpy as jnp
from jax import lax
from jax.experimental import pallas as pl
from jax.experimental.pallas import tpu as pltpu

# ---- problem sizes (consistent with ASPP(in_channels=4, rates=(1,2,3))) ----
IN_CH = 4
OUT_CH = 256          # hard-coded in the PyTorch module
H = W = 16
HW = H * W
RATES = (1, 2, 3)
MAXD = max(RATES)
NUM_BR = 1 + len(RATES)               # conv branches handled in the kernel
N_TAPS = 1 + 9 * len(RATES)           # 28 real im2col taps
K_RAW = IN_CH * N_TAPS                # 112 real columns
K_PAD = 128                           # lane width
N_TAPS_PAD = K_PAD // IN_CH           # 32 taps incl. dummies (zero weight rows)
BN_EPS = 1e-5


def _build_gather_idx():
    """(HW, 32) int32 table: flat index into the MAXD-padded spatial plane."""
    Hp = H + 2 * MAXD
    taps = [(0, 0)]                                   # 1x1 center tap
    for d in RATES:
        for ky in range(3):
            for kx in range(3):
                taps.append(((ky - 1) * d, (kx - 1) * d))
    while len(taps) < N_TAPS_PAD:                     # dummy taps: weight rows are 0
        taps.append((0, 0))
    yy, xx = np.meshgrid(np.arange(H), np.arange(W), indexing='ij')
    yy = yy.reshape(-1)
    xx = xx.reshape(-1)
    idx = np.stack([(yy + MAXD + dy) * Hp + (xx + MAXD + dx)
                    for dy, dx in taps], axis=1)      # (HW, 32)
    return jnp.asarray(idx, jnp.int32)


GATHER_IDX = _build_gather_idx()


# ----------------------------------------------------------------------------
# Pallas kernel: fused 4-branch matmul -> VMEM concat -> projection matmul
# ----------------------------------------------------------------------------
def aspp_kernel(x_ref, wbig_ref, bbig_ref, wproj_ref, bias_ref, out_ref,
                cat_ref):
    xs = x_ref[0]                                              # (tm, 128)

    # All four conv branches in ONE lane-dense (tm,128)@(128,1024) MXU matmul;
    # the result is already the channel-concat of the branch outputs.
    y = jnp.dot(xs, wbig_ref[...], preferred_element_type=jnp.float32)
    cat_ref[...] = jnp.maximum(y + bbig_ref[...], 0.0)         # (tm, 1024)

    # Single K=1024 projection matmul, then per-image bias (pooled branch +
    # folded projection BN) and ReLU.
    acc = jnp.dot(cat_ref[...], wproj_ref[...],
                  preferred_element_type=jnp.float32)          # (tm, 256)
    out_ref[0] = jnp.maximum(acc + bias_ref[0], 0.0)


def aspp_pallas(x_cat, wbig, bbig, wproj, bias):
    N = x_cat.shape[0]
    # Keep >= 2 "parallel" grid steps so both v7x TensorCores get work:
    # one image per step when N >= 2, otherwise split H*W into two tiles.
    m_tiles = 1 if N >= 2 else 2
    tm = HW // m_tiles
    return pl.pallas_call(
        aspp_kernel,
        out_shape=jax.ShapeDtypeStruct((N, HW, OUT_CH), jnp.float32),
        grid=(N, m_tiles),
        in_specs=[
            pl.BlockSpec((1, tm, K_PAD), lambda n, m: (n, m, 0)),
            pl.BlockSpec(wbig.shape, lambda n, m: (0, 0)),     # grid-invariant
            pl.BlockSpec(bbig.shape, lambda n, m: (0, 0)),     # grid-invariant
            pl.BlockSpec(wproj.shape, lambda n, m: (0, 0)),    # grid-invariant
            pl.BlockSpec((1, 1, OUT_CH), lambda n, m: (n, 0, 0)),
        ],
        out_specs=pl.BlockSpec((1, tm, OUT_CH), lambda n, m: (n, m, 0)),
        scratch_shapes=[pltpu.VMEM((tm, NUM_BR * OUT_CH), jnp.float32)],
        compiler_params=pltpu.CompilerParams(
            dimension_semantics=("parallel", "parallel")),
    )(x_cat, wbig, bbig, wproj, bias)


# ----------------------------------------------------------------------------
# Deterministic synthetic parameters (same shapes as the PyTorch module)
# ----------------------------------------------------------------------------
def init_params(key):
    keys = iter(jax.random.split(key, 32))

    def conv_w(shape):
        return 0.1 * jax.random.normal(next(keys), shape, jnp.float32)

    def bn_params():
        g = jax.random.uniform(next(keys), (OUT_CH,), jnp.float32, 0.5, 1.5)
        b = 0.1 * jax.random.normal(next(keys), (OUT_CH,), jnp.float32)
        m = 0.1 * jax.random.normal(next(keys), (OUT_CH,), jnp.float32)
        v = jax.random.uniform(next(keys), (OUT_CH,), jnp.float32, 0.5, 1.5)
        return (g, b, m, v)

    p = {}
    p['w0'], p['bn0'] = conv_w((OUT_CH, IN_CH, 1, 1)), bn_params()
    for i in range(len(RATES)):
        p[f'w{i + 1}'], p[f'bn{i + 1}'] = conv_w((OUT_CH, IN_CH, 3, 3)), bn_params()
    p['wpool'], p['bnpool'] = conv_w((OUT_CH, IN_CH, 1, 1)), bn_params()
    p['wproj'], p['bnproj'] = conv_w((OUT_CH, 5 * OUT_CH, 1, 1)), bn_params()
    return p


def _fold_bn(w_oihw, bn):
    """Fold eval-mode BatchNorm into a bias-free conv weight."""
    g, b, m, v = bn
    scale = g / jnp.sqrt(v + BN_EPS)
    return w_oihw * scale[:, None, None, None], b - m * scale


def kernel_params(p):
    """BN-fold + pack all conv weights into the fused matmul layout."""
    w0f, b0 = _fold_bn(p['w0'], p['bn0'])
    w3f, b3 = [], []
    for i in range(len(RATES)):
        wf, bb = _fold_bn(p[f'w{i + 1}'], p[f'bn{i + 1}'])
        w3f.append(wf)
        b3.append(bb)
    wpf, bpool = _fold_bn(p['wpool'], p['bnpool'])
    wprf, bproj = _fold_bn(p['wproj'], p['bnproj'])

    # Fused first-stage weight (K_PAD, NUM_BR*OUT_CH): branch b occupies output
    # columns [b*256, (b+1)*256); its taps occupy the matching im2col rows.
    # Rows K_RAW..K_PAD-1 (the dummy taps) stay zero.
    wbig = jnp.zeros((K_PAD, NUM_BR * OUT_CH), jnp.float32)
    wbig = wbig.at[:IN_CH, :OUT_CH].set(w0f[:, :, 0, 0].T)
    for bi in range(len(RATES)):
        for ky in range(3):
            for kx in range(3):
                row = IN_CH * (1 + bi * 9 + ky * 3 + kx)
                col = (bi + 1) * OUT_CH
                wbig = wbig.at[row:row + IN_CH, col:col + OUT_CH].set(
                    w3f[bi][:, :, ky, kx].T)
    bbig = jnp.concatenate([b0] + b3)[None, :]                 # (1, 1024)

    wproj_all = jnp.transpose(wprf[:, :, 0, 0], (1, 0))        # (1280, 256)
    wproj_cat = wproj_all[:NUM_BR * OUT_CH]                    # (1024, 256)
    wproj_pool = wproj_all[NUM_BR * OUT_CH:]                   # (256, 256)
    wp = jnp.transpose(wpf[:, :, 0, 0], (1, 0))                # (4, 256)
    return wbig, bbig, wproj_cat, wp, bpool, wproj_pool, bproj


# ----------------------------------------------------------------------------
# Wrapper: NCHW -> NHWC, single-gather im2col, hoisted pool branch, kernel
# ----------------------------------------------------------------------------
@jax.jit
def aspp_forward(x_nchw, wbig, bbig, wproj_cat, wp, bpool, wproj_pool, bproj):
    N = x_nchw.shape[0]
    Hp = H + 2 * MAXD
    x = jnp.transpose(x_nchw, (0, 2, 3, 1))                    # (N,H,W,Cin)

    # im2col in ONE gather: 28 real taps + 4 dummy taps -> lane-dense K=128.
    xpad = jnp.pad(x, ((0, 0), (MAXD, MAXD), (MAXD, MAXD), (0, 0)))
    xpad = xpad.reshape(N, Hp * Hp, IN_CH)
    x_cat = jnp.take(xpad, GATHER_IDX, axis=1)                 # (N,HW,32,Cin)
    x_cat = x_cat.reshape(N, HW, K_PAD)

    # Hoisted global-average-pool branch (bilinear upsample of a 1x1 map ==
    # broadcast) -> per-image (1, 256) bias that already includes the folded
    # projection-BN bias.
    xm = jnp.mean(x, axis=(1, 2))                              # (N, Cin)
    pooled = jnp.maximum(jnp.dot(xm, wp) + bpool[None, :], 0.0)
    bias = (jnp.dot(pooled, wproj_pool) + bproj[None, :])[:, None, :]

    out = aspp_pallas(x_cat, wbig, bbig, wproj_cat, bias)      # (N, HW, 256)
    out = out.reshape(N, H, W, OUT_CH)
    return jnp.transpose(out, (0, 3, 1, 2))                    # NCHW (module API)


# ----------------------------------------------------------------------------
# Pure-JAX reference (NCHW, mirrors the PyTorch forward in eval mode)
# ----------------------------------------------------------------------------
def reference(x, p):
    def bn_relu(y, bn):
        g, b, m, v = bn
        s = g / jnp.sqrt(v + BN_EPS)
        y = (y - m[None, :, None, None]) * s[None, :, None, None] \
            + b[None, :, None, None]
        return jnp.maximum(y, 0.0)

    def conv(xx, w, dil=1, pad=0):
        return lax.conv_general_dilated(
            xx, w, (1, 1), [(pad, pad), (pad, pad)],
            rhs_dilation=(dil, dil),
            dimension_numbers=('NCHW', 'OIHW', 'NCHW'))

    res = [bn_relu(conv(x, p['w0']), p['bn0'])]
    for i, r in enumerate(RATES):
        res.append(bn_relu(conv(x, p[f'w{i + 1}'], dil=r, pad=r), p[f'bn{i + 1}']))
    pooled = jnp.mean(x, axis=(2, 3), keepdims=True)
    pooled = bn_relu(conv(pooled, p['wpool']), p['bnpool'])
    res.append(jnp.broadcast_to(pooled, (x.shape[0], OUT_CH, H, W)))
    cat = jnp.concatenate(res, axis=1)
    return bn_relu(conv(cat, p['wproj']), p['bnproj'])   # Dropout: identity (eval)


# ----------------------------------------------------------------------------
if __name__ == "__main__":
    key = jax.random.PRNGKey(0)
    kx, kp = jax.random.split(key)

    # PyTorch-convention input: NCHW
    x_nchw = jax.random.normal(kx, (2, IN_CH, H, W), jnp.float32)

    params = init_params(kp)
    kparams = kernel_params(params)

    out_nchw = aspp_forward(x_nchw, *kparams)
    out_nchw = jax.block_until_ready(out_nchw)

    ref = reference(x_nchw, params)
    err = float(jnp.max(jnp.abs(out_nchw - ref)))
    assert err < 2e-3, f"max abs err {err}"
    print("KERNEL_OK")
</pallas_src>

<mosaic_0001>
module attributes {stable_mosaic.version = 11 : i64} {
  func.func @aspp_kernel(%arg0: i32, %arg1: i32, %arg2: memref<1x256x128xf32, #tpu.memory_space<vmem>>, %arg3: memref<128x1024xf32, #tpu.memory_space<vmem>>, %arg4: memref<1x1024xf32, #tpu.memory_space<vmem>>, %arg5: memref<1024x256xf32, #tpu.memory_space<vmem>>, %arg6: memref<1x1x256xf32, #tpu.memory_space<vmem>>, %arg7: memref<1x256x256xf32, #tpu.memory_space<vmem>>, %arg8: memref<256x1024xf32, #tpu.memory_space<vmem>>) attributes {dimension_semantics = [#tpu.dimension_semantics<parallel>, #tpu.dimension_semantics<parallel>], iteration_bounds = array<i64: 2, 1>, scalar_prefetch = 0 : i64, scratch_operands = 1 : i64, tpu.core_type = #tpu.core_type<tc>, window_params = [{transform_indices = @transform_0, window_bounds = array<i64: 1, 256, 128>}, {pipeline_mode = #tpu.pipeline_mode<synchronous>, transform_indices = @transform_1, window_bounds = array<i64: 128, 1024>}, {pipeline_mode = #tpu.pipeline_mode<synchronous>, transform_indices = @transform_2, window_bounds = array<i64: 1, 1024>}, {pipeline_mode = #tpu.pipeline_mode<synchronous>, transform_indices = @transform_3, window_bounds = array<i64: 1024, 256>}, {transform_indices = @transform_4, window_bounds = array<i64: 1, 1, 256>}, {transform_indices = @transform_5, window_bounds = array<i64: 1, 256, 256>}]} {
    %c0 = arith.constant 0 : index
    %c0_0 = arith.constant 0 : index
    %c0_1 = arith.constant 0 : index
    %0 = vector.load %arg2[%c0, %c0_0, %c0_1] : memref<1x256x128xf32, #tpu.memory_space<vmem>>, vector<1x256x128xf32>
    %1 = vector.shape_cast %0 : vector<1x256x128xf32> to vector<256x128xf32>
    %c0_2 = arith.constant 0 : index
    %c0_3 = arith.constant 0 : index
    %2 = vector.load %arg3[%c0_2, %c0_3] : memref<128x1024xf32, #tpu.memory_space<vmem>>, vector<128x1024xf32>
    %cst = arith.constant dense<0.000000e+00> : vector<256x1024xf32>
    %3 = tpu.matmul %1, %2, %cst {dimension_numbers = #tpu.dot_dimension_numbers<[1], [0], [0], [1], [0, 0, 1, 1], [], []>} : vector<256x128xf32>, vector<128x1024xf32>, vector<256x1024xf32> -> vector<256x1024xf32>
    %c0_4 = arith.constant 0 : index
    %c0_5 = arith.constant 0 : index
    %4 = vector.load %arg4[%c0_4, %c0_5] : memref<1x1024xf32, #tpu.memory_space<vmem>>, vector<1x1024xf32>
    %5 = vector.broadcast %4 : vector<1x1024xf32> to vector<256x1024xf32>
    %6 = arith.addf %3, %5 : vector<256x1024xf32>
    %cst_6 = arith.constant 0.000000e+00 : f32
    %7 = vector.broadcast %cst_6 : f32 to vector<256x1024xf32>
    %8 = arith.maximumf %6, %7 : vector<256x1024xf32>
    %c0_7 = arith.constant 0 : index
    %c0_8 = arith.constant 0 : index
    %9 = vector.load %arg8[%c0_7, %c0_8] : memref<256x1024xf32, #tpu.memory_space<vmem>>, vector<256x1024xf32>
    tpu.vector_store %arg8[%c0_7, %c0_8], %8 {strides = array<i32>} : memref<256x1024xf32, #tpu.memory_space<vmem>>, vector<256x1024xf32>,
    %c0_9 = arith.constant 0 : index
    %c0_10 = arith.constant 0 : index
    %10 = vector.load %arg8[%c0_9, %c0_10] : memref<256x1024xf32, #tpu.memory_space<vmem>>, vector<256x1024xf32>
    %c0_11 = arith.constant 0 : index
    %c0_12 = arith.constant 0 : index
    %11 = vector.load %arg5[%c0_11, %c0_12] : memref<1024x256xf32, #tpu.memory_space<vmem>>, vector<1024x256xf32>
    %cst_13 = arith.constant dense<0.000000e+00> : vector<256x256xf32>
    %12 = tpu.matmul %10, %11, %cst_13 {dimension_numbers = #tpu.dot_dimension_numbers<[1], [0], [0], [1], [0, 0, 1, 1], [], []>} : vector<256x1024xf32>, vector<1024x256xf32>, vector<256x256xf32> -> vector<256x256xf32>
    %c0_14 = arith.constant 0 : index
    %c0_15 = arith.constant 0 : index
    %c0_16 = arith.constant 0 : index
    %13 = vector.load %arg6[%c0_14, %c0_15, %c0_16] : memref<1x1x256xf32, #tpu.memory_space<vmem>>, vector<1x1x256xf32>
    %14 = vector.shape_cast %13 : vector<1x1x256xf32> to vector<1x256xf32>
    %15 = vector.broadcast %14 : vector<1x256xf32> to vector<256x256xf32>
    %16 = arith.addf %12, %15 : vector<256x256xf32>
    %cst_17 = arith.constant 0.000000e+00 : f32
    %17 = vector.broadcast %cst_17 : f32 to vector<256x256xf32>
    %18 = arith.maximumf %16, %17 : vector<256x256xf32>
    %c0_18 = arith.constant 0 : index
    %c0_19 = arith.constant 0 : index
    %c0_20 = arith.constant 0 : index
    %19 = vector.load %arg7[%c0_18, %c0_19, %c0_20] : memref<1x256x256xf32, #tpu.memory_space<vmem>>, vector<1x256x256xf32>
    %20 = vector.shape_cast %19 : vector<1x256x256xf32> to vector<256x256xf32>
    %21 = vector.shape_cast %18 : vector<256x256xf32> to vector<1x256x256xf32>
    tpu.vector_store %arg7[%c0_18, %c0_19, %c0_20], %21 {strides = array<i32>} : memref<1x256x256xf32, #tpu.memory_space<vmem>>, vector<1x256x256xf32>,
    return
  }
  func.func @transform_0(%arg0: i32, %arg1: i32) -> (i32, i32, i32) {
    %c0_i32 = arith.constant 0 : i32
    %c0_i32_0 = arith.constant 0 : i32
    return %arg0, %arg1, %c0_i32 : i32, i32, i32
  }
  func.func @transform_1(%arg0: i32, %arg1: i32) -> (i32, i32) {
    %c0_i32 = arith.constant 0 : i32
    %c0_i32_0 = arith.constant 0 : i32
    %c0_i32_1 = arith.constant 0 : i32
    return %c0_i32, %c0_i32_0 : i32, i32
  }
  func.func @transform_2(%arg0: i32, %arg1: i32) -> (i32, i32) {
    %c0_i32 = arith.constant 0 : i32
    %c0_i32_0 = arith.constant 0 : i32
    %c0_i32_1 = arith.constant 0 : i32
    return %c0_i32, %c0_i32_0 : i32, i32
  }
  func.func @transform_3(%arg0: i32, %arg1: i32) -> (i32, i32) {
    %c0_i32 = arith.constant 0 : i32
    %c0_i32_0 = arith.constant 0 : i32
    %c0_i32_1 = arith.constant 0 : i32
    return %c0_i32, %c0_i32_0 : i32, i32
  }
  func.func @transform_4(%arg0: i32, %arg1: i32) -> (i32, i32, i32) {
    %c0_i32 = arith.constant 0 : i32
    %c0_i32_0 = arith.constant 0 : i32
    %c0_i32_1 = arith.constant 0 : i32
    return %arg0, %c0_i32, %c0_i32_0 : i32, i32, i32
  }
  func.func @transform_5(%arg0: i32, %arg1: i32) -> (i32, i32, i32) {
    %c0_i32 = arith.constant 0 : i32
    %c0_i32_0 = arith.constant 0 : i32
    return %arg0, %arg1, %c0_i32 : i32, i32, i32
  }
}

</mosaic_0001>

<llo_original>
// kernel: aspp_forward.1
$region0: #{aspp_forward.1}
  #allocation0 [shape = 'u32[]', space=smem, size = 0x4, offset = 0x4, fixed_abs, tag = 'smem constant byte address 0x4 - core index']
  #allocation1 [shape = 'u32[144,128]{1,0:T(1,128)}', space=vmem, size = 0x12000, scoped, tag = 'internal scratch']
  #allocation2 [shape = 'f32[256,1024]{1,0:T(8,128)}', space=vmem, size = 0x100000, scoped, tag = 'scratch operand']
  %s0 = inlined_call_operand.vmem [shape: f32[2,256,128], index: 0, kind: input, shape index: {}]
  %s1 = inlined_call_operand.vmem [shape: f32[128,1024], index: 1, kind: input, shape index: {}]
  %s2 = inlined_call_operand.vmem [shape: f32[1,1024], index: 2, kind: input, shape index: {}]
  %s3 = inlined_call_operand.vmem [shape: f32[1024,256], index: 3, kind: input, shape index: {}]
  %s4 = inlined_call_operand.vmem [shape: f32[2,1,256], index: 4, kind: input, shape index: {}]
  %s5 = inlined_call_operand.hbm [shape: f32[2,256,256], index: 5, kind: output, shape index: {}]
  %s6 = sld [smem:[#allocation0]]
  $region53: #{aspp_forward.1} parent=0
    _
  %s8 = ssub.s32 1, %s6
  %s9 = scalar_select 0, %s8, %s6
  $region1: #{aspp_forward.1} parent=0
    #allocation3 [shape = 'u8[524288]{0}', space=vmem, size = 0x80000, scoped, tag = 'output window, operand 0']
    #allocation4 [shape = 's32[2]{0}', space=sflag, size = 0x8, scoped, tag = 'scoped memory for aspp_forward.1']
    %10 = vsyncpa [#allocation4], 0
    %s11 = scalar_lea.sflag [#allocation4], 1
    %12 = vsyncpa %s11, 0
    loop: start=0, step=1, limit=4
    $region2: #{aspp_forward.1} parent=1 // loop_pre_header
      _
    $region3: #{aspp_forward.1} parent=1 // loop_header
      %s14 = sphi 0, %s18
      %p15 = scmp.ge.s32.totalorder %s14, 4
      %s21 = sphi 0, %s33
      %s22 = sphi 0, %s29
      %s23 = sphi 0, %s21
      %s24 = sphi 0, %s22
      %s25 = sphi 0, %s23
      %s26 = sphi 0, %s24
      %s38 = sphi 0, %s40
      %s41 = sphi 0, %s38
      %s42 = sphi 0, %s41
      %s58 = sphi 0, %s42
      %s62 = sphi 0, %s62
      %s64 = sphi 0, %s62
      %s65 = sphi 0, %s64
      %s79 = sphi 0, %s65
      %s83 = sphi 0, %s83
      %s85 = sphi 0, %s83
      %s86 = sphi 0, %s85
      %s100 = sphi 0, %s86
      %s104 = sphi 0, %s104
      %s106 = sphi 0, %s104
      %s107 = sphi 0, %s106
      %s121 = sphi 0, %s107
      %s127 = sphi 0, %s129
      %s130 = sphi 0, %s127
      %s131 = sphi 0, %s130
      %s147 = sphi 0, %s131
      %s155 = sphi 0, %s157
      %s158 = sphi 0, %s155
      %s159 = sphi 0, %s158
      %s175 = sphi 0, %s159
    $region4: #{aspp_forward.1} parent=1 // loop_header_branch
      %17 = sbr.rel (%p15) target = $region8
    $region5: #{aspp_forward.1} parent=1 // loop_body
      %s19 = ssub.s32 %s14, 1
      %s20 = ssub.s32 %s14, 2
      %s27 = sadd.s32 1, %s22
      %p28 = scmp.ge.s32.totalorder %s27, 1
      %s29 = scalar_select %p28, 0, %s27
      %s30 = sadd.s32 1, %s21
      %s31 = scalar_select %p28, %s30, %s21
      %p32 = scmp.ge.s32.totalorder %s31, 2
      %s33 = scalar_select %p32, 0, %s31
      %s34 = ssub.s32 %s21, %s33
      %s35 = ssub.s32 %s22, %s29
      %s36 = sor.u32 %s34, %s35
      %p37 = scmp.eq.s32.totalorder %s36, 0
      %s39 = sadd.s32 %s38, 1
      %s40 = scalar_select %p37, %s38, %s39
      %p43 = pneg %p37
      %p44 = scmp.eq.s32.totalorder %s14, 1
      %p45 = por %p43, %p44
      %p46 = scmp.ne.s32.totalorder %s38, %s41
      %p47 = scmp.eq.s32.totalorder %s14, 0
      %p48 = por %p46, %p47
      %p49 = scmp.ne.s32.totalorder %s38, %s41
      %p50 = scmp.eq.s32.totalorder %s19, 1
      %p51 = por %p49, %p50
      %p52 = scmp.ne.s32.totalorder %s41, %s42
      %p53 = scmp.eq.s32.totalorder %s19, 0
      %p54 = por %p52, %p53
      %p55 = scmp.ne.s32.totalorder %s41, %s42
      %p56 = scmp.eq.s32.totalorder %s20, 1
      %p57 = por %p55, %p56
      %p59 = scmp.ne.s32.totalorder %s42, %s58
      %p60 = scmp.eq.s32.totalorder %s20, 0
      %p61 = por %p59, %p60
      %s63 = sadd.s32 %s62, 1
      %p66 = scmp.eq.s32.totalorder %s14, 1
      %p67 = scmp.ne.s32.totalorder %s62, %s64
      %p68 = scmp.eq.s32.totalorder %s14, 0
      %p69 = por %p67, %p68
      %p70 = scmp.ne.s32.totalorder %s62, %s64
      %p71 = scmp.eq.s32.totalorder %s19, 1
      %p72 = por %p70, %p71
      %p73 = scmp.ne.s32.totalorder %s64, %s65
      %p74 = scmp.eq.s32.totalorder %s19, 0
      %p75 = por %p73, %p74
      %p76 = scmp.ne.s32.totalorder %s64, %s65
      %p77 = scmp.eq.s32.totalorder %s20, 1
      %p78 = por %p76, %p77
      %p80 = scmp.ne.s32.totalorder %s65, %s79
      %p81 = scmp.eq.s32.totalorder %s20, 0
      %p82 = por %p80, %p81
      %s84 = sadd.s32 %s83, 1
      %p87 = scmp.eq.s32.totalorder %s14, 1
      %p88 = scmp.ne.s32.totalorder %s83, %s85
      %p89 = scmp.eq.s32.totalorder %s14, 0
      %p90 = por %p88, %p89
      %p91 = scmp.ne.s32.totalorder %s83, %s85
      %p92 = scmp.eq.s32.totalorder %s19, 1
      %p93 = por %p91, %p92
      %p94 = scmp.ne.s32.totalorder %s85, %s86
      %p95 = scmp.eq.s32.totalorder %s19, 0
      %p96 = por %p94, %p95
      %p97 = scmp.ne.s32.totalorder %s85, %s86
      %p98 = scmp.eq.s32.totalorder %s20, 1
      %p99 = por %p97, %p98
      %p101 = scmp.ne.s32.totalorder %s86, %s100
      %p102 = scmp.eq.s32.totalorder %s20, 0
      %p103 = por %p101, %p102
      %s105 = sadd.s32 %s104, 1
      %p108 = scmp.eq.s32.totalorder %s14, 1
      %p109 = scmp.ne.s32.totalorder %s104, %s106
      %p110 = scmp.eq.s32.totalorder %s14, 0
      %p111 = por %p109, %p110
      %p112 = scmp.ne.s32.totalorder %s104, %s106
      %p113 = scmp.eq.s32.totalorder %s19, 1
      %p114 = por %p112, %p113
      %p115 = scmp.ne.s32.totalorder %s106, %s107
      %p116 = scmp.eq.s32.totalorder %s19, 0
      %p117 = por %p115, %p116
      %p118 = scmp.ne.s32.totalorder %s106, %s107
      %p119 = scmp.eq.s32.totalorder %s20, 1
      %p120 = por %p118, %p119
      %p122 = scmp.ne.s32.totalorder %s107, %s121
      %p123 = scmp.eq.s32.totalorder %s20, 0
      %p124 = por %p122, %p123
      %s125 = ssub.s32 %s21, %s33
      %p126 = scmp.eq.s32.totalorder %s125, 0
      %s128 = sadd.s32 %s127, 1
      %s129 = scalar_select %p126, %s127, %s128
      %p132 = pneg %p126
      %p133 = scmp.eq.s32.totalorder %s14, 1
      %p134 = por %p132, %p133
      %p135 = scmp.ne.s32.totalorder %s127, %s130
      %p136 = scmp.eq.s32.totalorder %s14, 0
      %p137 = por %p135, %p136
      %p138 = scmp.ne.s32.totalorder %s127, %s130
      %p139 = scmp.eq.s32.totalorder %s19, 1
      %p140 = por %p138, %p139
      %p141 = scmp.ne.s32.totalorder %s130, %s131
      %p142 = scmp.eq.s32.totalorder %s19, 0
      %p143 = por %p141, %p142
      %p144 = scmp.ne.s32.totalorder %s130, %s131
      %p145 = scmp.eq.s32.totalorder %s20, 1
      %p146 = por %p144, %p145
      %p148 = scmp.ne.s32.totalorder %s131, %s147
      %p149 = scmp.eq.s32.totalorder %s20, 0
      %p150 = por %p148, %p149
      %s151 = ssub.s32 %s21, %s33
      %s152 = ssub.s32 %s22, %s29
      %s153 = sor.u32 %s151, %s152
      %p154 = scmp.eq.s32.totalorder %s153, 0
      %s156 = sadd.s32 %s155, 1
      %s157 = scalar_select %p154, %s155, %s156
      %p160 = pneg %p154
      %p161 = scmp.eq.s32.totalorder %s14, 1
      %p162 = por %p160, %p161
      %p163 = scmp.ne.s32.totalorder %s155, %s158
      %p164 = scmp.eq.s32.totalorder %s14, 0
      %p165 = por %p163, %p164
      %p166 = scmp.ne.s32.totalorder %s155, %s158
      %p167 = scmp.eq.s32.totalorder %s19, 1
      %p168 = por %p166, %p167
      %p169 = scmp.ne.s32.totalorder %s158, %s159
      %p170 = scmp.eq.s32.totalorder %s19, 0
      %p171 = por %p169, %p170
      %p172 = scmp.ne.s32.totalorder %s158, %s159
      %p173 = scmp.eq.s32.totalorder %s20, 1
      %p174 = por %p172, %p173
      %p176 = scmp.ne.s32.totalorder %s159, %s175
      %p177 = scmp.eq.s32.totalorder %s20, 0
      %p178 = por %p176, %p177
      %p179 = scmp.le.s32.totalorder 1, %s14
      %p180 = scmp.lt.s32.totalorder %s14, 3
      %p181 = pnand %p179, %p180
      %p182 = pneg %p181
      // Predicated region
      $region9: #{aspp_forward.1} parent=5 // pred_check
        _
      $region10: #{aspp_forward.1} parent=5 // pred_check_branch
        %184 = sbr.rel (%p181) target = $region12
      $region11: #{aspp_forward.1} parent=5 // pred_region
        %s185 = ssub.s32 %s14, 1
        // Predicated region
        $region13: #{aspp_forward.1} parent=11 // pred_check
          %p186 = pneg %p75
        $region14: #{aspp_forward.1} parent=11 // pred_check_branch
          %188 = sbr.rel (%p186) target = $region16
        $region15: #{aspp_forward.1} parent=11 // pred_region
          _
        $region16: #{aspp_forward.1} parent=11 // pred_fallthru
          _
        // Predicated region
        $region17: #{aspp_forward.1} parent=11 // pred_check
          %p189 = pneg %p96
        $region18: #{aspp_forward.1} parent=11 // pred_check_branch
          %191 = sbr.rel (%p189) target = $region20
        $region19: #{aspp_forward.1} parent=11 // pred_region
          _
        $region20: #{aspp_forward.1} parent=11 // pred_fallthru
          _
        // Predicated region
        $region21: #{aspp_forward.1} parent=11 // pred_check
          %p192 = pneg %p117
        $region22: #{aspp_forward.1} parent=11 // pred_check_branch
          %194 = sbr.rel (%p192) target = $region24
        $region23: #{aspp_forward.1} parent=11 // pred_region
          _
        $region24: #{aspp_forward.1} parent=11 // pred_fallthru
          _
      $region12: #{aspp_forward.1} parent=5 // pred_fallthru
        _
      %p195 = scmp.lt.s32.totalorder %s14, 2
      // Predicated region
      $region25: #{aspp_forward.1} parent=5 // pred_check
        %p196 = pneg %p195
      $region26: #{aspp_forward.1} parent=5 // pred_check_branch
        %198 = sbr.rel (%p196) target = $region28
      $region27: #{aspp_forward.1} parent=5 // pred_region
        // Predicated region
        $region29: #{aspp_forward.1} parent=27 // pred_check
          %p199 = pneg %p48
        $region30: #{aspp_forward.1} parent=27 // pred_check_branch
          %201 = sbr.rel (%p199) target = $region32
        $region31: #{aspp_forward.1} parent=27 // pred_region
          %s202 = smul.u32 32, %s22
          %p203 = scmp.lt.s32.totalorder %s21, 1
          %s204 = scalar_select %p203, %s21, 1
          %p205 = scmp.lt.s32.totalorder %s202, 31
          %s206 = scalar_select %p205, %s202, 31
          %s207 = smul.addr %s204, 32
          %s208 = sadd.s32 %s206, %s207
          %s209 = smul.addr %s208, 8
          %s210 = scalar_lea.vmem %s0, %s209
          %s211 = smul.u32 32, %s22
        $region32: #{aspp_forward.1} parent=27 // pred_fallthru
          _
        // Predicated region
        $region33: #{aspp_forward.1} parent=27 // pred_check
          %p212 = pneg %p137
        $region34: #{aspp_forward.1} parent=27 // pred_check_branch
          %214 = sbr.rel (%p212) target = $region36
        $region35: #{aspp_forward.1} parent=27 // pred_region
          %p215 = scmp.lt.s32.totalorder %s21, 1
          %s216 = scalar_select %p215, %s21, 1
          %s217 = smul.addr %s216, 2
          %s218 = scalar_lea.vmem %s4, %s217
        $region36: #{aspp_forward.1} parent=27 // pred_fallthru
          _
      $region28: #{aspp_forward.1} parent=5 // pred_fallthru
        _
      %p219 = scmp.le.s32.totalorder 1, %s14
      %p220 = scmp.lt.s32.totalorder %s14, 3
      %p221 = pnand %p219, %p220
      %p222 = pneg %p221
      // Predicated region
      $region37: #{aspp_forward.1} parent=5 // pred_check
        _
      $region38: #{aspp_forward.1} parent=5 // pred_check_branch
        %224 = sbr.rel (%p221) target = $region40
      $region39: #{aspp_forward.1} parent=5 // pred_region
        %s225 = ssub.s32 %s14, 1
        %s226 = smul.u32 32, %s24
        %p227 = scmp.lt.s32.totalorder %s23, 1
        %s228 = scalar_select %p227, %s23, 1
        %p229 = scmp.lt.s32.totalorder %s226, 31
        %s230 = scalar_select %p229, %s226, 31
        %s231 = smul.addr %s228, 32
        %s232 = sadd.s32 %s230, %s231
        %s233 = smul.addr %s232, 8
        %s234 = scalar_lea.vmem %s0, %s233
        %p235 = pneg %p54
        %p236 = pneg %p51
        %p237 = pneg %p75
        %p238 = pneg %p72
        %p239 = pneg %p96
        %p240 = pneg %p93
        %p241 = pneg %p117
        %p242 = pneg %p114
        %p243 = scmp.lt.s32.totalorder %s23, 1
        %s244 = scalar_select %p243, %s23, 1
        %s245 = smul.addr %s244, 2
        %s246 = scalar_lea.vmem %s4, %s245
        %p247 = pneg %p143
        %p248 = pneg %p140
        %p249 = pneg %p171
        %p250 = pneg %p168
        %s251 = sand.u32 %s158, 1
        %s252 = scalar_lea.sflag [#allocation4], %s251
        %s253 = sand.u32 %s158, 1
        %s254 = smul.addr %s253, 512
        %s255 = scalar_lea.vmem [#allocation3], %s254
        %s256 = smul.u32 32, %s24
        %p257 = scmp.lt.s32.totalorder %s23, 1
        %s258 = scalar_select %p257, %s23, 1
        %p259 = scmp.lt.s32.totalorder %s256, 31
        %s260 = scalar_select %p259, %s256, 31
        %s261 = smul.addr %s258, 32
        %s262 = sadd.s32 %s260, %s261
        %s263 = smul.addr %s262, 8
        %s264 = scalar_lea.vmem %s0, %s263
        %s265 = smul.u32 32, %s24
        %p266 = scmp.lt.s32.totalorder %s23, 1
        %s267 = scalar_select %p266, %s23, 1
        %s268 = smul.addr %s267, 2
        %s269 = scalar_lea.vmem %s4, %s268
        %s270 = smul.u32 32, %s24
        %v271 = vld [vmem:[%s264] sm:$0xff]
        %v272 = vld [vmem:[%s264 + $0x8] sm:$0xff]
        %v273 = vld [vmem:[%s264 + $0x10] sm:$0xff]
        %v274 = vld [vmem:[%s264 + $0x18] sm:$0xff]
        %v275 = vld [vmem:[%s264 + $0x20] sm:$0xff]
        %v276 = vld [vmem:[%s264 + $0x28] sm:$0xff]
        %v277 = vld [vmem:[%s264 + $0x30] sm:$0xff]
        %v278 = vld [vmem:[%s264 + $0x38] sm:$0xff]
        %v279 = vld [vmem:[%s264 + $0x40] sm:$0xff]
        %v280 = vld [vmem:[%s264 + $0x48] sm:$0xff]
        %v281 = vld [vmem:[%s264 + $0x50] sm:$0xff]
        %v282 = vld [vmem:[%s264 + $0x58] sm:$0xff]
        %v283 = vld [vmem:[%s264 + $0x60] sm:$0xff]
        %v284 = vld [vmem:[%s264 + $0x68] sm:$0xff]
        %v285 = vld [vmem:[%s264 + $0x70] sm:$0xff]
        %v286 = vld [vmem:[%s264 + $0x78] sm:$0xff]
        %v287 = vld [vmem:[%s264 + $0x80] sm:$0xff]
        %v288 = vld [vmem:[%s264 + $0x88] sm:$0xff]
        %v289 = vld [vmem:[%s264 + $0x90] sm:$0xff]
        %v290 = vld [vmem:[%s264 + $0x98] sm:$0xff]
        %v291 = vld [vmem:[%s264 + $0xa0] sm:$0xff]
        %v292 = vld [vmem:[%s264 + $0xa8] sm:$0xff]
        %v293 = vld [vmem:[%s264 + $0xb0] sm:$0xff]
        %v294 = vld [vmem:[%s264 + $0xb8] sm:$0xff]
        %v295 = vld [vmem:[%s264 + $0xc0] sm:$0xff]
        %v296 = vld [vmem:[%s264 + $0xc8] sm:$0xff]
        %v297 = vld [vmem:[%s264 + $0xd0] sm:$0xff]
        %v298 = vld [vmem:[%s264 + $0xd8] sm:$0xff]
        %v299 = vld [vmem:[%s264 + $0xe0] sm:$0xff]
        %v300 = vld [vmem:[%s264 + $0xe8] sm:$0xff]
        %v301 = vld [vmem:[%s264 + $0xf0] sm:$0xff]
        %v302 = vld [vmem:[%s264 + $0xf8] sm:$0xff]
        %v303 = vld [vmem:[%s1] sm:$0xff]
        %v304 = vld [vmem:[%s1 + $0x8] sm:$0xff]
        %v305 = vld [vmem:[%s1 + $0x10] sm:$0xff]
        %v306 = vld [vmem:[%s1 + $0x18] sm:$0xff]
        %v307 = vld [vmem:[%s1 + $0x20] sm:$0xff]
        %v308 = vld [vmem:[%s1 + $0x28] sm:$0xff]
        %v309 = vld [vmem:[%s1 + $0x30] sm:$0xff]
        %v310 = vld [vmem:[%s1 + $0x38] sm:$0xff]
        %v311 = vld [vmem:[%s1 + $0x40] sm:$0xff]
        %v312 = vld [vmem:[%s1 + $0x48] sm:$0xff]
        %v313 = vld [vmem:[%s1 + $0x50] sm:$0xff]
        %v314 = vld [vmem:[%s1 + $0x58] sm:$0xff]
        %v315 = vld [vmem:[%s1 + $0x60] sm:$0xff]
        %v316 = vld [vmem:[%s1 + $0x68] sm:$0xff]
        %v317 = vld [vmem:[%s1 + $0x70] sm:$0xff]
        %v318 = vld [vmem:[%s1 + $0x78] sm:$0xff]
        %v319 = vld [vmem:[%s1 + $0x80] sm:$0xff]
        %v320 = vld [vmem:[%s1 + $0x88] sm:$0xff]
        %v321 = vld [vmem:[%s1 + $0x90] sm:$0xff]
        %v322 = vld [vmem:[%s1 + $0x98] sm:$0xff]
        %v323 = vld [vmem:[%s1 + $0xa0] sm:$0xff]
        %v324 = vld [vmem:[%s1 + $0xa8] sm:$0xff]
        %v325 = vld [vmem:[%s1 + $0xb0] sm:$0xff]
        %v326 = vld [vmem:[%s1 + $0xb8] sm:$0xff]
        %v327 = vld [vmem:[%s1 + $0xc0] sm:$0xff]
        %v328 = vld [vmem:[%s1 + $0xc8] sm:$0xff]
        %v329 = vld [vmem:[%s1 + $0xd0] sm:$0xff]
        %v330 = vld [vmem:[%s1 + $0xd8] sm:$0xff]
        %v331 = vld [vmem:[%s1 + $0xe0] sm:$0xff]
        %v332 = vld [vmem:[%s1 + $0xe8] sm:$0xff]
        %v333 = vld [vmem:[%s1 + $0xf0] sm:$0xff]
        %v334 = vld [vmem:[%s1 + $0xf8] sm:$0xff]
        %v335 = vld [vmem:[%s1 + $0x100] sm:$0xff]
        %v336 = vld [vmem:[%s1 + $0x108] sm:$0xff]
        %v337 = vld [vmem:[%s1 + $0x110] sm:$0xff]
        %v338 = vld [vmem:[%s1 + $0x118] sm:$0xff]
        %v339 = vld [vmem:[%s1 + $0x120] sm:$0xff]
        %v340 = vld [vmem:[%s1 + $0x128] sm:$0xff]
        %v341 = vld [vmem:[%s1 + $0x130] sm:$0xff]
        %v342 = vld [vmem:[%s1 + $0x138] sm:$0xff]
        %v343 = vld [vmem:[%s1 + $0x140] sm:$0xff]
        %v344 = vld [vmem:[%s1 + $0x148] sm:$0xff]
        %v345 = vld [vmem:[%s1 + $0x150] sm:$0xff]
        %v346 = vld [vmem:[%s1 + $0x158] sm:$0xff]
        %v347 = vld [vmem:[%s1 + $0x160] sm:$0xff]
        %v348 = vld [vmem:[%s1 + $0x168] sm:$0xff]
        %v349 = vld [vmem:[%s1 + $0x170] sm:$0xff]
        %v350 = vld [vmem:[%s1 + $0x178] sm:$0xff]
        %v351 = vld [vmem:[%s1 + $0x180] sm:$0xff]
        %v352 = vld [vmem:[%s1 + $0x188] sm:$0xff]
        %v353 = vld [vmem:[%s1 + $0x190] sm:$0xff]
        %v354 = vld [vmem:[%s1 + $0x198] sm:$0xff]
        %v355 = vld [vmem:[%s1 + $0x1a0] sm:$0xff]
        %v356 = vld [vmem:[%s1 + $0x1a8] sm:$0xff]
        %v357 = vld [vmem:[%s1 + $0x1b0] sm:$0xff]
        %v358 = vld [vmem:[%s1 + $0x1b8] sm:$0xff]
        %v359 = vld [vmem:[%s1 + $0x1c0] sm:$0xff]
        %v360 = vld [vmem:[%s1 + $0x1c8] sm:$0xff]
        %v361 = vld [vmem:[%s1 + $0x1d0] sm:$0xff]
        %v362 = vld [vmem:[%s1 + $0x1d8] sm:$0xff]
        %v363 = vld [vmem:[%s1 + $0x1e0] sm:$0xff]
        %v364 = vld [vmem:[%s1 + $0x1e8] sm:$0xff]
        %v365 = vld [vmem:[%s1 + $0x1f0] sm:$0xff]
        %v366 = vld [vmem:[%s1 + $0x1f8] sm:$0xff]
        %v367 = vld [vmem:[%s1 + $0x200] sm:$0xff]
        %v368 = vld [vmem:[%s1 + $0x208] sm:$0xff]
        %v369 = vld [vmem:[%s1 + $0x210] sm:$0xff]
        %v370 = vld [vmem:[%s1 + $0x218] sm:$0xff]
        %v371 = vld [vmem:[%s1 + $0x220] sm:$0xff]
        %v372 = vld [vmem:[%s1 + $0x228] sm:$0xff]
        %v373 = vld [vmem:[%s1 + $0x230] sm:$0xff]
        %v374 = vld [vmem:[%s1 + $0x238] sm:$0xff]
        %v375 = vld [vmem:[%s1 + $0x240] sm:$0xff]
        %v376 = vld [vmem:[%s1 + $0x248] sm:$0xff]
        %v377 = vld [vmem:[%s1 + $0x250] sm:$0xff]
        %v378 = vld [vmem:[%s1 + $0x258] sm:$0xff]
        %v379 = vld [vmem:[%s1 + $0x260] sm:$0xff]
        %v380 = vld [vmem:[%s1 + $0x268] sm:$0xff]
        %v381 = vld [vmem:[%s1 + $0x270] sm:$0xff]
        %v382 = vld [vmem:[%s1 + $0x278] sm:$0xff]
        %v383 = vld [vmem:[%s1 + $0x280] sm:$0xff]
        %v384 = vld [vmem:[%s1 + $0x288] sm:$0xff]
        %v385 = vld [vmem:[%s1 + $0x290] sm:$0xff]
        %v386 = vld [vmem:[%s1 + $0x298] sm:$0xff]
        %v387 = vld [vmem:[%s1 + $0x2a0] sm:$0xff]
        %v388 = vld [vmem:[%s1 + $0x2a8] sm:$0xff]
        %v389 = vld [vmem:[%s1 + $0x2b0] sm:$0xff]
        %v390 = vld [vmem:[%s1 + $0x2b8] sm:$0xff]
        %v391 = vld [vmem:[%s1 + $0x2c0] sm:$0xff]
        %v392 = vld [vmem:[%s1 + $0x2c8] sm:$0xff]
        %v393 = vld [vmem:[%s1 + $0x2d0] sm:$0xff]
        %v394 = vld [vmem:[%s1 + $0x2d8] sm:$0xff]
        %v395 = vld [vmem:[%s1 + $0x2e0] sm:$0xff]
        %v396 = vld [vmem:[%s1 + $0x2e8] sm:$0xff]
        %v397 = vld [vmem:[%s1 + $0x2f0] sm:$0xff]
        %v398 = vld [vmem:[%s1 + $0x2f8] sm:$0xff]
        %v399 = vld [vmem:[%s1 + $0x300] sm:$0xff]
        %v400 = vld [vmem:[%s1 + $0x308] sm:$0xff]
        %v401 = vld [vmem:[%s1 + $0x310] sm:$0xff]
        %v402 = vld [vmem:[%s1 + $0x318] sm:$0xff]
        %v403 = vld [vmem:[%s1 + $0x320] sm:$0xff]
        %v404 = vld [vmem:[%s1 + $0x328] sm:$0xff]
        %v405 = vld [vmem:[%s1 + $0x330] sm:$0xff]
        %v406 = vld [vmem:[%s1 + $0x338] sm:$0xff]
        %v407 = vld [vmem:[%s1 + $0x340] sm:$0xff]
        %v408 = vld [vmem:[%s1 + $0x348] sm:$0xff]
        %v409 = vld [vmem:[%s1 + $0x350] sm:$0xff]
        %v410 = vld [vmem:[%s1 + $0x358] sm:$0xff]
        %v411 = vld [vmem:[%s1 + $0x360] sm:$0xff]
        %v412 = vld [vmem:[%s1 + $0x368] sm:$0xff]
        %v413 = vld [vmem:[%s1 + $0x370] sm:$0xff]
        %v414 = vld [vmem:[%s1 + $0x378] sm:$0xff]
        %v415 = vld [vmem:[%s1 + $0x380] sm:$0xff]
        %v416 = vld [vmem:[%s1 + $0x388] sm:$0xff]
        %v417 = vld [vmem:[%s1 + $0x390] sm:$0xff]
        %v418 = vld [vmem:[%s1 + $0x398] sm:$0xff]
        %v419 = vld [vmem:[%s1 + $0x3a0] sm:$0xff]
        %v420 = vld [vmem:[%s1 + $0x3a8] sm:$0xff]
        %v421 = vld [vmem:[%s1 + $0x3b0] sm:$0xff]
        %v422 = vld [vmem:[%s1 + $0x3b8] sm:$0xff]
        %v423 = vld [vmem:[%s1 + $0x3c0] sm:$0xff]
        %v424 = vld [vmem:[%s1 + $0x3c8] sm:$0xff]
        %v425 = vld [vmem:[%s1 + $0x3d0] sm:$0xff]
        %v426 = vld [vmem:[%s1 + $0x3d8] sm:$0xff]
        %v427 = vld [vmem:[%s1 + $0x3e0] sm:$0xff]
        %v428 = vld [vmem:[%s1 + $0x3e8] sm:$0xff]
        %v429 = vld [vmem:[%s1 + $0x3f0] sm:$0xff]
        %v430 = vld [vmem:[%s1 + $0x3f8] sm:$0xff]
        %v431 = vld [vmem:[%s2] sm:$0xff]
        %v433 = vlaneseq
        %v434 = vshrl.u32 %v433, 7
        %v435 = vsub.s32 0, %v434
        %v436 = vrot.slane %v431, %v435
        %v437 = vlaneseq
        %v438 = vshrl.u32 %v437, 7
        %v439 = vsub.s32 1, %v438
        %v440 = vrot.slane %v431, %v439
        %v441 = vlaneseq
        %v442 = vshrl.u32 %v441, 7
        %v443 = vsub.s32 2, %v442
        %v444 = vrot.slane %v431, %v443
        %v445 = vlaneseq
        %v446 = vshrl.u32 %v445, 7
        %v447 = vsub.s32 3, %v446
        %v448 = vrot.slane %v431, %v447
        %v449 = vlaneseq
        %v450 = vshrl.u32 %v449, 7
        %v451 = vsub.s32 4, %v450
        %v452 = vrot.slane %v431, %v451
        %v453 = vlaneseq
        %v454 = vshrl.u32 %v453, 7
        %v455 = vsub.s32 5, %v454
        %v456 = vrot.slane %v431, %v455
        %v457 = vlaneseq
        %v458 = vshrl.u32 %v457, 7
        %v459 = vsub.s32 6, %v458
        %v460 = vrot.slane %v431, %v459
        %v461 = vlaneseq
        %v462 = vshrl.u32 %v461, 7
        %v463 = vsub.s32 7, %v462
        %v464 = vrot.slane %v431, %v463
        %473 = vmatprep.subr.mxu0 %v304
        %474 = vmatpush1.msra.mxu0 %v303
        %475 = vmatprep.subr.mxu0 %v312
        %476 = vmatpush1.msra.mxu0 %v311
        %477 = vmatprep.subr.mxu0 %v320
        %478 = vmatpush1.msra.mxu0 %v319
        %479 = vmatprep.subr.mxu0 %v328
        %480 = vmatpush1.msra.mxu0 %v327
        %481 = vmatprep.subr.mxu0 %v336
        %482 = vmatpush1.msra.mxu0 %v335
        %483 = vmatprep.subr.mxu0 %v344
        %484 = vmatpush1.msra.mxu0 %v343
        %485 = vmatprep.subr.mxu0 %v352
        %486 = vmatpush1.msra.mxu0 %v351
        %487 = vmatprep.subr.mxu0 %v360
        %488 = vmatpush1.msra.mxu0 %v359
        %489 = vmatprep.subr.mxu0 %v368
        %490 = vmatpush1.msra.mxu0 %v367
        %491 = vmatprep.subr.mxu0 %v376
        %492 = vmatpush1.msra.mxu0 %v375
        %493 = vmatprep.subr.mxu0 %v384
        %494 = vmatpush1.msra.mxu0 %v383
        %495 = vmatprep.subr.mxu0 %v392
        %496 = vmatpush1.msra.mxu0 %v391
        %497 = vmatprep.subr.mxu0 %v400
        %498 = vmatpush1.msra.mxu0 %v399
        %499 = vmatprep.subr.mxu0 %v408
        %500 = vmatpush1.msra.mxu0 %v407
        %501 = vmatprep.subr.mxu0 %v416
        %502 = vmatpush1.msra.mxu0 %v415
        %503 = vmatprep.subr.mxu0 %v424
        %504 = vmatpush1.msra.mxu0 %v423
        %505 = vmatprep.subr.mxu0 0.0
        %506 = vmatpush1.msra.mxu0 0.0
        %507 = vmatprep.subr.mxu0 0.0
        %508 = vmatpush1.msra.mxu0 0.0
        %509 = vmatprep.subr.mxu0 0.0
        %510 = vmatpush1.msra.mxu0 0.0
        %511 = vmatprep.subr.mxu0 0.0
        %512 = vmatpush1.msra.mxu0 0.0
        %513 = vmatprep.subr.mxu0 0.0
        %514 = vmatpush1.msra.mxu0 0.0
        %515 = vmatprep.subr.mxu0 0.0
        %516 = vmatpush1.msra.mxu0 0.0
        %517 = vmatprep.subr.mxu0 0.0
        %518 = vmatpush1.msra.mxu0 0.0
        %519 = vmatprep.subr.mxu0 0.0
        %520 = vmatpush1.msra.mxu0 0.0
        %521 = vmatprep.subr.mxu0 0.0
        %522 = vmatpush1.msra.mxu0 0.0
        %523 = vmatprep.subr.mxu0 0.0
        %524 = vmatpush1.msra.mxu0 0.0
        %525 = vmatprep.subr.mxu0 0.0
        %526 = vmatpush1.msra.mxu0 0.0
        %527 = vmatprep.subr.mxu0 0.0
        %528 = vmatpush1.msra.mxu0 0.0
        %529 = vmatprep.subr.mxu0 0.0
        %530 = vmatpush1.msra.mxu0 0.0
        %531 = vmatprep.subr.mxu0 0.0
        %532 = vmatpush1.msra.mxu0 0.0
        %533 = vmatprep.subr.mxu0 0.0
        %534 = vmatpush1.msra.mxu0 0.0
        %535 = vmatprep.subr.mxu0 0.0
        %536 = vmatpush1.msra.mxu0 0.0
        %537 = vmatprep.mubr.f32.mxu0 0.0
        %538 = vmatmul.mubr.f32.gmra.mrb[0].mxu0 %v271
        %v539 = vpop.f32.mrb[0].mxu0
        %v540 = vadd.f32 %v436, %v539
        %v541 = vpop.f32.mrb[0].mxu0
        %v542 = vadd.f32 %v440, %v541
        %543 = vmatprep.mubr.f32.mxu0 0.0
        %544 = vmatmul.mubr.f32.gmra.mrb[0].mxu0 %v272
        %v545 = vpop.f32.mrb[0].mxu0
        %v546 = vadd.f32 %v436, %v545
        %v547 = vpop.f32.mrb[0].mxu0
        %v548 = vadd.f32 %v440, %v547
        %549 = vmatprep.mubr.f32.mxu0 0.0
        %550 = vmatmul.mubr.f32.gmra.mrb[0].mxu0 %v273
        %v551 = vpop.f32.mrb[0].mxu0
        %v552 = vadd.f32 %v436, %v551
        %v553 = vpop.f32.mrb[0].mxu0
        %v554 = vadd.f32 %v440, %v553
        %555 = vmatprep.mubr.f32.mxu0 0.0
        %556 = vmatmul.mubr.f32.gmra.mrb[0].mxu0 %v274
        %v557 = vpop.f32.mrb[0].mxu0
        %v558 = vadd.f32 %v436, %v557
        %v559 = vpop.f32.mrb[0].mxu0
        %v560 = vadd.f32 %v440, %v559
        %561 = vmatprep.mubr.f32.mxu0 0.0
        %562 = vmatmul.mubr.f32.gmra.mrb[0].mxu0 %v275
        %v563 = vpop.f32.mrb[0].mxu0
        %v564 = vadd.f32 %v436, %v563
        %v565 = vpop.f32.mrb[0].mxu0
        %v566 = vadd.f32 %v440, %v565
        %567 = vmatprep.mubr.f32.mxu0 0.0
        %568 = vmatmul.mubr.f32.gmra.mrb[0].mxu0 %v276
        %v569 = vpop.f32.mrb[0].mxu0
        %v570 = vadd.f32 %v436, %v569
        %v571 = vpop.f32.mrb[0].mxu0
        %v572 = vadd.f32 %v440, %v571
        %573 = vmatprep.mubr.f32.mxu0 0.0
        %574 = vmatmul.mubr.f32.gmra.mrb[0].mxu0 %v277
        %v575 = vpop.f32.mrb[0].mxu0
        %v576 = vadd.f32 %v436, %v575
        %v577 = vpop.f32.mrb[0].mxu0
        %v578 = vadd.f32 %v440, %v577
        %579 = vmatprep.mubr.f32.mxu0 0.0
        %580 = vmatmul.mubr.f32.gmra.mrb[0].mxu0 %v278
        %v581 = vpop.f32.mrb[0].mxu0
        %v582 = vadd.f32 %v436, %v581
        %v583 = vpop.f32.mrb[0].mxu0
        %v584 = vadd.f32 %v440, %v583
        %585 = vmatprep.mubr.f32.mxu0 0.0
        %586 = vmatmul.mubr.f32.gmra.mrb[0].mxu0 %v279
        %v587 = vpop.f32.mrb[0].mxu0
        %v588 = vadd.f32 %v436, %v587
        %v589 = vpop.f32.mrb[0].mxu0
        %v590 = vadd.f32 %v440, %v589
        %591 = vmatprep.mubr.f32.mxu0 0.0
        %592 = vmatmul.mubr.f32.gmra.mrb[0].mxu0 %v280
        %v593 = vpop.f32.mrb[0].mxu0
        %v594 = vadd.f32 %v436, %v593
        %v595 = vpop.f32.mrb[0].mxu0
        %v596 = vadd.f32 %v440, %v595
        %597 = vmatprep.mubr.f32.mxu0 0.0
        %598 = vmatmul.mubr.f32.gmra.mrb[0].mxu0 %v281
        %v599 = vpop.f32.mrb[0].mxu0
        %v600 = vadd.f32 %v436, %v599
        %v601 = vpop.f32.mrb[0].mxu0
        %v602 = vadd.f32 %v440, %v601
        %603 = vmatprep.mubr.f32.mxu0 0.0
        %604 = vmatmul.mubr.f32.gmra.mrb[0].mxu0 %v282
        %v605 = vpop.f32.mrb[0].mxu0
        %v606 = vadd.f32 %v436, %v605
        %v607 = vpop.f32.mrb[0].mxu0
        %v608 = vadd.f32 %v440, %v607
        %609 = vmatprep.mubr.f32.mxu0 0.0
        %610 = vmatmul.mubr.f32.gmra.mrb[0].mxu0 %v283
        %v611 = vpop.f32.mrb[0].mxu0
        %v612 = vadd.f32 %v436, %v611
        %v613 = vpop.f32.mrb[0].mxu0
        %v614 = vadd.f32 %v440, %v613
        %615 = vmatprep.mubr.f32.mxu0 0.0
        %616 = vmatmul.mubr.f32.gmra.mrb[0].mxu0 %v284
        %v617 = vpop.f32.mrb[0].mxu0
        %v618 = vadd.f32 %v436, %v617
        %v619 = vpop.f32.mrb[0].mxu0
        %v620 = vadd.f32 %v440, %v619
        %621 = vmatprep.mubr.f32.mxu0 0.0
        %622 = vmatmul.mubr.f32.gmra.mrb[0].mxu0 %v285
        %v623 = vpop.f32.mrb[0].mxu0
        %v624 = vadd.f32 %v436, %v623
        %v625 = vpop.f32.mrb[0].mxu0
        %v626 = vadd.f32 %v440, %v625
        %627 = vmatprep.mubr.f32.mxu0 0.0
        %628 = vmatmul.mubr.f32.gmra.mrb[0].mxu0 %v286
        %v629 = vpop.f32.mrb[0].mxu0
        %v630 = vadd.f32 %v436, %v629
        %v631 = vpop.f32.mrb[0].mxu0
        %v632 = vadd.f32 %v440, %v631
        %633 = vmatprep.mubr.f32.mxu0 0.0
        %634 = vmatmul.mubr.f32.gmra.mrb[0].mxu0 %v287
        %v635 = vpop.f32.mrb[0].mxu0
        %v636 = vadd.f32 %v436, %v635
        %v637 = vpop.f32.mrb[0].mxu0
        %v638 = vadd.f32 %v440, %v637
        %639 = vmatprep.mubr.f32.mxu0 0.0
        %640 = vmatmul.mubr.f32.gmra.mrb[0].mxu0 %v288
        %v641 = vpop.f32.mrb[0].mxu0
        %v642 = vadd.f32 %v436, %v641
        %v643 = vpop.f32.mrb[0].mxu0
        %v644 = vadd.f32 %v440, %v643
        %645 = vmatprep.mubr.f32.mxu0 0.0
        %646 = vmatmul.mubr.f32.gmra.mrb[0].mxu0 %v289
        %v647 = vpop.f32.mrb[0].mxu0
        %v648 = vadd.f32 %v436, %v647
        %v649 = vpop.f32.mrb[0].mxu0
        %v650 = vadd.f32 %v440, %v649
        %651 = vmatprep.mubr.f32.mxu0 0.0
        %652 = vmatmul.mubr.f32.gmra.mrb[0].mxu0 %v290
        %v653 = vpop.f32.mrb[0].mxu0
        %v654 = vadd.f32 %v436, %v653
        %v655 = vpop.f32.mrb[0].mxu0
        %v656 = vadd.f32 %v440, %v655
        %657 = vmatprep.mubr.f32.mxu0 0.0
        %658 = vmatmul.mubr.f32.gmra.mrb[0].mxu0 %v291
        %v659 = vpop.f32.mrb[0].mxu0
        %v660 = vadd.f32 %v436, %v659
        %v661 = vpop.f32.mrb[0].mxu0
        %v662 = vadd.f32 %v440, %v661
        %663 = vmatprep.mubr.f32.mxu0 0.0
        %664 = vmatmul.mubr.f32.gmra.mrb[0].mxu0 %v292
        %v665 = vpop.f32.mrb[0].mxu0
        %v666 = vadd.f32 %v436, %v665
        %v667 = vpop.f32.mrb[0].mxu0
        %v668 = vadd.f32 %v440, %v667
        %669 = vmatprep.mubr.f32.mxu0 0.0
        %670 = vmatmul.mubr.f32.gmra.mrb[0].mxu0 %v293
        %v671 = vpop.f32.mrb[0].mxu0
        %v672 = vadd.f32 %v436, %v671
        %v673 = vpop.f32.mrb[0].mxu0
        %v674 = vadd.f32 %v440, %v673
        %675 = vmatprep.mubr.f32.mxu0 0.0
        %676 = vmatmul.mubr.f32.gmra.mrb[0].mxu0 %v294
        %v677 = vpop.f32.mrb[0].mxu0
        %v678 = vadd.f32 %v436, %v677
        %v679 = vpop.f32.mrb[0].mxu0
        %v680 = vadd.f32 %v440, %v679
        %681 = vmatprep.mubr.f32.mxu0 0.0
        %682 = vmatmul.mubr.f32.gmra.mrb[0].mxu0 %v295
        %v683 = vpop.f32.mrb[0].mxu0
        %v684 = vadd.f32 %v436, %v683
        %v685 = vpop.f32.mrb[0].mxu0
        %v686 = vadd.f32 %v440, %v685
        %687 = vmatprep.mubr.f32.mxu0 0.0
        %688 = vmatmul.mubr.f32.gmra.mrb[0].mxu0 %v296
        %v689 = vpop.f32.mrb[0].mxu0
        %v690 = vadd.f32 %v436, %v689
        %v691 = vpop.f32.mrb[0].mxu0
        %v692 = vadd.f32 %v440, %v691
        %693 = vmatprep.mubr.f32.mxu0 0.0
        %694 = vmatmul.mubr.f32.gmra.mrb[0].mxu0 %v297
        %v695 = vpop.f32.mrb[0].mxu0
        %v696 = vadd.f32 %v436, %v695
        %v697 = vpop.f32.mrb[0].mxu0
        %v698 = vadd.f32 %v440, %v697
        %699 = vmatprep.mubr.f32.mxu0 0.0
        %700 = vmatmul.mubr.f32.gmra.mrb[0].mxu0 %v298
        %v701 = vpop.f32.mrb[0].mxu0
        %v702 = vadd.f32 %v436, %v701
        %v703 = vpop.f32.mrb[0].mxu0
        %v704 = vadd.f32 %v440, %v703
        %705 = vmatprep.mubr.f32.mxu0 0.0
        %706 = vmatmul.mubr.f32.gmra.mrb[0].mxu0 %v299
        %v707 = vpop.f32.mrb[0].mxu0
        %v708 = vadd.f32 %v436, %v707
        %v709 = vpop.f32.mrb[0].mxu0
        %v710 = vadd.f32 %v440, %v709
        %711 = vmatprep.mubr.f32.mxu0 0.0
        %712 = vmatmul.mubr.f32.gmra.mrb[0].mxu0 %v300
        %v713 = vpop.f32.mrb[0].mxu0
        %v714 = vadd.f32 %v436, %v713
        %v715 = vpop.f32.mrb[0].mxu0
        %v716 = vadd.f32 %v440, %v715
        %717 = vmatprep.mubr.f32.mxu0 0.0
        %718 = vmatmul.mubr.f32.gmra.mrb[0].mxu0 %v301
        %v719 = vpop.f32.mrb[0].mxu0
        %v720 = vadd.f32 %v436, %v719
        %v721 = vpop.f32.mrb[0].mxu0
        %v722 = vadd.f32 %v440, %v721
        %723 = vmatprep.mubr.f32.mxu0 0.0
        %724 = vmatmul.mubr.f32.gmra.mrb[0].mxu0 %v302
        %v725 = vpop.f32.mrb[0].mxu0
        %v726 = vadd.f32 %v436, %v725
        %v727 = vpop.f32.mrb[0].mxu0
        %v728 = vadd.f32 %v440, %v727
        %729 = vdwg.mxu0
        %730 = vmatprep.subr.mxu0 %v306
        %731 = vmatpush1.msra.mxu0 %v305
        %732 = vmatprep.subr.mxu0 %v314
        %733 = vmatpush1.msra.mxu0 %v313
        %734 = vmatprep.subr.mxu0 %v322
        %735 = vmatpush1.msra.mxu0 %v321
        %736 = vmatprep.subr.mxu0 %v330
        %737 = vmatpush1.msra.mxu0 %v329
        %738 = vmatprep.subr.mxu0 %v338
        %739 = vmatpush1.msra.mxu0 %v337
        %740 = vmatprep.subr.mxu0 %v346
        %741 = vmatpush1.msra.mxu0 %v345
        %742 = vmatprep.subr.mxu0 %v354
        %743 = vmatpush1.msra.mxu0 %v353
        %744 = vmatprep.subr.mxu0 %v362
        %745 = vmatpush1.msra.mxu0 %v361
        %746 = vmatprep.subr.mxu0 %v370
        %747 = vmatpush1.msra.mxu0 %v369
        %748 = vmatprep.subr.mxu0 %v378
        %749 = vmatpush1.msra.mxu0 %v377
        %750 = vmatprep.subr.mxu0 %v386
        %751 = vmatpush1.msra.mxu0 %v385
        %752 = vmatprep.subr.mxu0 %v394
        %753 = vmatpush1.msra.mxu0 %v393
        %754 = vmatprep.subr.mxu0 %v402
        %755 = vmatpush1.msra.mxu0 %v401
        %756 = vmatprep.subr.mxu0 %v410
        %757 = vmatpush1.msra.mxu0 %v409
        %758 = vmatprep.subr.mxu0 %v418
        %759 = vmatpush1.msra.mxu0 %v417
        %760 = vmatprep.subr.mxu0 %v426
        %761 = vmatpush1.msra.mxu0 %v425
        %762 = vmatprep.subr.mxu0 0.0
        %763 = vmatpush1.msra.mxu0 0.0
        %764 = vmatprep.subr.mxu0 0.0
        %765 = vmatpush1.msra.mxu0 0.0
        %766 = vmatprep.subr.mxu0 0.0
        %767 = vmatpush1.msra.mxu0 0.0
        %768 = vmatprep.subr.mxu0 0.0
        %769 = vmatpush1.msra.mxu0 0.0
        %770 = vmatprep.subr.mxu0 0.0
        %771 = vmatpush1.msra.mxu0 0.0
        %772 = vmatprep.subr.mxu0 0.0
        %773 = vmatpush1.msra.mxu0 0.0
        %774 = vmatprep.subr.mxu0 0.0
        %775 = vmatpush1.msra.mxu0 0.0
        %776 = vmatprep.subr.mxu0 0.0
        %777 = vmatpush1.msra.mxu0 0.0
        %778 = vmatprep.subr.mxu0 0.0
        %779 = vmatpush1.msra.mxu0 0.0
        %780 = vmatprep.subr.mxu0 0.0
        %781 = vmatpush1.msra.mxu0 0.0
        %782 = vmatprep.subr.mxu0 0.0
        %783 = vmatpush1.msra.mxu0 0.0
        %784 = vmatprep.subr.mxu0 0.0
        %785 = vmatpush1.msra.mxu0 0.0
        %786 = vmatprep.subr.mxu0 0.0
        %787 = vmatpush1.msra.mxu0 0.0
        %788 = vmatprep.subr.mxu0 0.0
        %789 = vmatpush1.msra.mxu0 0.0
        %790 = vmatprep.subr.mxu0 0.0
        %791 = vmatpush1.msra.mxu0 0.0
        %792 = vmatprep.subr.mxu0 0.0
        %793 = vmatpush1.msra.mxu0 0.0
        %794 = vmatprep.mubr.f32.mxu0 0.0
        %795 = vmatmul.mubr.f32.gmra.mrb[0].mxu0 %v271
        %v796 = vpop.f32.mrb[0].mxu0
        %v797 = vadd.f32 %v444, %v796
        %v798 = vpop.f32.mrb[0].mxu0
        %v799 = vadd.f32 %v448, %v798
        %800 = vmatprep.mubr.f32.mxu0 0.0
        %801 = vmatmul.mubr.f32.gmra.mrb[0].mxu0 %v272
        %v802 = vpop.f32.mrb[0].mxu0
        %v803 = vadd.f32 %v444, %v802
        %v804 = vpop.f32.mrb[0].mxu0
        %v805 = vadd.f32 %v448, %v804
        %806 = vmatprep.mubr.f32.mxu0 0.0
        %807 = vmatmul.mubr.f32.gmra.mrb[0].mxu0 %v273
        %v808 = vpop.f32.mrb[0].mxu0
        %v809 = vadd.f32 %v444, %v808
        %v810 = vpop.f32.mrb[0].mxu0
        %v811 = vadd.f32 %v448, %v810
        %812 = vmatprep.mubr.f32.mxu0 0.0
        %813 = vmatmul.mubr.f32.gmra.mrb[0].mxu0 %v274
        %v814 = vpop.f32.mrb[0].mxu0
        %v815 = vadd.f32 %v444, %v814
        %v816 = vpop.f32.mrb[0].mxu0
        %v817 = vadd.f32 %v448, %v816
        %818 = vmatprep.mubr.f32.mxu0 0.0
        %819 = vmatmul.mubr.f32.gmra.mrb[0].mxu0 %v275
        %v820 = vpop.f32.mrb[0].mxu0
        %v821 = vadd.f32 %v444, %v820
        %v822 = vpop.f32.mrb[0].mxu0
        %v823 = vadd.f32 %v448, %v822
        %824 = vmatprep.mubr.f32.mxu0 0.0
        %825 = vmatmul.mubr.f32.gmra.mrb[0].mxu0 %v276
        %v826 = vpop.f32.mrb[0].mxu0
        %v827 = vadd.f32 %v444, %v826
        %v828 = vpop.f32.mrb[0].mxu0
        %v829 = vadd.f32 %v448, %v828
        %830 = vmatprep.mubr.f32.mxu0 0.0
        %831 = vmatmul.mubr.f32.gmra.mrb[0].mxu0 %v277
        %v832 = vpop.f32.mrb[0].mxu0
        %v833 = vadd.f32 %v444, %v832
        %v834 = vpop.f32.mrb[0].mxu0
        %v835 = vadd.f32 %v448, %v834
        %836 = vmatprep.mubr.f32.mxu0 0.0
        %837 = vmatmul.mubr.f32.gmra.mrb[0].mxu0 %v278
        %v838 = vpop.f32.mrb[0].mxu0
        %v839 = vadd.f32 %v444, %v838
        %v840 = vpop.f32.mrb[0].mxu0
        %v841 = vadd.f32 %v448, %v840
        %842 = vmatprep.mubr.f32.mxu0 0.0
        %843 = vmatmul.mubr.f32.gmra.mrb[0].mxu0 %v279
        %v844 = vpop.f32.mrb[0].mxu0
        %v845 = vadd.f32 %v444, %v844
        %v846 = vpop.f32.mrb[0].mxu0
        %v847 = vadd.f32 %v448, %v846
        %848 = vmatprep.mubr.f32.mxu0 0.0
        %849 = vmatmul.mubr.f32.gmra.mrb[0].mxu0 %v280
        %v850 = vpop.f32.mrb[0].mxu0
        %v851 = vadd.f32 %v444, %v850
        %v852 = vpop.f32.mrb[0].mxu0
        %v853 = vadd.f32 %v448, %v852
        %854 = vmatprep.mubr.f32.mxu0 0.0
        %855 = vmatmul.mubr.f32.gmra.mrb[0].mxu0 %v281
        %v856 = vpop.f32.mrb[0].mxu0
        %v857 = vadd.f32 %v444, %v856
        %v858 = vpop.f32.mrb[0].mxu0
        %v859 = vadd.f32 %v448, %v858
        %860 = vmatprep.mubr.f32.mxu0 0.0
        %861 = vmatmul.mubr.f32.gmra.mrb[0].mxu0 %v282
        %v862 = vpop.f32.mrb[0].mxu0
        %v863 = vadd.f32 %v444, %v862
        %v864 = vpop.f32.mrb[0].mxu0
        %v865 = vadd.f32 %v448, %v864
        %866 = vmatprep.mubr.f32.mxu0 0.0
        %867 = vmatmul.mubr.f32.gmra.mrb[0].mxu0 %v283
        %v868 = vpop.f32.mrb[0].mxu0
        %v869 = vadd.f32 %v444, %v868
        %v870 = vpop.f32.mrb[0].mxu0
        %v871 = vadd.f32 %v448, %v870
        %872 = vmatprep.mubr.f32.mxu0 0.0
        %873 = vmatmul.mubr.f32.gmra.mrb[0].mxu0 %v284
        %v874 = vpop.f32.mrb[0].mxu0
        %v875 = vadd.f32 %v444, %v874
        %v876 = vpop.f32.mrb[0].mxu0
        %v877 = vadd.f32 %v448, %v876
        %878 = vmatprep.mubr.f32.mxu0 0.0
        %879 = vmatmul.mubr.f32.gmra.mrb[0].mxu0 %v285
        %v880 = vpop.f32.mrb[0].mxu0
        %v881 = vadd.f32 %v444, %v880
        %v882 = vpop.f32.mrb[0].mxu0
        %v883 = vadd.f32 %v448, %v882
        %884 = vmatprep.mubr.f32.mxu0 0.0
        %885 = vmatmul.mubr.f32.gmra.mrb[0].mxu0 %v286
        %v886 = vpop.f32.mrb[0].mxu0
        %v887 = vadd.f32 %v444, %v886
        %v888 = vpop.f32.mrb[0].mxu0
        %v889 = vadd.f32 %v448, %v888
        %890 = vmatprep.mubr.f32.mxu0 0.0
        %891 = vmatmul.mubr.f32.gmra.mrb[0].mxu0 %v287
        %v892 = vpop.f32.mrb[0].mxu0
        %v893 = vadd.f32 %v444, %v892
        %v894 = vpop.f32.mrb[0].mxu0
        %v895 = vadd.f32 %v448, %v894
        %896 = vmatprep.mubr.f32.mxu0 0.0
        %897 = vmatmul.mubr.f32.gmra.mrb[0].mxu0 %v288
        %v898 = vpop.f32.mrb[0].mxu0
        %v899 = vadd.f32 %v444, %v898
        %v900 = vpop.f32.mrb[0].mxu0
        %v901 = vadd.f32 %v448, %v900
        %902 = vmatprep.mubr.f32.mxu0 0.0
        %903 = vmatmul.mubr.f32.gmra.mrb[0].mxu0 %v289
        %v904 = vpop.f32.mrb[0].mxu0
        %v905 = vadd.f32 %v444, %v904
        %v906 = vpop.f32.mrb[0].mxu0
        %v907 = vadd.f32 %v448, %v906
        %908 = vmatprep.mubr.f32.mxu0 0.0
        %909 = vmatmul.mubr.f32.gmra.mrb[0].mxu0 %v290
        %v910 = vpop.f32.mrb[0].mxu0
        %v911 = vadd.f32 %v444, %v910
        %v912 = vpop.f32.mrb[0].mxu0
        %v913 = vadd.f32 %v448, %v912
        %914 = vmatprep.mubr.f32.mxu0 0.0
        %915 = vmatmul.mubr.f32.gmra.mrb[0].mxu0 %v291
        %v916 = vpop.f32.mrb[0].mxu0
        %v917 = vadd.f32 %v444, %v916
        %v918 = vpop.f32.mrb[0].mxu0
        %v919 = vadd.f32 %v448, %v918
        %920 = vmatprep.mubr.f32.mxu0 0.0
        %921 = vmatmul.mubr.f32.gmra.mrb[0].mxu0 %v292
        %v922 = vpop.f32.mrb[0].mxu0
        %v923 = vadd.f32 %v444, %v922
        %v924 = vpop.f32.mrb[0].mxu0
        %v925 = vadd.f32 %v448, %v924
        %926 = vmatprep.mubr.f32.mxu0 0.0
        %927 = vmatmul.mubr.f32.gmra.mrb[0].mxu0 %v293
        %v928 = vpop.f32.mrb[0].mxu0
        %v929 = vadd.f32 %v444, %v928
        %v930 = vpop.f32.mrb[0].mxu0
        %v931 = vadd.f32 %v448, %v930
        %932 = vmatprep.mubr.f32.mxu0 0.0
        %933 = vmatmul.mubr.f32.gmra.mrb[0].mxu0 %v294
        %v934 = vpop.f32.mrb[0].mxu0
        %v935 = vadd.f32 %v444, %v934
        %v936 = vpop.f32.mrb[0].mxu0
        %v937 = vadd.f32 %v448, %v936
        %938 = vmatprep.mubr.f32.mxu0 0.0
        %939 = vmatmul.mubr.f32.gmra.mrb[0].mxu0 %v295
        %v940 = vpop.f32.mrb[0].mxu0
        %v941 = vadd.f32 %v444, %v940
        %v942 = vpop.f32.mrb[0].mxu0
        %v943 = vadd.f32 %v448, %v942
        %944 = vmatprep.mubr.f32.mxu0 0.0
        %945 = vmatmul.mubr.f32.gmra.mrb[0].mxu0 %v296
        %v946 = vpop.f32.mrb[0].mxu0
        %v947 = vadd.f32 %v444, %v946
        %v948 = vpop.f32.mrb[0].mxu0
        %v949 = vadd.f32 %v448, %v948
        %950 = vmatprep.mubr.f32.mxu0 0.0
        %951 = vmatmul.mubr.f32.gmra.mrb[0].mxu0 %v297
        %v952 = vpop.f32.mrb[0].mxu0
        %v953 = vadd.f32 %v444, %v952
        %v954 = vpop.f32.mrb[0].mxu0
        %v955 = vadd.f32 %v448, %v954
        %956 = vmatprep.mubr.f32.mxu0 0.0
        %957 = vmatmul.mubr.f32.gmra.mrb[0].mxu0 %v298
        %v958 = vpop.f32.mrb[0].mxu0
        %v959 = vadd.f32 %v444, %v958
        %v960 = vpop.f32.mrb[0].mxu0
        %v961 = vadd.f32 %v448, %v960
        %962 = vmatprep.mubr.f32.mxu0 0.0
        %963 = vmatmul.mubr.f32.gmra.mrb[0].mxu0 %v299
        %v964 = vpop.f32.mrb[0].mxu0
        %v965 = vadd.f32 %v444, %v964
        %v966 = vpop.f32.mrb[0].mxu0
        %v967 = vadd.f32 %v448, %v966
        %968 = vmatprep.mubr.f32.mxu0 0.0
        %969 = vmatmul.mubr.f32.gmra.mrb[0].mxu0 %v300
        %v970 = vpop.f32.mrb[0].mxu0
        %v971 = vadd.f32 %v444, %v970
        %v972 = vpop.f32.mrb[0].mxu0
        %v973 = vadd.f32 %v448, %v972
        %974 = vmatprep.mubr.f32.mxu0 0.0
        %975 = vmatmul.mubr.f32.gmra.mrb[0].mxu0 %v301
        %v976 = vpop.f32.mrb[0].mxu0
        %v977 = vadd.f32 %v444, %v976
        %v978 = vpop.f32.mrb[0].mxu0
        %v979 = vadd.f32 %v448, %v978
        %980 = vmatprep.mubr.f32.mxu0 0.0
        %981 = vmatmul.mubr.f32.gmra.mrb[0].mxu0 %v302
        %v982 = vpop.f32.mrb[0].mxu0
        %v983 = vadd.f32 %v444, %v982
        %v984 = vpop.f32.mrb[0].mxu0
        %v985 = vadd.f32 %v448, %v984
        %986 = vdwg.mxu0
        %987 = vmatprep.subr.mxu0 %v308
        %988 = vmatpush1.msra.mxu0 %v307
        %989 = vmatprep.subr.mxu0 %v316
        %990 = vmatpush1.msra.mxu0 %v315
        %991 = vmatprep.subr.mxu0 %v324
        %992 = vmatpush1.msra.mxu0 %v323
        %993 = vmatprep.subr.mxu0 %v332
        %994 = vmatpush1.msra.mxu0 %v331
        %995 = vmatprep.subr.mxu0 %v340
        %996 = vmatpush1.msra.mxu0 %v339
        %997 = vmatprep.subr.mxu0 %v348
        %998 = vmatpush1.msra.mxu0 %v347
        %999 = vmatprep.subr.mxu0 %v356
        %1000 = vmatpush1.msra.mxu0 %v355
        %1001 = vmatprep.subr.mxu0 %v364
        %1002 = vmatpush1.msra.mxu0 %v363
        %1003 = vmatprep.subr.mxu0 %v372
        %1004 = vmatpush1.msra.mxu0 %v371
        %1005 = vmatprep.subr.mxu0 %v380
        %1006 = vmatpush1.msra.mxu0 %v379
        %1007 = vmatprep.subr.mxu0 %v388
        %1008 = vmatpush1.msra.mxu0 %v387
        %1009 = vmatprep.subr.mxu0 %v396
        %1010 = vmatpush1.msra.mxu0 %v395
        %1011 = vmatprep.subr.mxu0 %v404
        %1012 = vmatpush1.msra.mxu0 %v403
        %1013 = vmatprep.subr.mxu0 %v412
        %1014 = vmatpush1.msra.mxu0 %v411
        %1015 = vmatprep.subr.mxu0 %v420
        %1016 = vmatpush1.msra.mxu0 %v419
        %1017 = vmatprep.subr.mxu0 %v428
        %1018 = vmatpush1.msra.mxu0 %v427
        %1019 = vmatprep.subr.mxu0 0.0
        %1020 = vmatpush1.msra.mxu0 0.0
        %1021 = vmatprep.subr.mxu0 0.0
        %1022 = vmatpush1.msra.mxu0 0.0
        %1023 = vmatprep.subr.mxu0 0.0
        %1024 = vmatpush1.msra.mxu0 0.0
        %1025 = vmatprep.subr.mxu0 0.0
        %1026 = vmatpush1.msra.mxu0 0.0
        %1027 = vmatprep.subr.mxu0 0.0
        %1028 = vmatpush1.msra.mxu0 0.0
        %1029 = vmatprep.subr.mxu0 0.0
        %1030 = vmatpush1.msra.mxu0 0.0
        %1031 = vmatprep.subr.mxu0 0.0
        %1032 = vmatpush1.msra.mxu0 0.0
        %1033 = vmatprep.subr.mxu0 0.0
        %1034 = vmatpush1.msra.mxu0 0.0
        %1035 = vmatprep.subr.mxu0 0.0
        %1036 = vmatpush1.msra.mxu0 0.0
        %1037 = vmatprep.subr.mxu0 0.0
        %1038 = vmatpush1.msra.mxu0 0.0
        %1039 = vmatprep.subr.mxu0 0.0
        %1040 = vmatpush1.msra.mxu0 0.0
        %1041 = vmatprep.subr.mxu0 0.0
        %1042 = vmatpush1.msra.mxu0 0.0
        %1043 = vmatprep.subr.mxu0 0.0
        %1044 = vmatpush1.msra.mxu0 0.0
        %1045 = vmatprep.subr.mxu0 0.0
        %1046 = vmatpush1.msra.mxu0 0.0
        %1047 = vmatprep.subr.mxu0 0.0
        %1048 = vmatpush1.msra.mxu0 0.0
        %1049 = vmatprep.subr.mxu0 0.0
        %1050 = vmatpush1.msra.mxu0 0.0
        %1051 = vmatprep.mubr.f32.mxu0 0.0
        %1052 = vmatmul.mubr.f32.gmra.mrb[0].mxu0 %v271
        %v1053 = vpop.f32.mrb[0].mxu0
        %v1054 = vadd.f32 %v452, %v1053
        %v1055 = vpop.f32.mrb[0].mxu0
        %v1056 = vadd.f32 %v456, %v1055
        %1057 = vmatprep.mubr.f32.mxu0 0.0
        %1058 = vmatmul.mubr.f32.gmra.mrb[0].mxu0 %v272
        %v1059 = vpop.f32.mrb[0].mxu0
        %v1060 = vadd.f32 %v452, %v1059
        %v1061 = vpop.f32.mrb[0].mxu0
        %v1062 = vadd.f32 %v456, %v1061
        %1063 = vmatprep.mubr.f32.mxu0 0.0
        %1064 = vmatmul.mubr.f32.gmra.mrb[0].mxu0 %v273
        %v1065 = vpop.f32.mrb[0].mxu0
        %v1066 = vadd.f32 %v452, %v1065
        %v1067 = vpop.f32.mrb[0].mxu0
        %v1068 = vadd.f32 %v456, %v1067
        %1069 = vmatprep.mubr.f32.mxu0 0.0
        %1070 = vmatmul.mubr.f32.gmra.mrb[0].mxu0 %v274
        %v1071 = vpop.f32.mrb[0].mxu0
        %v1072 = vadd.f32 %v452, %v1071
        %v1073 = vpop.f32.mrb[0].mxu0
        %v1074 = vadd.f32 %v456, %v1073
        %1075 = vmatprep.mubr.f32.mxu0 0.0
        %1076 = vmatmul.mubr.f32.gmra.mrb[0].mxu0 %v275
        %v1077 = vpop.f32.mrb[0].mxu0
        %v1078 = vadd.f32 %v452, %v1077
        %v1079 = vpop.f32.mrb[0].mxu0
        %v1080 = vadd.f32 %v456, %v1079
        %1081 = vmatprep.mubr.f32.mxu0 0.0
        %1082 = vmatmul.mubr.f32.gmra.mrb[0].mxu0 %v276
        %v1083 = vpop.f32.mrb[0].mxu0
        %v1084 = vadd.f32 %v452, %v1083
        %v1085 = vpop.f32.mrb[0].mxu0
        %v1086 = vadd.f32 %v456, %v1085
        %1087 = vmatprep.mubr.f32.mxu0 0.0
        %1088 = vmatmul.mubr.f32.gmra.mrb[0].mxu0 %v277
        %v1089 = vpop.f32.mrb[0].mxu0
        %v1090 = vadd.f32 %v452, %v1089
        %v1091 = vpop.f32.mrb[0].mxu0
        %v1092 = vadd.f32 %v456, %v1091
        %1093 = vmatprep.mubr.f32.mxu0 0.0
        %1094 = vmatmul.mubr.f32.gmra.mrb[0].mxu0 %v278
        %v1095 = vpop.f32.mrb[0].mxu0
        %v1096 = vadd.f32 %v452, %v1095
        %v1097 = vpop.f32.mrb[0].mxu0
        %v1098 = vadd.f32 %v456, %v1097
        %1099 = vmatprep.mubr.f32.mxu0 0.0
        %1100 = vmatmul.mubr.f32.gmra.mrb[0].mxu0 %v279
        %v1101 = vpop.f32.mrb[0].mxu0
        %v1102 = vadd.f32 %v452, %v1101
        %v1103 = vpop.f32.mrb[0].mxu0
        %v1104 = vadd.f32 %v456, %v1103
        %1105 = vmatprep.mubr.f32.mxu0 0.0
        %1106 = vmatmul.mubr.f32.gmra.mrb[0].mxu0 %v280
        %v1107 = vpop.f32.mrb[0].mxu0
        %v1108 = vadd.f32 %v452, %v1107
        %v1109 = vpop.f32.mrb[0].mxu0
        %v1110 = vadd.f32 %v456, %v1109
        %1111 = vmatprep.mubr.f32.mxu0 0.0
        %1112 = vmatmul.mubr.f32.gmra.mrb[0].mxu0 %v281
        %v1113 = vpop.f32.mrb[0].mxu0
        %v1114 = vadd.f32 %v452, %v1113
        %v1115 = vpop.f32.mrb[0].mxu0
        %v1116 = vadd.f32 %v456, %v1115
        %1117 = vmatprep.mubr.f32.mxu0 0.0
        %1118 = vmatmul.mubr.f32.gmra.mrb[0].mxu0 %v282
        %v1119 = vpop.f32.mrb[0].mxu0
        %v1120 = vadd.f32 %v452, %v1119
        %v1121 = vpop.f32.mrb[0].mxu0
        %v1122 = vadd.f32 %v456, %v1121
        %1123 = vmatprep.mubr.f32.mxu0 0.0
        %1124 = vmatmul.mubr.f32.gmra.mrb[0].mxu0 %v283
        %v1125 = vpop.f32.mrb[0].mxu0
        %v1126 = vadd.f32 %v452, %v1125
        %v1127 = vpop.f32.mrb[0].mxu0
        %v1128 = vadd.f32 %v456, %v1127
        %1129 = vmatprep.mubr.f32.mxu0 0.0
        %1130 = vmatmul.mubr.f32.gmra.mrb[0].mxu0 %v284
        %v1131 = vpop.f32.mrb[0].mxu0
        %v1132 = vadd.f32 %v452, %v1131
        %v1133 = vpop.f32.mrb[0].mxu0
        %v1134 = vadd.f32 %v456, %v1133
        %1135 = vmatprep.mubr.f32.mxu0 0.0
        %1136 = vmatmul.mubr.f32.gmra.mrb[0].mxu0 %v285
        %v1137 = vpop.f32.mrb[0].mxu0
        %v1138 = vadd.f32 %v452, %v1137
        %v1139 = vpop.f32.mrb[0].mxu0
        %v1140 = vadd.f32 %v456, %v1139
        %1141 = vmatprep.mubr.f32.mxu0 0.0
        %1142 = vmatmul.mubr.f32.gmra.mrb[0].mxu0 %v286
        %v1143 = vpop.f32.mrb[0].mxu0
        %v1144 = vadd.f32 %v452, %v1143
        %v1145 = vpop.f32.mrb[0].mxu0
        %v1146 = vadd.f32 %v456, %v1145
        %1147 = vmatprep.mubr.f32.mxu0 0.0
        %1148 = vmatmul.mubr.f32.gmra.mrb[0].mxu0 %v287
        %v1149 = vpop.f32.mrb[0].mxu0
        %v1150 = vadd.f32 %v452, %v1149
        %v1151 = vpop.f32.mrb[0].mxu0
        %v1152 = vadd.f32 %v456, %v1151
        %1153 = vmatprep.mubr.f32.mxu0 0.0
        %1154 = vmatmul.mubr.f32.gmra.mrb[0].mxu0 %v288
        %v1155 = vpop.f32.mrb[0].mxu0
        %v1156 = vadd.f32 %v452, %v1155
        %v1157 = vpop.f32.mrb[0].mxu0
        %v1158 = vadd.f32 %v456, %v1157
        %1159 = vmatprep.mubr.f32.mxu0 0.0
        %1160 = vmatmul.mubr.f32.gmra.mrb[0].mxu0 %v289
        %v1161 = vpop.f32.mrb[0].mxu0
        %v1162 = vadd.f32 %v452, %v1161
        %v1163 = vpop.f32.mrb[0].mxu0
        %v1164 = vadd.f32 %v456, %v1163
        %1165 = vmatprep.mubr.f32.mxu0 0.0
        %1166 = vmatmul.mubr.f32.gmra.mrb[0].mxu0 %v290
        %v1167 = vpop.f32.mrb[0].mxu0
        %v1168 = vadd.f32 %v452, %v1167
        %v1169 = vpop.f32.mrb[0].mxu0
        %v1170 = vadd.f32 %v456, %v1169
        %1171 = vmatprep.mubr.f32.mxu0 0.0
        %1172 = vmatmul.mubr.f32.gmra.mrb[0].mxu0 %v291
        %v1173 = vpop.f32.mrb[0].mxu0
        %v1174 = vadd.f32 %v452, %v1173
        %v1175 = vpop.f32.mrb[0].mxu0
        %v1176 = vadd.f32 %v456, %v1175
        %1177 = vmatprep.mubr.f32.mxu0 0.0
        %1178 = vmatmul.mubr.f32.gmra.mrb[0].mxu0 %v292
        %v1179 = vpop.f32.mrb[0].mxu0
        %v1180 = vadd.f32 %v452, %v1179
        %v1181 = vpop.f32.mrb[0].mxu0
        %v1182 = vadd.f32 %v456, %v1181
        %1183 = vmatprep.mubr.f32.mxu0 0.0
        %1184 = vmatmul.mubr.f32.gmra.mrb[0].mxu0 %v293
        %v1185 = vpop.f32.mrb[0].mxu0
        %v1186 = vadd.f32 %v452, %v1185
        %v1187 = vpop.f32.mrb[0].mxu0
        %v1188 = vadd.f32 %v456, %v1187
        %1189 = vmatprep.mubr.f32.mxu0 0.0
        %1190 = vmatmul.mubr.f32.gmra.mrb[0].mxu0 %v294
        %v1191 = vpop.f32.mrb[0].mxu0
        %v1192 = vadd.f32 %v452, %v1191
        %v1193 = vpop.f32.mrb[0].mxu0
        %v1194 = vadd.f32 %v456, %v1193
        %1195 = vmatprep.mubr.f32.mxu0 0.0
        %1196 = vmatmul.mubr.f32.gmra.mrb[0].mxu0 %v295
        %v1197 = vpop.f32.mrb[0].mxu0
        %v1198 = vadd.f32 %v452, %v1197
        %v1199 = vpop.f32.mrb[0].mxu0
        %v1200 = vadd.f32 %v456, %v1199
        %1201 = vmatprep.mubr.f32.mxu0 0.0
        %1202 = vmatmul.mubr.f32.gmra.mrb[0].mxu0 %v296
        %v1203 = vpop.f32.mrb[0].mxu0
        %v1204 = vadd.f32 %v452, %v1203
        %v1205 = vpop.f32.mrb[0].mxu0
        %v1206 = vadd.f32 %v456, %v1205
        %1207 = vmatprep.mubr.f32.mxu0 0.0
        %1208 = vmatmul.mubr.f32.gmra.mrb[0].mxu0 %v297
        %v1209 = vpop.f32.mrb[0].mxu0
        %v1210 = vadd.f32 %v452, %v1209
        %v1211 = vpop.f32.mrb[0].mxu0
        %v1212 = vadd.f32 %v456, %v1211
        %1213 = vmatprep.mubr.f32.mxu0 0.0
        %1214 = vmatmul.mubr.f32.gmra.mrb[0].mxu0 %v298
        %v1215 = vpop.f32.mrb[0].mxu0
        %v1216 = vadd.f32 %v452, %v1215
        %v1217 = vpop.f32.mrb[0].mxu0
        %v1218 = vadd.f32 %v456, %v1217
        %1219 = vmatprep.mubr.f32.mxu0 0.0
        %1220 = vmatmul.mubr.f32.gmra.mrb[0].mxu0 %v299
        %v1221 = vpop.f32.mrb[0].mxu0
        %v1222 = vadd.f32 %v452, %v1221
        %v1223 = vpop.f32.mrb[0].mxu0
        %v1224 = vadd.f32 %v456, %v1223
        %1225 = vmatprep.mubr.f32.mxu0 0.0
        %1226 = vmatmul.mubr.f32.gmra.mrb[0].mxu0 %v300
        %v1227 = vpop.f32.mrb[0].mxu0
        %v1228 = vadd.f32 %v452, %v1227
        %v1229 = vpop.f32.mrb[0].mxu0
        %v1230 = vadd.f32 %v456, %v1229
        %1231 = vmatprep.mubr.f32.mxu0 0.0
        %1232 = vmatmul.mubr.f32.gmra.mrb[0].mxu0 %v301
        %v1233 = vpop.f32.mrb[0].mxu0
        %v1234 = vadd.f32 %v452, %v1233
        %v1235 = vpop.f32.mrb[0].mxu0
        %v1236 = vadd.f32 %v456, %v1235
        %1237 = vmatprep.mubr.f32.mxu0 0.0
        %1238 = vmatmul.mubr.f32.gmra.mrb[0].mxu0 %v302
        %v1239 = vpop.f32.mrb[0].mxu0
        %v1240 = vadd.f32 %v452, %v1239
        %v1241 = vpop.f32.mrb[0].mxu0
        %v1242 = vadd.f32 %v456, %v1241
        %1243 = vdwg.mxu0
        %1244 = vmatprep.subr.mxu0 %v310
        %1245 = vmatpush1.msra.mxu0 %v309
        %1246 = vmatprep.subr.mxu0 %v318
        %1247 = vmatpush1.msra.mxu0 %v317
        %1248 = vmatprep.subr.mxu0 %v326
        %1249 = vmatpush1.msra.mxu0 %v325
        %1250 = vmatprep.subr.mxu0 %v334
        %1251 = vmatpush1.msra.mxu0 %v333
        %1252 = vmatprep.subr.mxu0 %v342
        %1253 = vmatpush1.msra.mxu0 %v341
        %1254 = vmatprep.subr.mxu0 %v350
        %1255 = vmatpush1.msra.mxu0 %v349
        %1256 = vmatprep.subr.mxu0 %v358
        %1257 = vmatpush1.msra.mxu0 %v357
        %1258 = vmatprep.subr.mxu0 %v366
        %1259 = vmatpush1.msra.mxu0 %v365
        %1260 = vmatprep.subr.mxu0 %v374
        %1261 = vmatpush1.msra.mxu0 %v373
        %1262 = vmatprep.subr.mxu0 %v382
        %1263 = vmatpush1.msra.mxu0 %v381
        %1264 = vmatprep.subr.mxu0 %v390
        %1265 = vmatpush1.msra.mxu0 %v389
        %1266 = vmatprep.subr.mxu0 %v398
        %1267 = vmatpush1.msra.mxu0 %v397
        %1268 = vmatprep.subr.mxu0 %v406
        %1269 = vmatpush1.msra.mxu0 %v405
        %1270 = vmatprep.subr.mxu0 %v414
        %1271 = vmatpush1.msra.mxu0 %v413
        %1272 = vmatprep.subr.mxu0 %v422
        %1273 = vmatpush1.msra.mxu0 %v421
        %1274 = vmatprep.subr.mxu0 %v430
        %1275 = vmatpush1.msra.mxu0 %v429
        %1276 = vmatprep.subr.mxu0 0.0
        %1277 = vmatpush1.msra.mxu0 0.0
        %1278 = vmatprep.subr.mxu0 0.0
        %1279 = vmatpush1.msra.mxu0 0.0
        %1280 = vmatprep.subr.mxu0 0.0
        %1281 = vmatpush1.msra.mxu0 0.0
        %1282 = vmatprep.subr.mxu0 0.0
        %1283 = vmatpush1.msra.mxu0 0.0
        %1284 = vmatprep.subr.mxu0 0.0
        %1285 = vmatpush1.msra.mxu0 0.0
        %1286 = vmatprep.subr.mxu0 0.0
        %1287 = vmatpush1.msra.mxu0 0.0
        %1288 = vmatprep.subr.mxu0 0.0
        %1289 = vmatpush1.msra.mxu0 0.0
        %1290 = vmatprep.subr.mxu0 0.0
        %1291 = vmatpush1.msra.mxu0 0.0
        %1292 = vmatprep.subr.mxu0 0.0
        %1293 = vmatpush1.msra.mxu0 0.0
        %1294 = vmatprep.subr.mxu0 0.0
        %1295 = vmatpush1.msra.mxu0 0.0
        %1296 = vmatprep.subr.mxu0 0.0
        %1297 = vmatpush1.msra.mxu0 0.0
        %1298 = vmatprep.subr.mxu0 0.0
        %1299 = vmatpush1.msra.mxu0 0.0
        %1300 = vmatprep.subr.mxu0 0.0
        %1301 = vmatpush1.msra.mxu0 0.0
        %1302 = vmatprep.subr.mxu0 0.0
        %1303 = vmatpush1.msra.mxu0 0.0
        %1304 = vmatprep.subr.mxu0 0.0
        %1305 = vmatpush1.msra.mxu0 0.0
        %1306 = vmatprep.subr.mxu0 0.0
        %1307 = vmatpush1.msra.mxu0 0.0
        %1308 = vmatprep.mubr.f32.mxu0 0.0
        %1309 = vmatmul.mubr.f32.gmra.mrb[0].mxu0 %v271
        %v1310 = vpop.f32.mrb[0].mxu0
        %v1311 = vadd.f32 %v460, %v1310
        %v1312 = vpop.f32.mrb[0].mxu0
        %v1313 = vadd.f32 %v464, %v1312
        %1314 = vmatprep.mubr.f32.mxu0 0.0
        %1315 = vmatmul.mubr.f32.gmra.mrb[0].mxu0 %v272
        %v1316 = vpop.f32.mrb[0].mxu0
        %v1317 = vadd.f32 %v460, %v1316
        %v1318 = vpop.f32.mrb[0].mxu0
        %v1319 = vadd.f32 %v464, %v1318
        %1320 = vmatprep.mubr.f32.mxu0 0.0
        %1321 = vmatmul.mubr.f32.gmra.mrb[0].mxu0 %v273
        %v1322 = vpop.f32.mrb[0].mxu0
        %v1323 = vadd.f32 %v460, %v1322
        %v1324 = vpop.f32.mrb[0].mxu0
        %v1325 = vadd.f32 %v464, %v1324
        %1326 = vmatprep.mubr.f32.mxu0 0.0
        %1327 = vmatmul.mubr.f32.gmra.mrb[0].mxu0 %v274
        %v1328 = vpop.f32.mrb[0].mxu0
        %v1329 = vadd.f32 %v460, %v1328
        %v1330 = vpop.f32.mrb[0].mxu0
        %v1331 = vadd.f32 %v464, %v1330
        %1332 = vmatprep.mubr.f32.mxu0 0.0
        %1333 = vmatmul.mubr.f32.gmra.mrb[0].mxu0 %v275
        %v1334 = vpop.f32.mrb[0].mxu0
        %v1335 = vadd.f32 %v460, %v1334
        %v1336 = vpop.f32.mrb[0].mxu0
        %v1337 = vadd.f32 %v464, %v1336
        %1338 = vmatprep.mubr.f32.mxu0 0.0
        %1339 = vmatmul.mubr.f32.gmra.mrb[0].mxu0 %v276
        %v1340 = vpop.f32.mrb[0].mxu0
        %v1341 = vadd.f32 %v460, %v1340
        %v1342 = vpop.f32.mrb[0].mxu0
        %v1343 = vadd.f32 %v464, %v1342
        %1344 = vmatprep.mubr.f32.mxu0 0.0
        %1345 = vmatmul.mubr.f32.gmra.mrb[0].mxu0 %v277
        %v1346 = vpop.f32.mrb[0].mxu0
        %v1347 = vadd.f32 %v460, %v1346
        %v1348 = vpop.f32.mrb[0].mxu0
        %v1349 = vadd.f32 %v464, %v1348
        %1350 = vmatprep.mubr.f32.mxu0 0.0
        %1351 = vmatmul.mubr.f32.gmra.mrb[0].mxu0 %v278
        %v1352 = vpop.f32.mrb[0].mxu0
        %v1353 = vadd.f32 %v460, %v1352
        %v1354 = vpop.f32.mrb[0].mxu0
        %v1355 = vadd.f32 %v464, %v1354
        %1356 = vmatprep.mubr.f32.mxu0 0.0
        %1357 = vmatmul.mubr.f32.gmra.mrb[0].mxu0 %v279
        %v1358 = vpop.f32.mrb[0].mxu0
        %v1359 = vadd.f32 %v460, %v1358
        %v1360 = vpop.f32.mrb[0].mxu0
        %v1361 = vadd.f32 %v464, %v1360
        %1362 = vmatprep.mubr.f32.mxu0 0.0
        %1363 = vmatmul.mubr.f32.gmra.mrb[0].mxu0 %v280
        %v1364 = vpop.f32.mrb[0].mxu0
        %v1365 = vadd.f32 %v460, %v1364
        %v1366 = vpop.f32.mrb[0].mxu0
        %v1367 = vadd.f32 %v464, %v1366
        %1368 = vmatprep.mubr.f32.mxu0 0.0
        %1369 = vmatmul.mubr.f32.gmra.mrb[0].mxu0 %v281
        %v1370 = vpop.f32.mrb[0].mxu0
        %v1371 = vadd.f32 %v460, %v1370
        %v1372 = vpop.f32.mrb[0].mxu0
        %v1373 = vadd.f32 %v464, %v1372
        %1374 = vmatprep.mubr.f32.mxu0 0.0
        %1375 = vmatmul.mubr.f32.gmra.mrb[0].mxu0 %v282
        %v1376 = vpop.f32.mrb[0].mxu0
        %v1377 = vadd.f32 %v460, %v1376
        %v1378 = vpop.f32.mrb[0].mxu0
        %v1379 = vadd.f32 %v464, %v1378
        %1380 = vmatprep.mubr.f32.mxu0 0.0
        %1381 = vmatmul.mubr.f32.gmra.mrb[0].mxu0 %v283
        %v1382 = vpop.f32.mrb[0].mxu0
        %v1383 = vadd.f32 %v460, %v1382
        %v1384 = vpop.f32.mrb[0].mxu0
        %v1385 = vadd.f32 %v464, %v1384
        %1386 = vmatprep.mubr.f32.mxu0 0.0
        %1387 = vmatmul.mubr.f32.gmra.mrb[0].mxu0 %v284
        %v1388 = vpop.f32.mrb[0].mxu0
        %v1389 = vadd.f32 %v460, %v1388
        %v1390 = vpop.f32.mrb[0].mxu0
        %v1391 = vadd.f32 %v464, %v1390
        %1392 = vmatprep.mubr.f32.mxu0 0.0
        %1393 = vmatmul.mubr.f32.gmra.mrb[0].mxu0 %v285
        %v1394 = vpop.f32.mrb[0].mxu0
        %v1395 = vadd.f32 %v460, %v1394
        %v1396 = vpop.f32.mrb[0].mxu0
        %v1397 = vadd.f32 %v464, %v1396
        %1398 = vmatprep.mubr.f32.mxu0 0.0
        %1399 = vmatmul.mubr.f32.gmra.mrb[0].mxu0 %v286
        %v1400 = vpop.f32.mrb[0].mxu0
        %v1401 = vadd.f32 %v460, %v1400
        %v1402 = vpop.f32.mrb[0].mxu0
        %v1403 = vadd.f32 %v464, %v1402
        %1404 = vmatprep.mubr.f32.mxu0 0.0
        %1405 = vmatmul.mubr.f32.gmra.mrb[0].mxu0 %v287
        %v1406 = vpop.f32.mrb[0].mxu0
        %v1407 = vadd.f32 %v460, %v1406
        %v1408 = vpop.f32.mrb[0].mxu0
        %v1409 = vadd.f32 %v464, %v1408
        %1410 = vmatprep.mubr.f32.mxu0 0.0
        %1411 = vmatmul.mubr.f32.gmra.mrb[0].mxu0 %v288
        %v1412 = vpop.f32.mrb[0].mxu0
        %v1413 = vadd.f32 %v460, %v1412
        %v1414 = vpop.f32.mrb[0].mxu0
        %v1415 = vadd.f32 %v464, %v1414
        %1416 = vmatprep.mubr.f32.mxu0 0.0
        %1417 = vmatmul.mubr.f32.gmra.mrb[0].mxu0 %v289
        %v1418 = vpop.f32.mrb[0].mxu0
        %v1419 = vadd.f32 %v460, %v1418
        %v1420 = vpop.f32.mrb[0].mxu0
        %v1421 = vadd.f32 %v464, %v1420
        %1422 = vmatprep.mubr.f32.mxu0 0.0
        %1423 = vmatmul.mubr.f32.gmra.mrb[0].mxu0 %v290
        %v1424 = vpop.f32.mrb[0].mxu0
        %v1425 = vadd.f32 %v460, %v1424
        %v1426 = vpop.f32.mrb[0].mxu0
        %v1427 = vadd.f32 %v464, %v1426
        %1428 = vmatprep.mubr.f32.mxu0 0.0
        %1429 = vmatmul.mubr.f32.gmra.mrb[0].mxu0 %v291
        %v1430 = vpop.f32.mrb[0].mxu0
        %v1431 = vadd.f32 %v460, %v1430
        %v1432 = vpop.f32.mrb[0].mxu0
        %v1433 = vadd.f32 %v464, %v1432
        %1434 = vmatprep.mubr.f32.mxu0 0.0
        %1435 = vmatmul.mubr.f32.gmra.mrb[0].mxu0 %v292
        %v1436 = vpop.f32.mrb[0].mxu0
        %v1437 = vadd.f32 %v460, %v1436
        %v1438 = vpop.f32.mrb[0].mxu0
        %v1439 = vadd.f32 %v464, %v1438
        %1440 = vmatprep.mubr.f32.mxu0 0.0
        %1441 = vmatmul.mubr.f32.gmra.mrb[0].mxu0 %v293
        %v1442 = vpop.f32.mrb[0].mxu0
        %v1443 = vadd.f32 %v460, %v1442
        %v1444 = vpop.f32.mrb[0].mxu0
        %v1445 = vadd.f32 %v464, %v1444
        %1446 = vmatprep.mubr.f32.mxu0 0.0
        %1447 = vmatmul.mubr.f32.gmra.mrb[0].mxu0 %v294
        %v1448 = vpop.f32.mrb[0].mxu0
        %v1449 = vadd.f32 %v460, %v1448
        %v1450 = vpop.f32.mrb[0].mxu0
        %v1451 = vadd.f32 %v464, %v1450
        %1452 = vmatprep.mubr.f32.mxu0 0.0
        %1453 = vmatmul.mubr.f32.gmra.mrb[0].mxu0 %v295
        %v1454 = vpop.f32.mrb[0].mxu0
        %v1455 = vadd.f32 %v460, %v1454
        %v1456 = vpop.f32.mrb[0].mxu0
        %v1457 = vadd.f32 %v464, %v1456
        %1458 = vmatprep.mubr.f32.mxu0 0.0
        %1459 = vmatmul.mubr.f32.gmra.mrb[0].mxu0 %v296
        %v1460 = vpop.f32.mrb[0].mxu0
        %v1461 = vadd.f32 %v460, %v1460
        %v1462 = vpop.f32.mrb[0].mxu0
        %v1463 = vadd.f32 %v464, %v1462
        %1464 = vmatprep.mubr.f32.mxu0 0.0
        %1465 = vmatmul.mubr.f32.gmra.mrb[0].mxu0 %v297
        %v1466 = vpop.f32.mrb[0].mxu0
        %v1467 = vadd.f32 %v460, %v1466
        %v1468 = vpop.f32.mrb[0].mxu0
        %v1469 = vadd.f32 %v464, %v1468
        %1470 = vmatprep.mubr.f32.mxu0 0.0
        %1471 = vmatmul.mubr.f32.gmra.mrb[0].mxu0 %v298
        %v1472 = vpop.f32.mrb[0].mxu0
        %v1473 = vadd.f32 %v460, %v1472
        %v1474 = vpop.f32.mrb[0].mxu0
        %v1475 = vadd.f32 %v464, %v1474
        %1476 = vmatprep.mubr.f32.mxu0 0.0
        %1477 = vmatmul.mubr.f32.gmra.mrb[0].mxu0 %v299
        %v1478 = vpop.f32.mrb[0].mxu0
        %v1479 = vadd.f32 %v460, %v1478
        %v1480 = vpop.f32.mrb[0].mxu0
        %v1481 = vadd.f32 %v464, %v1480
        %1482 = vmatprep.mubr.f32.mxu0 0.0
        %1483 = vmatmul.mubr.f32.gmra.mrb[0].mxu0 %v300
        %v1484 = vpop.f32.mrb[0].mxu0
        %v1485 = vadd.f32 %v460, %v1484
        %v1486 = vpop.f32.mrb[0].mxu0
        %v1487 = vadd.f32 %v464, %v1486
        %1488 = vmatprep.mubr.f32.mxu0 0.0
        %1489 = vmatmul.mubr.f32.gmra.mrb[0].mxu0 %v301
        %v1490 = vpop.f32.mrb[0].mxu0
        %v1491 = vadd.f32 %v460, %v1490
        %v1492 = vpop.f32.mrb[0].mxu0
        %v1493 = vadd.f32 %v464, %v1492
        %1494 = vmatprep.mubr.f32.mxu0 0.0
        %1495 = vmatmul.mubr.f32.gmra.mrb[0].mxu0 %v302
        %v1496 = vpop.f32.mrb[0].mxu0
        %v1497 = vadd.f32 %v460, %v1496
        %v1498 = vpop.f32.mrb[0].mxu0
        %v1499 = vadd.f32 %v464, %v1498
        %1500 = vdwg.mxu0
        %v1501 = vmax.f32 %v540, 0.0
        %v1502 = vmax.f32 %v542, 0.0
        %v1503 = vmax.f32 %v797, 0.0
        %v1504 = vmax.f32 %v799, 0.0
        %v1505 = vmax.f32 %v1054, 0.0
        %v1506 = vmax.f32 %v1056, 0.0
        %v1507 = vmax.f32 %v1311, 0.0
        %v1508 = vmax.f32 %v1313, 0.0
        %v1509 = vmax.f32 %v546, 0.0
        %v1510 = vmax.f32 %v548, 0.0
        %v1511 = vmax.f32 %v803, 0.0
        %v1512 = vmax.f32 %v805, 0.0
        %v1513 = vmax.f32 %v1060, 0.0
        %v1514 = vmax.f32 %v1062, 0.0
        %v1515 = vmax.f32 %v1317, 0.0
        %v1516 = vmax.f32 %v1319, 0.0
        %v1517 = vmax.f32 %v552, 0.0
        %v1518 = vmax.f32 %v554, 0.0
        %v1519 = vmax.f32 %v809, 0.0
        %v1520 = vmax.f32 %v811, 0.0
        %v1521 = vmax.f32 %v1066, 0.0
        %v1522 = vmax.f32 %v1068, 0.0
        %v1523 = vmax.f32 %v1323, 0.0
        %v1524 = vmax.f32 %v1325, 0.0
        %v1525 = vmax.f32 %v558, 0.0
        %v1526 = vmax.f32 %v560, 0.0
        %v1527 = vmax.f32 %v815, 0.0
        %v1528 = vmax.f32 %v817, 0.0
        %v1529 = vmax.f32 %v1072, 0.0
        %v1530 = vmax.f32 %v1074, 0.0
        %v1531 = vmax.f32 %v1329, 0.0
        %v1532 = vmax.f32 %v1331, 0.0
        %v1533 = vmax.f32 %v564, 0.0
        %v1534 = vmax.f32 %v566, 0.0
        %v1535 = vmax.f32 %v821, 0.0
        %v1536 = vmax.f32 %v823, 0.0
        %v1537 = vmax.f32 %v1078, 0.0
        %v1538 = vmax.f32 %v1080, 0.0
        %v1539 = vmax.f32 %v1335, 0.0
        %v1540 = vmax.f32 %v1337, 0.0
        %v1541 = vmax.f32 %v570, 0.0
        %v1542 = vmax.f32 %v572, 0.0
        %v1543 = vmax.f32 %v827, 0.0
        %v1544 = vmax.f32 %v829, 0.0
        %v1545 = vmax.f32 %v1084, 0.0
        %v1546 = vmax.f32 %v1086, 0.0
        %v1547 = vmax.f32 %v1341, 0.0
        %v1548 = vmax.f32 %v1343, 0.0
        %v1549 = vmax.f32 %v576, 0.0
        %v1550 = vmax.f32 %v578, 0.0
        %v1551 = vmax.f32 %v833, 0.0
        %v1552 = vmax.f32 %v835, 0.0
        %v1553 = vmax.f32 %v1090, 0.0
        %v1554 = vmax.f32 %v1092, 0.0
        %v1555 = vmax.f32 %v1347, 0.0
        %v1556 = vmax.f32 %v1349, 0.0
        %v1557 = vmax.f32 %v582, 0.0
        %v1558 = vmax.f32 %v584, 0.0
        %v1559 = vmax.f32 %v839, 0.0
        %v1560 = vmax.f32 %v841, 0.0
        %v1561 = vmax.f32 %v1096, 0.0
        %v1562 = vmax.f32 %v1098, 0.0
        %v1563 = vmax.f32 %v1353, 0.0
        %v1564 = vmax.f32 %v1355, 0.0
        %v1565 = vmax.f32 %v588, 0.0
        %v1566 = vmax.f32 %v590, 0.0
        %v1567 = vmax.f32 %v845, 0.0
        %v1568 = vmax.f32 %v847, 0.0
        %v1569 = vmax.f32 %v1102, 0.0
        %v1570 = vmax.f32 %v1104, 0.0
        %v1571 = vmax.f32 %v1359, 0.0
        %v1572 = vmax.f32 %v1361, 0.0
        %v1573 = vmax.f32 %v594, 0.0
        %v1574 = vmax.f32 %v596, 0.0
        %v1575 = vmax.f32 %v851, 0.0
        %v1576 = vmax.f32 %v853, 0.0
        %v1577 = vmax.f32 %v1108, 0.0
        %v1578 = vmax.f32 %v1110, 0.0
        %v1579 = vmax.f32 %v1365, 0.0
        %v1580 = vmax.f32 %v1367, 0.0
        %v1581 = vmax.f32 %v600, 0.0
        %v1582 = vmax.f32 %v602, 0.0
        %v1583 = vmax.f32 %v857, 0.0
        %v1584 = vmax.f32 %v859, 0.0
        %v1585 = vmax.f32 %v1114, 0.0
        %v1586 = vmax.f32 %v1116, 0.0
        %v1587 = vmax.f32 %v1371, 0.0
        %v1588 = vmax.f32 %v1373, 0.0
        %v1589 = vmax.f32 %v606, 0.0
        %v1590 = vmax.f32 %v608, 0.0
        %v1591 = vmax.f32 %v863, 0.0
        %v1592 = vmax.f32 %v865, 0.0
        %v1593 = vmax.f32 %v1120, 0.0
        %v1594 = vmax.f32 %v1122, 0.0
        %v1595 = vmax.f32 %v1377, 0.0
        %v1596 = vmax.f32 %v1379, 0.0
        %v1597 = vmax.f32 %v612, 0.0
        %v1598 = vmax.f32 %v614, 0.0
        %v1599 = vmax.f32 %v869, 0.0
        %v1600 = vmax.f32 %v871, 0.0
        %v1601 = vmax.f32 %v1126, 0.0
        %v1602 = vmax.f32 %v1128, 0.0
        %v1603 = vmax.f32 %v1383, 0.0
        %v1604 = vmax.f32 %v1385, 0.0
        %v1605 = vmax.f32 %v618, 0.0
        %v1606 = vmax.f32 %v620, 0.0
        %v1607 = vmax.f32 %v875, 0.0
        %v1608 = vmax.f32 %v877, 0.0
        %v1609 = vmax.f32 %v1132, 0.0
        %v1610 = vmax.f32 %v1134, 0.0
        %v1611 = vmax.f32 %v1389, 0.0
        %v1612 = vmax.f32 %v1391, 0.0
        %v1613 = vmax.f32 %v624, 0.0
        %v1614 = vmax.f32 %v626, 0.0
        %v1615 = vmax.f32 %v881, 0.0
        %v1616 = vmax.f32 %v883, 0.0
        %v1617 = vmax.f32 %v1138, 0.0
        %v1618 = vmax.f32 %v1140, 0.0
        %v1619 = vmax.f32 %v1395, 0.0
        %v1620 = vmax.f32 %v1397, 0.0
        %v1621 = vmax.f32 %v630, 0.0
        %v1622 = vmax.f32 %v632, 0.0
        %v1623 = vmax.f32 %v887, 0.0
        %v1624 = vmax.f32 %v889, 0.0
        %v1625 = vmax.f32 %v1144, 0.0
        %v1626 = vmax.f32 %v1146, 0.0
        %v1627 = vmax.f32 %v1401, 0.0
        %v1628 = vmax.f32 %v1403, 0.0
        %v1629 = vmax.f32 %v636, 0.0
        %v1630 = vmax.f32 %v638, 0.0
        %v1631 = vmax.f32 %v893, 0.0
        %v1632 = vmax.f32 %v895, 0.0
        %v1633 = vmax.f32 %v1150, 0.0
        %v1634 = vmax.f32 %v1152, 0.0
        %v1635 = vmax.f32 %v1407, 0.0
        %v1636 = vmax.f32 %v1409, 0.0
        %v1637 = vmax.f32 %v642, 0.0
        %v1638 = vmax.f32 %v644, 0.0
        %v1639 = vmax.f32 %v899, 0.0
        %v1640 = vmax.f32 %v901, 0.0
        %v1641 = vmax.f32 %v1156, 0.0
        %v1642 = vmax.f32 %v1158, 0.0
        %v1643 = vmax.f32 %v1413, 0.0
        %v1644 = vmax.f32 %v1415, 0.0
        %v1645 = vmax.f32 %v648, 0.0
        %v1646 = vmax.f32 %v650, 0.0
        %v1647 = vmax.f32 %v905, 0.0
        %v1648 = vmax.f32 %v907, 0.0
        %v1649 = vmax.f32 %v1162, 0.0
        %v1650 = vmax.f32 %v1164, 0.0
        %v1651 = vmax.f32 %v1419, 0.0
        %v1652 = vmax.f32 %v1421, 0.0
        %v1653 = vmax.f32 %v654, 0.0
        %v1654 = vmax.f32 %v656, 0.0
        %v1655 = vmax.f32 %v911, 0.0
        %v1656 = vmax.f32 %v913, 0.0
        %v1657 = vmax.f32 %v1168, 0.0
        %v1658 = vmax.f32 %v1170, 0.0
        %v1659 = vmax.f32 %v1425, 0.0
        %v1660 = vmax.f32 %v1427, 0.0
        %v1661 = vmax.f32 %v660, 0.0
        %v1662 = vmax.f32 %v662, 0.0
        %v1663 = vmax.f32 %v917, 0.0
        %v1664 = vmax.f32 %v919, 0.0
        %v1665 = vmax.f32 %v1174, 0.0
        %v1666 = vmax.f32 %v1176, 0.0
        %v1667 = vmax.f32 %v1431, 0.0
        %v1668 = vmax.f32 %v1433, 0.0
        %v1669 = vmax.f32 %v666, 0.0
        %v1670 = vmax.f32 %v668, 0.0
        %v1671 = vmax.f32 %v923, 0.0
        %v1672 = vmax.f32 %v925, 0.0
        %v1673 = vmax.f32 %v1180, 0.0
        %v1674 = vmax.f32 %v1182, 0.0
        %v1675 = vmax.f32 %v1437, 0.0
        %v1676 = vmax.f32 %v1439, 0.0
        %v1677 = vmax.f32 %v672, 0.0
        %v1678 = vmax.f32 %v674, 0.0
        %v1679 = vmax.f32 %v929, 0.0
        %v1680 = vmax.f32 %v931, 0.0
        %v1681 = vmax.f32 %v1186, 0.0
        %v1682 = vmax.f32 %v1188, 0.0
        %v1683 = vmax.f32 %v1443, 0.0
        %v1684 = vmax.f32 %v1445, 0.0
        %v1685 = vmax.f32 %v678, 0.0
        %v1686 = vmax.f32 %v680, 0.0
        %v1687 = vmax.f32 %v935, 0.0
        %v1688 = vmax.f32 %v937, 0.0
        %v1689 = vmax.f32 %v1192, 0.0
        %v1690 = vmax.f32 %v1194, 0.0
        %v1691 = vmax.f32 %v1449, 0.0
        %v1692 = vmax.f32 %v1451, 0.0
        %v1693 = vmax.f32 %v684, 0.0
        %v1694 = vmax.f32 %v686, 0.0
        %v1695 = vmax.f32 %v941, 0.0
        %v1696 = vmax.f32 %v943, 0.0
        %v1697 = vmax.f32 %v1198, 0.0
        %v1698 = vmax.f32 %v1200, 0.0
        %v1699 = vmax.f32 %v1455, 0.0
        %v1700 = vmax.f32 %v1457, 0.0
        %v1701 = vmax.f32 %v690, 0.0
        %v1702 = vmax.f32 %v692, 0.0
        %v1703 = vmax.f32 %v947, 0.0
        %v1704 = vmax.f32 %v949, 0.0
        %v1705 = vmax.f32 %v1204, 0.0
        %v1706 = vmax.f32 %v1206, 0.0
        %v1707 = vmax.f32 %v1461, 0.0
        %v1708 = vmax.f32 %v1463, 0.0
        %v1709 = vmax.f32 %v696, 0.0
        %v1710 = vmax.f32 %v698, 0.0
        %v1711 = vmax.f32 %v953, 0.0
        %v1712 = vmax.f32 %v955, 0.0
        %v1713 = vmax.f32 %v1210, 0.0
        %v1714 = vmax.f32 %v1212, 0.0
        %v1715 = vmax.f32 %v1467, 0.0
        %v1716 = vmax.f32 %v1469, 0.0
        %v1717 = vmax.f32 %v702, 0.0
        %v1718 = vmax.f32 %v704, 0.0
        %v1719 = vmax.f32 %v959, 0.0
        %v1720 = vmax.f32 %v961, 0.0
        %v1721 = vmax.f32 %v1216, 0.0
        %v1722 = vmax.f32 %v1218, 0.0
        %v1723 = vmax.f32 %v1473, 0.0
        %v1724 = vmax.f32 %v1475, 0.0
        %v1725 = vmax.f32 %v708, 0.0
        %v1726 = vmax.f32 %v710, 0.0
        %v1727 = vmax.f32 %v965, 0.0
        %v1728 = vmax.f32 %v967, 0.0
        %v1729 = vmax.f32 %v1222, 0.0
        %v1730 = vmax.f32 %v1224, 0.0
        %v1731 = vmax.f32 %v1479, 0.0
        %v1732 = vmax.f32 %v1481, 0.0
        %v1733 = vmax.f32 %v714, 0.0
        %v1734 = vmax.f32 %v716, 0.0
        %v1735 = vmax.f32 %v971, 0.0
        %v1736 = vmax.f32 %v973, 0.0
        %v1737 = vmax.f32 %v1228, 0.0
        %v1738 = vmax.f32 %v1230, 0.0
        %v1739 = vmax.f32 %v1485, 0.0
        %v1740 = vmax.f32 %v1487, 0.0
        %v1741 = vmax.f32 %v720, 0.0
        %v1742 = vmax.f32 %v722, 0.0
        %v1743 = vmax.f32 %v977, 0.0
        %v1744 = vmax.f32 %v979, 0.0
        %v1745 = vmax.f32 %v1234, 0.0
        %v1746 = vmax.f32 %v1236, 0.0
        %v1747 = vmax.f32 %v1491, 0.0
        %v1748 = vmax.f32 %v1493, 0.0
        %v1749 = vmax.f32 %v726, 0.0
        %v1750 = vmax.f32 %v728, 0.0
        %v1751 = vmax.f32 %v983, 0.0
        %v1752 = vmax.f32 %v985, 0.0
        %v1753 = vmax.f32 %v1240, 0.0
        %v1754 = vmax.f32 %v1242, 0.0
        %v1755 = vmax.f32 %v1497, 0.0
        %v1756 = vmax.f32 %v1499, 0.0
        %1757 = vst [vmem:[#allocation2] sm:$0xff] %v1501
        %1758 = vst [vmem:[#allocation2 + $0x8] sm:$0xff] %v1502
        %1759 = vst [vmem:[#allocation2 + $0x10] sm:$0xff] %v1503
        %1760 = vst [vmem:[#allocation2 + $0x18] sm:$0xff] %v1504
        %1761 = vst [vmem:[#allocation2 + $0x20] sm:$0xff] %v1505
        %1762 = vst [vmem:[#allocation2 + $0x28] sm:$0xff] %v1506
        %1763 = vst [vmem:[#allocation2 + $0x30] sm:$0xff] %v1507
        %1764 = vst [vmem:[#allocation2 + $0x38] sm:$0xff] %v1508
        %1765 = vst [vmem:[#allocation2 + $0x40] sm:$0xff] %v1509
        %1766 = vst [vmem:[#allocation2 + $0x48] sm:$0xff] %v1510
        %1767 = vst [vmem:[#allocation2 + $0x50] sm:$0xff] %v1511
        %1768 = vst [vmem:[#allocation2 + $0x58] sm:$0xff] %v1512
        %1769 = vst [vmem:[#allocation2 + $0x60] sm:$0xff] %v1513
        %1770 = vst [vmem:[#allocation2 + $0x68] sm:$0xff] %v1514
        %1771 = vst [vmem:[#allocation2 + $0x70] sm:$0xff] %v1515
        %1772 = vst [vmem:[#allocation2 + $0x78] sm:$0xff] %v1516
        %1773 = vst [vmem:[#allocation2 + $0x80] sm:$0xff] %v1517
        %1774 = vst [vmem:[#allocation2 + $0x88] sm:$0xff] %v1518
        %1775 = vst [vmem:[#allocation2 + $0x90] sm:$0xff] %v1519
        %1776 = vst [vmem:[#allocation2 + $0x98] sm:$0xff] %v1520
        %1777 = vst [vmem:[#allocation2 + $0xa0] sm:$0xff] %v1521
        %1778 = vst [vmem:[#allocation2 + $0xa8] sm:$0xff] %v1522
        %1779 = vst [vmem:[#allocation2 + $0xb0] sm:$0xff] %v1523
        %1780 = vst [vmem:[#allocation2 + $0xb8] sm:$0xff] %v1524
        %1781 = vst [vmem:[#allocation2 + $0xc0] sm:$0xff] %v1525
        %1782 = vst [vmem:[#allocation2 + $0xc8] sm:$0xff] %v1526
        %1783 = vst [vmem:[#allocation2 + $0xd0] sm:$0xff] %v1527
        %1784 = vst [vmem:[#allocation2 + $0xd8] sm:$0xff] %v1528
        %1785 = vst [vmem:[#allocation2 + $0xe0] sm:$0xff] %v1529
        %1786 = vst [vmem:[#allocation2 + $0xe8] sm:$0xff] %v1530
        %1787 = vst [vmem:[#allocation2 + $0xf0] sm:$0xff] %v1531
        %1788 = vst [vmem:[#allocation2 + $0xf8] sm:$0xff] %v1532
        %1789 = vst [vmem:[#allocation2 + $0x100] sm:$0xff] %v1533
        %1790 = vst [vmem:[#allocation2 + $0x108] sm:$0xff] %v1534
        %1791 = vst [vmem:[#allocation2 + $0x110] sm:$0xff] %v1535
        %1792 = vst [vmem:[#allocation2 + $0x118] sm:$0xff] %v1536
        %1793 = vst [vmem:[#allocation2 + $0x120] sm:$0xff] %v1537
        %1794 = vst [vmem:[#allocation2 + $0x128] sm:$0xff] %v1538
        %1795 = vst [vmem:[#allocation2 + $0x130] sm:$0xff] %v1539
        %1796 = vst [vmem:[#allocation2 + $0x138] sm:$0xff] %v1540
        %1797 = vst [vmem:[#allocation2 + $0x140] sm:$0xff] %v1541
        %1798 = vst [vmem:[#allocation2 + $0x148] sm:$0xff] %v1542
        %1799 = vst [vmem:[#allocation2 + $0x150] sm:$0xff] %v1543
        %1800 = vst [vmem:[#allocation2 + $0x158] sm:$0xff] %v1544
        %1801 = vst [vmem:[#allocation2 + $0x160] sm:$0xff] %v1545
        %1802 = vst [vmem:[#allocation2 + $0x168] sm:$0xff] %v1546
        %1803 = vst [vmem:[#allocation2 + $0x170] sm:$0xff] %v1547
        %1804 = vst [vmem:[#allocation2 + $0x178] sm:$0xff] %v1548
        %1805 = vst [vmem:[#allocation2 + $0x180] sm:$0xff] %v1549
        %1806 = vst [vmem:[#allocation2 + $0x188] sm:$0xff] %v1550
        %1807 = vst [vmem:[#allocation2 + $0x190] sm:$0xff] %v1551
        %1808 = vst [vmem:[#allocation2 + $0x198] sm:$0xff] %v1552
        %1809 = vst [vmem:[#allocation2 + $0x1a0] sm:$0xff] %v1553
        %1810 = vst [vmem:[#allocation2 + $0x1a8] sm:$0xff] %v1554
        %1811 = vst [vmem:[#allocation2 + $0x1b0] sm:$0xff] %v1555
        %1812 = vst [vmem:[#allocation2 + $0x1b8] sm:$0xff] %v1556
        %1813 = vst [vmem:[#allocation2 + $0x1c0] sm:$0xff] %v1557
        %1814 = vst [vmem:[#allocation2 + $0x1c8] sm:$0xff] %v1558
        %1815 = vst [vmem:[#allocation2 + $0x1d0] sm:$0xff] %v1559
        %1816 = vst [vmem:[#allocation2 + $0x1d8] sm:$0xff] %v1560
        %1817 = vst [vmem:[#allocation2 + $0x1e0] sm:$0xff] %v1561
        %1818 = vst [vmem:[#allocation2 + $0x1e8] sm:$0xff] %v1562
        %1819 = vst [vmem:[#allocation2 + $0x1f0] sm:$0xff] %v1563
        %1820 = vst [vmem:[#allocation2 + $0x1f8] sm:$0xff] %v1564
        %1821 = vst [vmem:[#allocation2 + $0x200] sm:$0xff] %v1565
        %1822 = vst [vmem:[#allocation2 + $0x208] sm:$0xff] %v1566
        %1823 = vst [vmem:[#allocation2 + $0x210] sm:$0xff] %v1567
        %1824 = vst [vmem:[#allocation2 + $0x218] sm:$0xff] %v1568
        %1825 = vst [vmem:[#allocation2 + $0x220] sm:$0xff] %v1569
        %1826 = vst [vmem:[#allocation2 + $0x228] sm:$0xff] %v1570
        %1827 = vst [vmem:[#allocation2 + $0x230] sm:$0xff] %v1571
        %1828 = vst [vmem:[#allocation2 + $0x238] sm:$0xff] %v1572
        %1829 = vst [vmem:[#allocation2 + $0x240] sm:$0xff] %v1573
        %1830 = vst [vmem:[#allocation2 + $0x248] sm:$0xff] %v1574
        %1831 = vst [vmem:[#allocation2 + $0x250] sm:$0xff] %v1575
        %1832 = vst [vmem:[#allocation2 + $0x258] sm:$0xff] %v1576
        %1833 = vst [vmem:[#allocation2 + $0x260] sm:$0xff] %v1577
        %1834 = vst [vmem:[#allocation2 + $0x268] sm:$0xff] %v1578
        %1835 = vst [vmem:[#allocation2 + $0x270] sm:$0xff] %v1579
        %1836 = vst [vmem:[#allocation2 + $0x278] sm:$0xff] %v1580
        %1837 = vst [vmem:[#allocation2 + $0x280] sm:$0xff] %v1581
        %1838 = vst [vmem:[#allocation2 + $0x288] sm:$0xff] %v1582
        %1839 = vst [vmem:[#allocation2 + $0x290] sm:$0xff] %v1583
        %1840 = vst [vmem:[#allocation2 + $0x298] sm:$0xff] %v1584
        %1841 = vst [vmem:[#allocation2 + $0x2a0] sm:$0xff] %v1585
        %1842 = vst [vmem:[#allocation2 + $0x2a8] sm:$0xff] %v1586
        %1843 = vst [vmem:[#allocation2 + $0x2b0] sm:$0xff] %v1587
        %1844 = vst [vmem:[#allocation2 + $0x2b8] sm:$0xff] %v1588
        %1845 = vst [vmem:[#allocation2 + $0x2c0] sm:$0xff] %v1589
        %1846 = vst [vmem:[#allocation2 + $0x2c8] sm:$0xff] %v1590
        %1847 = vst [vmem:[#allocation2 + $0x2d0] sm:$0xff] %v1591
        %1848 = vst [vmem:[#allocation2 + $0x2d8] sm:$0xff] %v1592
        %1849 = vst [vmem:[#allocation2 + $0x2e0] sm:$0xff] %v1593
        %1850 = vst [vmem:[#allocation2 + $0x2e8] sm:$0xff] %v1594
        %1851 = vst [vmem:[#allocation2 + $0x2f0] sm:$0xff] %v1595
        %1852 = vst [vmem:[#allocation2 + $0x2f8] sm:$0xff] %v1596
        %1853 = vst [vmem:[#allocation2 + $0x300] sm:$0xff] %v1597
        %1854 = vst [vmem:[#allocation2 + $0x308] sm:$0xff] %v1598
        %1855 = vst [vmem:[#allocation2 + $0x310] sm:$0xff] %v1599
        %1856 = vst [vmem:[#allocation2 + $0x318] sm:$0xff] %v1600
        %1857 = vst [vmem:[#allocation2 + $0x320] sm:$0xff] %v1601
        %1858 = vst [vmem:[#allocation2 + $0x328] sm:$0xff] %v1602
        %1859 = vst [vmem:[#allocation2 + $0x330] sm:$0xff] %v1603
        %1860 = vst [vmem:[#allocation2 + $0x338] sm:$0xff] %v1604
        %1861 = vst [vmem:[#allocation2 + $0x340] sm:$0xff] %v1605
        %1862 = vst [vmem:[#allocation2 + $0x348] sm:$0xff] %v1606
        %1863 = vst [vmem:[#allocation2 + $0x350] sm:$0xff] %v1607
        %1864 = vst [vmem:[#allocation2 + $0x358] sm:$0xff] %v1608
        %1865 = vst [vmem:[#allocation2 + $0x360] sm:$0xff] %v1609
        %1866 = vst [vmem:[#allocation2 + $0x368] sm:$0xff] %v1610
        %1867 = vst [vmem:[#allocation2 + $0x370] sm:$0xff] %v1611
        %1868 = vst [vmem:[#allocation2 + $0x378] sm:$0xff] %v1612
        %1869 = vst [vmem:[#allocation2 + $0x380] sm:$0xff] %v1613
        %1870 = vst [vmem:[#allocation2 + $0x388] sm:$0xff] %v1614
        %1871 = vst [vmem:[#allocation2 + $0x390] sm:$0xff] %v1615
        %1872 = vst [vmem:[#allocation2 + $0x398] sm:$0xff] %v1616
        %1873 = vst [vmem:[#allocation2 + $0x3a0] sm:$0xff] %v1617
        %1874 = vst [vmem:[#allocation2 + $0x3a8] sm:$0xff] %v1618
        %1875 = vst [vmem:[#allocation2 + $0x3b0] sm:$0xff] %v1619
        %1876 = vst [vmem:[#allocation2 + $0x3b8] sm:$0xff] %v1620
        %1877 = vst [vmem:[#allocation2 + $0x3c0] sm:$0xff] %v1621
        %1878 = vst [vmem:[#allocation2 + $0x3c8] sm:$0xff] %v1622
        %1879 = vst [vmem:[#allocation2 + $0x3d0] sm:$0xff] %v1623
        %1880 = vst [vmem:[#allocation2 + $0x3d8] sm:$0xff] %v1624
        %1881 = vst [vmem:[#allocation2 + $0x3e0] sm:$0xff] %v1625
        %1882 = vst [vmem:[#allocation2 + $0x3e8] sm:$0xff] %v1626
        %1883 = vst [vmem:[#allocation2 + $0x3f0] sm:$0xff] %v1627
        %1884 = vst [vmem:[#allocation2 + $0x3f8] sm:$0xff] %v1628
        %1885 = vst [vmem:[#allocation2 + $0x400] sm:$0xff] %v1629
        %1886 = vst [vmem:[#allocation2 + $0x408] sm:$0xff] %v1630
        %1887 = vst [vmem:[#allocation2 + $0x410] sm:$0xff] %v1631
        %1888 = vst [vmem:[#allocation2 + $0x418] sm:$0xff] %v1632
        %1889 = vst [vmem:[#allocation2 + $0x420] sm:$0xff] %v1633
        %1890 = vst [vmem:[#allocation2 + $0x428] sm:$0xff] %v1634
        %1891 = vst [vmem:[#allocation2 + $0x430] sm:$0xff] %v1635
        %1892 = vst [vmem:[#allocation2 + $0x438] sm:$0xff] %v1636
        %1893 = vst [vmem:[#allocation2 + $0x440] sm:$0xff] %v1637
        %1894 = vst [vmem:[#allocation2 + $0x448] sm:$0xff] %v1638
        %1895 = vst [vmem:[#allocation2 + $0x450] sm:$0xff] %v1639
        %1896 = vst [vmem:[#allocation2 + $0x458] sm:$0xff] %v1640
        %1897 = vst [vmem:[#allocation2 + $0x460] sm:$0xff] %v1641
        %1898 = vst [vmem:[#allocation2 + $0x468] sm:$0xff] %v1642
        %1899 = vst [vmem:[#allocation2 + $0x470] sm:$0xff] %v1643
        %1900 = vst [vmem:[#allocation2 + $0x478] sm:$0xff] %v1644
        %1901 = vst [vmem:[#allocation2 + $0x480] sm:$0xff] %v1645
        %1902 = vst [vmem:[#allocation2 + $0x488] sm:$0xff] %v1646
        %1903 = vst [vmem:[#allocation2 + $0x490] sm:$0xff] %v1647
        %1904 = vst [vmem:[#allocation2 + $0x498] sm:$0xff] %v1648
        %1905 = vst [vmem:[#allocation2 + $0x4a0] sm:$0xff] %v1649
        %1906 = vst [vmem:[#allocation2 + $0x4a8] sm:$0xff] %v1650
        %1907 = vst [vmem:[#allocation2 + $0x4b0] sm:$0xff] %v1651
        %1908 = vst [vmem:[#allocation2 + $0x4b8] sm:$0xff] %v1652
        %1909 = vst [vmem:[#allocation2 + $0x4c0] sm:$0xff] %v1653
        %1910 = vst [vmem:[#allocation2 + $0x4c8] sm:$0xff] %v1654
        %1911 = vst [vmem:[#allocation2 + $0x4d0] sm:$0xff] %v1655
        %1912 = vst [vmem:[#allocation2 + $0x4d8] sm:$0xff] %v1656
        %1913 = vst [vmem:[#allocation2 + $0x4e0] sm:$0xff] %v1657
        %1914 = vst [vmem:[#allocation2 + $0x4e8] sm:$0xff] %v1658
        %1915 = vst [vmem:[#allocation2 + $0x4f0] sm:$0xff] %v1659
        %1916 = vst [vmem:[#allocation2 + $0x4f8] sm:$0xff] %v1660
        %1917 = vst [vmem:[#allocation2 + $0x500] sm:$0xff] %v1661
        %1918 = vst [vmem:[#allocation2 + $0x508] sm:$0xff] %v1662
        %1919 = vst [vmem:[#allocation2 + $0x510] sm:$0xff] %v1663
        %1920 = vst [vmem:[#allocation2 + $0x518] sm:$0xff] %v1664
        %1921 = vst [vmem:[#allocation2 + $0x520] sm:$0xff] %v1665
        %1922 = vst [vmem:[#allocation2 + $0x528] sm:$0xff] %v1666
        %1923 = vst [vmem:[#allocation2 + $0x530] sm:$0xff] %v1667
        %1924 = vst [vmem:[#allocation2 + $0x538] sm:$0xff] %v1668
        %1925 = vst [vmem:[#allocation2 + $0x540] sm:$0xff] %v1669
        %1926 = vst [vmem:[#allocation2 + $0x548] sm:$0xff] %v1670
        %1927 = vst [vmem:[#allocation2 + $0x550] sm:$0xff] %v1671
        %1928 = vst [vmem:[#allocation2 + $0x558] sm:$0xff] %v1672
        %1929 = vst [vmem:[#allocation2 + $0x560] sm:$0xff] %v1673
        %1930 = vst [vmem:[#allocation2 + $0x568] sm:$0xff] %v1674
        %1931 = vst [vmem:[#allocation2 + $0x570] sm:$0xff] %v1675
        %1932 = vst [vmem:[#allocation2 + $0x578] sm:$0xff] %v1676
        %1933 = vst [vmem:[#allocation2 + $0x580] sm:$0xff] %v1677
        %1934 = vst [vmem:[#allocation2 + $0x588] sm:$0xff] %v1678
        %1935 = vst [vmem:[#allocation2 + $0x590] sm:$0xff] %v1679
        %1936 = vst [vmem:[#allocation2 + $0x598] sm:$0xff] %v1680
        %1937 = vst [vmem:[#allocation2 + $0x5a0] sm:$0xff] %v1681
        %1938 = vst [vmem:[#allocation2 + $0x5a8] sm:$0xff] %v1682
        %1939 = vst [vmem:[#allocation2 + $0x5b0] sm:$0xff] %v1683
        %1940 = vst [vmem:[#allocation2 + $0x5b8] sm:$0xff] %v1684
        %1941 = vst [vmem:[#allocation2 + $0x5c0] sm:$0xff] %v1685
        %1942 = vst [vmem:[#allocation2 + $0x5c8] sm:$0xff] %v1686
        %1943 = vst [vmem:[#allocation2 + $0x5d0] sm:$0xff] %v1687
        %1944 = vst [vmem:[#allocation2 + $0x5d8] sm:$0xff] %v1688
        %1945 = vst [vmem:[#allocation2 + $0x5e0] sm:$0xff] %v1689
        %1946 = vst [vmem:[#allocation2 + $0x5e8] sm:$0xff] %v1690
        %1947 = vst [vmem:[#allocation2 + $0x5f0] sm:$0xff] %v1691
        %1948 = vst [vmem:[#allocation2 + $0x5f8] sm:$0xff] %v1692
        %1949 = vst [vmem:[#allocation2 + $0x600] sm:$0xff] %v1693
        %1950 = vst [vmem:[#allocation2 + $0x608] sm:$0xff] %v1694
        %1951 = vst [vmem:[#allocation2 + $0x610] sm:$0xff] %v1695
        %1952 = vst [vmem:[#allocation2 + $0x618] sm:$0xff] %v1696
        %1953 = vst [vmem:[#allocation2 + $0x620] sm:$0xff] %v1697
        %1954 = vst [vmem:[#allocation2 + $0x628] sm:$0xff] %v1698
        %1955 = vst [vmem:[#allocation2 + $0x630] sm:$0xff] %v1699
        %1956 = vst [vmem:[#allocation2 + $0x638] sm:$0xff] %v1700
        %1957 = vst [vmem:[#allocation2 + $0x640] sm:$0xff] %v1701
        %1958 = vst [vmem:[#allocation2 + $0x648] sm:$0xff] %v1702
        %1959 = vst [vmem:[#allocation2 + $0x650] sm:$0xff] %v1703
        %1960 = vst [vmem:[#allocation2 + $0x658] sm:$0xff] %v1704
        %1961 = vst [vmem:[#allocation2 + $0x660] sm:$0xff] %v1705
        %1962 = vst [vmem:[#allocation2 + $0x668] sm:$0xff] %v1706
        %1963 = vst [vmem:[#allocation2 + $0x670] sm:$0xff] %v1707
        %1964 = vst [vmem:[#allocation2 + $0x678] sm:$0xff] %v1708
        %1965 = vst [vmem:[#allocation2 + $0x680] sm:$0xff] %v1709
        %1966 = vst [vmem:[#allocation2 + $0x688] sm:$0xff] %v1710
        %1967 = vst [vmem:[#allocation2 + $0x690] sm:$0xff] %v1711
        %1968 = vst [vmem:[#allocation2 + $0x698] sm:$0xff] %v1712
        %1969 = vst [vmem:[#allocation2 + $0x6a0] sm:$0xff] %v1713
        %1970 = vst [vmem:[#allocation2 + $0x6a8] sm:$0xff] %v1714
        %1971 = vst [vmem:[#allocation2 + $0x6b0] sm:$0xff] %v1715
        %1972 = vst [vmem:[#allocation2 + $0x6b8] sm:$0xff] %v1716
        %1973 = vst [vmem:[#allocation2 + $0x6c0] sm:$0xff] %v1717
        %1974 = vst [vmem:[#allocation2 + $0x6c8] sm:$0xff] %v1718
        %1975 = vst [vmem:[#allocation2 + $0x6d0] sm:$0xff] %v1719
        %1976 = vst [vmem:[#allocation2 + $0x6d8] sm:$0xff] %v1720
        %1977 = vst [vmem:[#allocation2 + $0x6e0] sm:$0xff] %v1721
        %1978 = vst [vmem:[#allocation2 + $0x6e8] sm:$0xff] %v1722
        %1979 = vst [vmem:[#allocation2 + $0x6f0] sm:$0xff] %v1723
        %1980 = vst [vmem:[#allocation2 + $0x6f8] sm:$0xff] %v1724
        %1981 = vst [vmem:[#allocation2 + $0x700] sm:$0xff] %v1725
        %1982 = vst [vmem:[#allocation2 + $0x708] sm:$0xff] %v1726
        %1983 = vst [vmem:[#allocation2 + $0x710] sm:$0xff] %v1727
        %1984 = vst [vmem:[#allocation2 + $0x718] sm:$0xff] %v1728
        %1985 = vst [vmem:[#allocation2 + $0x720] sm:$0xff] %v1729
        %1986 = vst [vmem:[#allocation2 + $0x728] sm:$0xff] %v1730
        %1987 = vst [vmem:[#allocation2 + $0x730] sm:$0xff] %v1731
        %1988 = vst [vmem:[#allocation2 + $0x738] sm:$0xff] %v1732
        %1989 = vst [vmem:[#allocation2 + $0x740] sm:$0xff] %v1733
        %1990 = vst [vmem:[#allocation2 + $0x748] sm:$0xff] %v1734
        %1991 = vst [vmem:[#allocation2 + $0x750] sm:$0xff] %v1735
        %1992 = vst [vmem:[#allocation2 + $0x758] sm:$0xff] %v1736
        %1993 = vst [vmem:[#allocation2 + $0x760] sm:$0xff] %v1737
        %1994 = vst [vmem:[#allocation2 + $0x768] sm:$0xff] %v1738
        %1995 = vst [vmem:[#allocation2 + $0x770] sm:$0xff] %v1739
        %1996 = vst [vmem:[#allocation2 + $0x778] sm:$0xff] %v1740
        %1997 = vst [vmem:[#allocation2 + $0x780] sm:$0xff] %v1741
        %1998 = vst [vmem:[#allocation2 + $0x788] sm:$0xff] %v1742
        %1999 = vst [vmem:[#allocation2 + $0x790] sm:$0xff] %v1743
        %2000 = vst [vmem:[#allocation2 + $0x798] sm:$0xff] %v1744
        %2001 = vst [vmem:[#allocation2 + $0x7a0] sm:$0xff] %v1745
        %2002 = vst [vmem:[#allocation2 + $0x7a8] sm:$0xff] %v1746
        %2003 = vst [vmem:[#allocation2 + $0x7b0] sm:$0xff] %v1747
        %2004 = vst [vmem:[#allocation2 + $0x7b8] sm:$0xff] %v1748
        %2005 = vst [vmem:[#allocation2 + $0x7c0] sm:$0xff] %v1749
        %2006 = vst [vmem:[#allocation2 + $0x7c8] sm:$0xff] %v1750
        %2007 = vst [vmem:[#allocation2 + $0x7d0] sm:$0xff] %v1751
        %2008 = vst [vmem:[#allocation2 + $0x7d8] sm:$0xff] %v1752
        %2009 = vst [vmem:[#allocation2 + $0x7e0] sm:$0xff] %v1753
        %2010 = vst [vmem:[#allocation2 + $0x7e8] sm:$0xff] %v1754
        %2011 = vst [vmem:[#allocation2 + $0x7f0] sm:$0xff] %v1755
        %2012 = vst [vmem:[#allocation2 + $0x7f8] sm:$0xff] %v1756
        %v2013 = vld [vmem:[#allocation2] sm:$0xff]
        %v2014 = vld [vmem:[#allocation2 + $0x8] sm:$0xff]
        %v2015 = vld [vmem:[#allocation2 + $0x10] sm:$0xff]
        %v2016 = vld [vmem:[#allocation2 + $0x18] sm:$0xff]
        %v2017 = vld [vmem:[#allocation2 + $0x20] sm:$0xff]
        %v2018 = vld [vmem:[#allocation2 + $0x28] sm:$0xff]
        %v2019 = vld [vmem:[#allocation2 + $0x30] sm:$0xff]
        %v2020 = vld [vmem:[#allocation2 + $0x38] sm:$0xff]
        %v2021 = vld [vmem:[#allocation2 + $0x40] sm:$0xff]
        %v2022 = vld [vmem:[#allocation2 + $0x48] sm:$0xff]
        %v2023 = vld [vmem:[#allocation2 + $0x50] sm:$0xff]
        %v2024 = vld [vmem:[#allocation2 + $0x58] sm:$0xff]
        %v2025 = vld [vmem:[#allocation2 + $0x60] sm:$0xff]
        %v2026 = vld [vmem:[#allocation2 + $0x68] sm:$0xff]
        %v2027 = vld [vmem:[#allocation2 + $0x70] sm:$0xff]
        %v2028 = vld [vmem:[#allocation2 + $0x78] sm:$0xff]
        %v2029 = vld [vmem:[#allocation2 + $0x80] sm:$0xff]
        %v2030 = vld [vmem:[#allocation2 + $0x88] sm:$0xff]
        %v2031 = vld [vmem:[#allocation2 + $0x90] sm:$0xff]
        %v2032 = vld [vmem:[#allocation2 + $0x98] sm:$0xff]
        %v2033 = vld [vmem:[#allocation2 + $0xa0] sm:$0xff]
        %v2034 = vld [vmem:[#allocation2 + $0xa8] sm:$0xff]
        %v2035 = vld [vmem:[#allocation2 + $0xb0] sm:$0xff]
        %v2036 = vld [vmem:[#allocation2 + $0xb8] sm:$0xff]
        %v2037 = vld [vmem:[#allocation2 + $0xc0] sm:$0xff]
        %v2038 = vld [vmem:[#allocation2 + $0xc8] sm:$0xff]
        %v2039 = vld [vmem:[#allocation2 + $0xd0] sm:$0xff]
        %v2040 = vld [vmem:[#allocation2 + $0xd8] sm:$0xff]
        %v2041 = vld [vmem:[#allocation2 + $0xe0] sm:$0xff]
        %v2042 = vld [vmem:[#allocation2 + $0xe8] sm:$0xff]
        %v2043 = vld [vmem:[#allocation2 + $0xf0] sm:$0xff]
        %v2044 = vld [vmem:[#allocation2 + $0xf8] sm:$0xff]
        %v2045 = vld [vmem:[#allocation2 + $0x100] sm:$0xff]
        %v2046 = vld [vmem:[#allocation2 + $0x108] sm:$0xff]
        %v2047 = vld [vmem:[#allocation2 + $0x110] sm:$0xff]
        %v2048 = vld [vmem:[#allocation2 + $0x118] sm:$0xff]
        %v2049 = vld [vmem:[#allocation2 + $0x120] sm:$0xff]
        %v2050 = vld [vmem:[#allocation2 + $0x128] sm:$0xff]
        %v2051 = vld [vmem:[#allocation2 + $0x130] sm:$0xff]
        %v2052 = vld [vmem:[#allocation2 + $0x138] sm:$0xff]
        %v2053 = vld [vmem:[#allocation2 + $0x140] sm:$0xff]
        %v2054 = vld [vmem:[#allocation2 + $0x148] sm:$0xff]
        %v2055 = vld [vmem:[#allocation2 + $0x150] sm:$0xff]
        %v2056 = vld [vmem:[#allocation2 + $0x158] sm:$0xff]
        %v2057 = vld [vmem:[#allocation2 + $0x160] sm:$0xff]
        %v2058 = vld [vmem:[#allocation2 + $0x168] sm:$0xff]
        %v2059 = vld [vmem:[#allocation2 + $0x170] sm:$0xff]
        %v2060 = vld [vmem:[#allocation2 + $0x178] sm:$0xff]
        %v2061 = vld [vmem:[#allocation2 + $0x180] sm:$0xff]
        %v2062 = vld [vmem:[#allocation2 + $0x188] sm:$0xff]
        %v2063 = vld [vmem:[#allocation2 + $0x190] sm:$0xff]
        %v2064 = vld [vmem:[#allocation2 + $0x198] sm:$0xff]
        %v2065 = vld [vmem:[#allocation2 + $0x1a0] sm:$0xff]
        %v2066 = vld [vmem:[#allocation2 + $0x1a8] sm:$0xff]
        %v2067 = vld [vmem:[#allocation2 + $0x1b0] sm:$0xff]
        %v2068 = vld [vmem:[#allocation2 + $0x1b8] sm:$0xff]
        %v2069 = vld [vmem:[#allocation2 + $0x1c0] sm:$0xff]
        %v2070 = vld [vmem:[#allocation2 + $0x1c8] sm:$0xff]
        %v2071 = vld [vmem:[#allocation2 + $0x1d0] sm:$0xff]
        %v2072 = vld [vmem:[#allocation2 + $0x1d8] sm:$0xff]
        %v2073 = vld [vmem:[#allocation2 + $0x1e0] sm:$0xff]
        %v2074 = vld [vmem:[#allocation2 + $0x1e8] sm:$0xff]
        %v2075 = vld [vmem:[#allocation2 + $0x1f0] sm:$0xff]
        %v2076 = vld [vmem:[#allocation2 + $0x1f8] sm:$0xff]
        %v2077 = vld [vmem:[#allocation2 + $0x200] sm:$0xff]
        %v2078 = vld [vmem:[#allocation2 + $0x208] sm:$0xff]
        %v2079 = vld [vmem:[#allocation2 + $0x210] sm:$0xff]
        %v2080 = vld [vmem:[#allocation2 + $0x218] sm:$0xff]
        %v2081 = vld [vmem:[#allocation2 + $0x220] sm:$0xff]
        %v2082 = vld [vmem:[#allocation2 + $0x228] sm:$0xff]
        %v2083 = vld [vmem:[#allocation2 + $0x230] sm:$0xff]
        %v2084 = vld [vmem:[#allocation2 + $0x238] sm:$0xff]
        %v2085 = vld [vmem:[#allocation2 + $0x240] sm:$0xff]
        %v2086 = vld [vmem:[#allocation2 + $0x248] sm:$0xff]
        %v2087 = vld [vmem:[#allocation2 + $0x250] sm:$0xff]
        %v2088 = vld [vmem:[#allocation2 + $0x258] sm:$0xff]
        %v2089 = vld [vmem:[#allocation2 + $0x260] sm:$0xff]
        %v2090 = vld [vmem:[#allocation2 + $0x268] sm:$0xff]
        %v2091 = vld [vmem:[#allocation2 + $0x270] sm:$0xff]
        %v2092 = vld [vmem:[#allocation2 + $0x278] sm:$0xff]
        %v2093 = vld [vmem:[#allocation2 + $0x280] sm:$0xff]
        %v2094 = vld [vmem:[#allocation2 + $0x288] sm:$0xff]
        %v2095 = vld [vmem:[#allocation2 + $0x290] sm:$0xff]
        %v2096 = vld [vmem:[#allocation2 + $0x298] sm:$0xff]
        %v2097 = vld [vmem:[#allocation2 + $0x2a0] sm:$0xff]
        %v2098 = vld [vmem:[#allocation2 + $0x2a8] sm:$0xff]
        %v2099 = vld [vmem:[#allocation2 + $0x2b0] sm:$0xff]
        %v2100 = vld [vmem:[#allocation2 + $0x2b8] sm:$0xff]
        %v2101 = vld [vmem:[#allocation2 + $0x2c0] sm:$0xff]
        %v2102 = vld [vmem:[#allocation2 + $0x2c8] sm:$0xff]
        %v2103 = vld [vmem:[#allocation2 + $0x2d0] sm:$0xff]
        %v2104 = vld [vmem:[#allocation2 + $0x2d8] sm:$0xff]
        %v2105 = vld [vmem:[#allocation2 + $0x2e0] sm:$0xff]
        %v2106 = vld [vmem:[#allocation2 + $0x2e8] sm:$0xff]
        %v2107 = vld [vmem:[#allocation2 + $0x2f0] sm:$0xff]
        %v2108 = vld [vmem:[#allocation2 + $0x2f8] sm:$0xff]
        %v2109 = vld [vmem:[#allocation2 + $0x300] sm:$0xff]
        %v2110 = vld [vmem:[#allocation2 + $0x308] sm:$0xff]
        %v2111 = vld [vmem:[#allocation2 + $0x310] sm:$0xff]
        %v2112 = vld [vmem:[#allocation2 + $0x318] sm:$0xff]
        %v2113 = vld [vmem:[#allocation2 + $0x320] sm:$0xff]
        %v2114 = vld [vmem:[#allocation2 + $0x328] sm:$0xff]
        %v2115 = vld [vmem:[#allocation2 + $0x330] sm:$0xff]
        %v2116 = vld [vmem:[#allocation2 + $0x338] sm:$0xff]
        %v2117 = vld [vmem:[#allocation2 + $0x340] sm:$0xff]
        %v2118 = vld [vmem:[#allocation2 + $0x348] sm:$0xff]
        %v2119 = vld [vmem:[#allocation2 + $0x350] sm:$0xff]
        %v2120 = vld [vmem:[#allocation2 + $0x358] sm:$0xff]
        %v2121 = vld [vmem:[#allocation2 + $0x360] sm:$0xff]
        %v2122 = vld [vmem:[#allocation2 + $0x368] sm:$0xff]
        %v2123 = vld [vmem:[#allocation2 + $0x370] sm:$0xff]
        %v2124 = vld [vmem:[#allocation2 + $0x378] sm:$0xff]
        %v2125 = vld [vmem:[#allocation2 + $0x380] sm:$0xff]
        %v2126 = vld [vmem:[#allocation2 + $0x388] sm:$0xff]
        %v2127 = vld [vmem:[#allocation2 + $0x390] sm:$0xff]
        %v2128 = vld [vmem:[#allocation2 + $0x398] sm:$0xff]
        %v2129 = vld [vmem:[#allocation2 + $0x3a0] sm:$0xff]
        %v2130 = vld [vmem:[#allocation2 + $0x3a8] sm:$0xff]
        %v2131 = vld [vmem:[#allocation2 + $0x3b0] sm:$0xff]
        %v2132 = vld [vmem:[#allocation2 + $0x3b8] sm:$0xff]
        %v2133 = vld [vmem:[#allocation2 + $0x3c0] sm:$0xff]
        %v2134 = vld [vmem:[#allocation2 + $0x3c8] sm:$0xff]
        %v2135 = vld [vmem:[#allocation2 + $0x3d0] sm:$0xff]
        %v2136 = vld [vmem:[#allocation2 + $0x3d8] sm:$0xff]
        %v2137 = vld [vmem:[#allocation2 + $0x3e0] sm:$0xff]
        %v2138 = vld [vmem:[#allocation2 + $0x3e8] sm:$0xff]
        %v2139 = vld [vmem:[#allocation2 + $0x3f0] sm:$0xff]
        %v2140 = vld [vmem:[#allocation2 + $0x3f8] sm:$0xff]
        %v2141 = vld [vmem:[#allocation2 + $0x400] sm:$0xff]
        %v2142 = vld [vmem:[#allocation2 + $0x408] sm:$0xff]
        %v2143 = vld [vmem:[#allocation2 + $0x410] sm:$0xff]
        %v2144 = vld [vmem:[#allocation2 + $0x418] sm:$0xff]
        %v2145 = vld [vmem:[#allocation2 + $0x420] sm:$0xff]
        %v2146 = vld [vmem:[#allocation2 + $0x428] sm:$0xff]
        %v2147 = vld [vmem:[#allocation2 + $0x430] sm:$0xff]
        %v2148 = vld [vmem:[#allocation2 + $0x438] sm:$0xff]
        %v2149 = vld [vmem:[#allocation2 + $0x440] sm:$0xff]
        %v2150 = vld [vmem:[#allocation2 + $0x448] sm:$0xff]
        %v2151 = vld [vmem:[#allocation2 + $0x450] sm:$0xff]
        %v2152 = vld [vmem:[#allocation2 + $0x458] sm:$0xff]
        %v2153 = vld [vmem:[#allocation2 + $0x460] sm:$0xff]
        %v2154 = vld [vmem:[#allocation2 + $0x468] sm:$0xff]
        %v2155 = vld [vmem:[#allocation2 + $0x470] sm:$0xff]
        %v2156 = vld [vmem:[#allocation2 + $0x478] sm:$0xff]
        %v2157 = vld [vmem:[#allocation2 + $0x480] sm:$0xff]
        %v2158 = vld [vmem:[#allocation2 + $0x488] sm:$0xff]
        %v2159 = vld [vmem:[#allocation2 + $0x490] sm:$0xff]
        %v2160 = vld [vmem:[#allocation2 + $0x498] sm:$0xff]
        %v2161 = vld [vmem:[#allocation2 + $0x4a0] sm:$0xff]
        %v2162 = vld [vmem:[#allocation2 + $0x4a8] sm:$0xff]
        %v2163 = vld [vmem:[#allocation2 + $0x4b0] sm:$0xff]
        %v2164 = vld [vmem:[#allocation2 + $0x4b8] sm:$0xff]
        %v2165 = vld [vmem:[#allocation2 + $0x4c0] sm:$0xff]
        %v2166 = vld [vmem:[#allocation2 + $0x4c8] sm:$0xff]
        %v2167 = vld [vmem:[#allocation2 + $0x4d0] sm:$0xff]
        %v2168 = vld [vmem:[#allocation2 + $0x4d8] sm:$0xff]
        %v2169 = vld [vmem:[#allocation2 + $0x4e0] sm:$0xff]
        %v2170 = vld [vmem:[#allocation2 + $0x4e8] sm:$0xff]
        %v2171 = vld [vmem:[#allocation2 + $0x4f0] sm:$0xff]
        %v2172 = vld [vmem:[#allocation2 + $0x4f8] sm:$0xff]
        %v2173 = vld [vmem:[#allocation2 + $0x500] sm:$0xff]
        %v2174 = vld [vmem:[#allocation2 + $0x508] sm:$0xff]
        %v2175 = vld [vmem:[#allocation2 + $0x510] sm:$0xff]
        %v2176 = vld [vmem:[#allocation2 + $0x518] sm:$0xff]
        %v2177 = vld [vmem:[#allocation2 + $0x520] sm:$0xff]
        %v2178 = vld [vmem:[#allocation2 + $0x528] sm:$0xff]
        %v2179 = vld [vmem:[#allocation2 + $0x530] sm:$0xff]
        %v2180 = vld [vmem:[#allocation2 + $0x538] sm:$0xff]
        %v2181 = vld [vmem:[#allocation2 + $0x540] sm:$0xff]
        %v2182 = vld [vmem:[#allocation2 + $0x548] sm:$0xff]
        %v2183 = vld [vmem:[#allocation2 + $0x550] sm:$0xff]
        %v2184 = vld [vmem:[#allocation2 + $0x558] sm:$0xff]
        %v2185 = vld [vmem:[#allocation2 + $0x560] sm:$0xff]
        %v2186 = vld [vmem:[#allocation2 + $0x568] sm:$0xff]
        %v2187 = vld [vmem:[#allocation2 + $0x570] sm:$0xff]
        %v2188 = vld [vmem:[#allocation2 + $0x578] sm:$0xff]
        %v2189 = vld [vmem:[#allocation2 + $0x580] sm:$0xff]
        %v2190 = vld [vmem:[#allocation2 + $0x588] sm:$0xff]
        %v2191 = vld [vmem:[#allocation2 + $0x590] sm:$0xff]
        %v2192 = vld [vmem:[#allocation2 + $0x598] sm:$0xff]
        %v2193 = vld [vmem:[#allocation2 + $0x5a0] sm:$0xff]
        %v2194 = vld [vmem:[#allocation2 + $0x5a8] sm:$0xff]
        %v2195 = vld [vmem:[#allocation2 + $0x5b0] sm:$0xff]
        %v2196 = vld [vmem:[#allocation2 + $0x5b8] sm:$0xff]
        %v2197 = vld [vmem:[#allocation2 + $0x5c0] sm:$0xff]
        %v2198 = vld [vmem:[#allocation2 + $0x5c8] sm:$0xff]
        %v2199 = vld [vmem:[#allocation2 + $0x5d0] sm:$0xff]
        %v2200 = vld [vmem:[#allocation2 + $0x5d8] sm:$0xff]
        %v2201 = vld [vmem:[#allocation2 + $0x5e0] sm:$0xff]
        %v2202 = vld [vmem:[#allocation2 + $0x5e8] sm:$0xff]
        %v2203 = vld [vmem:[#allocation2 + $0x5f0] sm:$0xff]
        %v2204 = vld [vmem:[#allocation2 + $0x5f8] sm:$0xff]
        %v2205 = vld [vmem:[#allocation2 + $0x600] sm:$0xff]
        %v2206 = vld [vmem:[#allocation2 + $0x608] sm:$0xff]
        %v2207 = vld [vmem:[#allocation2 + $0x610] sm:$0xff]
        %v2208 = vld [vmem:[#allocation2 + $0x618] sm:$0xff]
        %v2209 = vld [vmem:[#allocation2 + $0x620] sm:$0xff]
        %v2210 = vld [vmem:[#allocation2 + $0x628] sm:$0xff]
        %v2211 = vld [vmem:[#allocation2 + $0x630] sm:$0xff]
        %v2212 = vld [vmem:[#allocation2 + $0x638] sm:$0xff]
        %v2213 = vld [vmem:[#allocation2 + $0x640] sm:$0xff]
        %v2214 = vld [vmem:[#allocation2 + $0x648] sm:$0xff]
        %v2215 = vld [vmem:[#allocation2 + $0x650] sm:$0xff]
        %v2216 = vld [vmem:[#allocation2 + $0x658] sm:$0xff]
        %v2217 = vld [vmem:[#allocation2 + $0x660] sm:$0xff]
        %v2218 = vld [vmem:[#allocation2 + $0x668] sm:$0xff]
        %v2219 = vld [vmem:[#allocation2 + $0x670] sm:$0xff]
        %v2220 = vld [vmem:[#allocation2 + $0x678] sm:$0xff]
        %v2221 = vld [vmem:[#allocation2 + $0x680] sm:$0xff]
        %v2222 = vld [vmem:[#allocation2 + $0x688] sm:$0xff]
        %v2223 = vld [vmem:[#allocation2 + $0x690] sm:$0xff]
        %v2224 = vld [vmem:[#allocation2 + $0x698] sm:$0xff]
        %v2225 = vld [vmem:[#allocation2 + $0x6a0] sm:$0xff]
        %v2226 = vld [vmem:[#allocation2 + $0x6a8] sm:$0xff]
        %v2227 = vld [vmem:[#allocation2 + $0x6b0] sm:$0xff]
        %v2228 = vld [vmem:[#allocation2 + $0x6b8] sm:$0xff]
        %v2229 = vld [vmem:[#allocation2 + $0x6c0] sm:$0xff]
        %v2230 = vld [vmem:[#allocation2 + $0x6c8] sm:$0xff]
        %v2231 = vld [vmem:[#allocation2 + $0x6d0] sm:$0xff]
        %v2232 = vld [vmem:[#allocation2 + $0x6d8] sm:$0xff]
        %v2233 = vld [vmem:[#allocation2 + $0x6e0] sm:$0xff]
        %v2234 = vld [vmem:[#allocation2 + $0x6e8] sm:$0xff]
        %v2235 = vld [vmem:[#allocation2 + $0x6f0] sm:$0xff]
        %v2236 = vld [vmem:[#allocation2 + $0x6f8] sm:$0xff]
        %v2237 = vld [vmem:[#allocation2 + $0x700] sm:$0xff]
        %v2238 = vld [vmem:[#allocation2 + $0x708] sm:$0xff]
        %v2239 = vld [vmem:[#allocation2 + $0x710] sm:$0xff]
        %v2240 = vld [vmem:[#allocation2 + $0x718] sm:$0xff]
        %v2241 = vld [vmem:[#allocation2 + $0x720] sm:$0xff]
        %v2242 = vld [vmem:[#allocation2 + $0x728] sm:$0xff]
        %v2243 = vld [vmem:[#allocation2 + $0x730] sm:$0xff]
        %v2244 = vld [vmem:[#allocation2 + $0x738] sm:$0xff]
        %v2245 = vld [vmem:[#allocation2 + $0x740] sm:$0xff]
        %v2246 = vld [vmem:[#allocation2 + $0x748] sm:$0xff]
        %v2247 = vld [vmem:[#allocation2 + $0x750] sm:$0xff]
        %v2248 = vld [vmem:[#allocation2 + $0x758] sm:$0xff]
        %v2249 = vld [vmem:[#allocation2 + $0x760] sm:$0xff]
        %v2250 = vld [vmem:[#allocation2 + $0x768] sm:$0xff]
        %v2251 = vld [vmem:[#allocation2 + $0x770] sm:$0xff]
        %v2252 = vld [vmem:[#allocation2 + $0x778] sm:$0xff]
        %v2253 = vld [vmem:[#allocation2 + $0x780] sm:$0xff]
        %v2254 = vld [vmem:[#allocation2 + $0x788] sm:$0xff]
        %v2255 = vld [vmem:[#allocation2 + $0x790] sm:$0xff]
        %v2256 = vld [vmem:[#allocation2 + $0x798] sm:$0xff]
        %v2257 = vld [vmem:[#allocation2 + $0x7a0] sm:$0xff]
        %v2258 = vld [vmem:[#allocation2 + $0x7a8] sm:$0xff]
        %v2259 = vld [vmem:[#allocation2 + $0x7b0] sm:$0xff]
        %v2260 = vld [vmem:[#allocation2 + $0x7b8] sm:$0xff]
        %v2261 = vld [vmem:[#allocation2 + $0x7c0] sm:$0xff]
        %v2262 = vld [vmem:[#allocation2 + $0x7c8] sm:$0xff]
        %v2263 = vld [vmem:[#allocation2 + $0x7d0] sm:$0xff]
        %v2264 = vld [vmem:[#allocation2 + $0x7d8] sm:$0xff]
        %v2265 = vld [vmem:[#allocation2 + $0x7e0] sm:$0xff]
        %v2266 = vld [vmem:[#allocation2 + $0x7e8] sm:$0xff]
        %v2267 = vld [vmem:[#allocation2 + $0x7f0] sm:$0xff]
        %v2268 = vld [vmem:[#allocation2 + $0x7f8] sm:$0xff]
        %v2269 = vld [vmem:[%s3] sm:$0xff]
        %v2270 = vld [vmem:[%s3 + $0x8] sm:$0xff]
        %v2271 = vld [vmem:[%s3 + $0x10] sm:$0xff]
        %v2272 = vld [vmem:[%s3 + $0x18] sm:$0xff]
        %v2273 = vld [vmem:[%s3 + $0x20] sm:$0xff]
        %v2274 = vld [vmem:[%s3 + $0x28] sm:$0xff]
        %v2275 = vld [vmem:[%s3 + $0x30] sm:$0xff]
        %v2276 = vld [vmem:[%s3 + $0x38] sm:$0xff]
        %v2277 = vld [vmem:[%s3 + $0x40] sm:$0xff]
        %v2278 = vld [vmem:[%s3 + $0x48] sm:$0xff]
        %v2279 = vld [vmem:[%s3 + $0x50] sm:$0xff]
        %v2280 = vld [vmem:[%s3 + $0x58] sm:$0xff]
        %v2281 = vld [vmem:[%s3 + $0x60] sm:$0xff]
        %v2282 = vld [vmem:[%s3 + $0x68] sm:$0xff]
        %v2283 = vld [vmem:[%s3 + $0x70] sm:$0xff]
        %v2284 = vld [vmem:[%s3 + $0x78] sm:$0xff]
        %v2285 = vld [vmem:[%s3 + $0x80] sm:$0xff]
        %v2286 = vld [vmem:[%s3 + $0x88] sm:$0xff]
        %v2287 = vld [vmem:[%s3 + $0x90] sm:$0xff]
        %v2288 = vld [vmem:[%s3 + $0x98] sm:$0xff]
        %v2289 = vld [vmem:[%s3 + $0xa0] sm:$0xff]
        %v2290 = vld [vmem:[%s3 + $0xa8] sm:$0xff]
        %v2291 = vld [vmem:[%s3 + $0xb0] sm:$0xff]
        %v2292 = vld [vmem:[%s3 + $0xb8] sm:$0xff]
        %v2293 = vld [vmem:[%s3 + $0xc0] sm:$0xff]
        %v2294 = vld [vmem:[%s3 + $0xc8] sm:$0xff]
        %v2295 = vld [vmem:[%s3 + $0xd0] sm:$0xff]
        %v2296 = vld [vmem:[%s3 + $0xd8] sm:$0xff]
        %v2297 = vld [vmem:[%s3 + $0xe0] sm:$0xff]
        %v2298 = vld [vmem:[%s3 + $0xe8] sm:$0xff]
        %v2299 = vld [vmem:[%s3 + $0xf0] sm:$0xff]
        %v2300 = vld [vmem:[%s3 + $0xf8] sm:$0xff]
        %v2301 = vld [vmem:[%s3 + $0x100] sm:$0xff]
        %v2302 = vld [vmem:[%s3 + $0x108] sm:$0xff]
        %v2303 = vld [vmem:[%s3 + $0x110] sm:$0xff]
        %v2304 = vld [vmem:[%s3 + $0x118] sm:$0xff]
        %v2305 = vld [vmem:[%s3 + $0x120] sm:$0xff]
        %v2306 = vld [vmem:[%s3 + $0x128] sm:$0xff]
        %v2307 = vld [vmem:[%s3 + $0x130] sm:$0xff]
        %v2308 = vld [vmem:[%s3 + $0x138] sm:$0xff]
        %v2309 = vld [vmem:[%s3 + $0x140] sm:$0xff]
        %v2310 = vld [vmem:[%s3 + $0x148] sm:$0xff]
        %v2311 = vld [vmem:[%s3 + $0x150] sm:$0xff]
        %v2312 = vld [vmem:[%s3 + $0x158] sm:$0xff]
        %v2313 = vld [vmem:[%s3 + $0x160] sm:$0xff]
        %v2314 = vld [vmem:[%s3 + $0x168] sm:$0xff]
        %v2315 = vld [vmem:[%s3 + $0x170] sm:$0xff]
        %v2316 = vld [vmem:[%s3 + $0x178] sm:$0xff]
        %v2317 = vld [vmem:[%s3 + $0x180] sm:$0xff]
        %v2318 = vld [vmem:[%s3 + $0x188] sm:$0xff]
        %v2319 = vld [vmem:[%s3 + $0x190] sm:$0xff]
        %v2320 = vld [vmem:[%s3 + $0x198] sm:$0xff]
        %v2321 = vld [vmem:[%s3 + $0x1a0] sm:$0xff]
        %v2322 = vld [vmem:[%s3 + $0x1a8] sm:$0xff]
        %v2323 = vld [vmem:[%s3 + $0x1b0] sm:$0xff]
        %v2324 = vld [vmem:[%s3 + $0x1b8] sm:$0xff]
        %v2325 = vld [vmem:[%s3 + $0x1c0] sm:$0xff]
        %v2326 = vld [vmem:[%s3 + $0x1c8] sm:$0xff]
        %v2327 = vld [vmem:[%s3 + $0x1d0] sm:$0xff]
        %v2328 = vld [vmem:[%s3 + $0x1d8] sm:$0xff]
        %v2329 = vld [vmem:[%s3 + $0x1e0] sm:$0xff]
        %v2330 = vld [vmem:[%s3 + $0x1e8] sm:$0xff]
        %v2331 = vld [vmem:[%s3 + $0x1f0] sm:$0xff]
        %v2332 = vld [vmem:[%s3 + $0x1f8] sm:$0xff]
        %v2333 = vld [vmem:[%s3 + $0x200] sm:$0xff]
        %v2334 = vld [vmem:[%s3 + $0x208] sm:$0xff]
        %v2335 = vld [vmem:[%s3 + $0x210] sm:$0xff]
        %v2336 = vld [vmem:[%s3 + $0x218] sm:$0xff]
        %v2337 = vld [vmem:[%s3 + $0x220] sm:$0xff]
        %v2338 = vld [vmem:[%s3 + $0x228] sm:$0xff]
        %v2339 = vld [vmem:[%s3 + $0x230] sm:$0xff]
        %v2340 = vld [vmem:[%s3 + $0x238] sm:$0xff]
        %v2341 = vld [vmem:[%s3 + $0x240] sm:$0xff]
        %v2342 = vld [vmem:[%s3 + $0x248] sm:$0xff]
        %v2343 = vld [vmem:[%s3 + $0x250] sm:$0xff]
        %v2344 = vld [vmem:[%s3 + $0x258] sm:$0xff]
        %v2345 = vld [vmem:[%s3 + $0x260] sm:$0xff]
        %v2346 = vld [vmem:[%s3 + $0x268] sm:$0xff]
        %v2347 = vld [vmem:[%s3 + $0x270] sm:$0xff]
        %v2348 = vld [vmem:[%s3 + $0x278] sm:$0xff]
        %v2349 = vld [vmem:[%s3 + $0x280] sm:$0xff]
        %v2350 = vld [vmem:[%s3 + $0x288] sm:$0xff]
        %v2351 = vld [vmem:[%s3 + $0x290] sm:$0xff]
        %v2352 = vld [vmem:[%s3 + $0x298] sm:$0xff]
        %v2353 = vld [vmem:[%s3 + $0x2a0] sm:$0xff]
        %v2354 = vld [vmem:[%s3 + $0x2a8] sm:$0xff]
        %v2355 = vld [vmem:[%s3 + $0x2b0] sm:$0xff]
        %v2356 = vld [vmem:[%s3 + $0x2b8] sm:$0xff]
        %v2357 = vld [vmem:[%s3 + $0x2c0] sm:$0xff]
        %v2358 = vld [vmem:[%s3 + $0x2c8] sm:$0xff]
        %v2359 = vld [vmem:[%s3 + $0x2d0] sm:$0xff]
        %v2360 = vld [vmem:[%s3 + $0x2d8] sm:$0xff]
        %v2361 = vld [vmem:[%s3 + $0x2e0] sm:$0xff]
        %v2362 = vld [vmem:[%s3 + $0x2e8] sm:$0xff]
        %v2363 = vld [vmem:[%s3 + $0x2f0] sm:$0xff]
        %v2364 = vld [vmem:[%s3 + $0x2f8] sm:$0xff]
        %v2365 = vld [vmem:[%s3 + $0x300] sm:$0xff]
        %v2366 = vld [vmem:[%s3 + $0x308] sm:$0xff]
        %v2367 = vld [vmem:[%s3 + $0x310] sm:$0xff]
        %v2368 = vld [vmem:[%s3 + $0x318] sm:$0xff]
        %v2369 = vld [vmem:[%s3 + $0x320] sm:$0xff]
        %v2370 = vld [vmem:[%s3 + $0x328] sm:$0xff]
        %v2371 = vld [vmem:[%s3 + $0x330] sm:$0xff]
        %v2372 = vld [vmem:[%s3 + $0x338] sm:$0xff]
        %v2373 = vld [vmem:[%s3 + $0x340] sm:$0xff]
        %v2374 = vld [vmem:[%s3 + $0x348] sm:$0xff]
        %v2375 = vld [vmem:[%s3 + $0x350] sm:$0xff]
        %v2376 = vld [vmem:[%s3 + $0x358] sm:$0xff]
        %v2377 = vld [vmem:[%s3 + $0x360] sm:$0xff]
        %v2378 = vld [vmem:[%s3 + $0x368] sm:$0xff]
        %v2379 = vld [vmem:[%s3 + $0x370] sm:$0xff]
        %v2380 = vld [vmem:[%s3 + $0x378] sm:$0xff]
        %v2381 = vld [vmem:[%s3 + $0x380] sm:$0xff]
        %v2382 = vld [vmem:[%s3 + $0x388] sm:$0xff]
        %v2383 = vld [vmem:[%s3 + $0x390] sm:$0xff]
        %v2384 = vld [vmem:[%s3 + $0x398] sm:$0xff]
        %v2385 = vld [vmem:[%s3 + $0x3a0] sm:$0xff]
        %v2386 = vld [vmem:[%s3 + $0x3a8] sm:$0xff]
        %v2387 = vld [vmem:[%s3 + $0x3b0] sm:$0xff]
        %v2388 = vld [vmem:[%s3 + $0x3b8] sm:$0xff]
        %v2389 = vld [vmem:[%s3 + $0x3c0] sm:$0xff]
        %v2390 = vld [vmem:[%s3 + $0x3c8] sm:$0xff]
        %v2391 = vld [vmem:[%s3 + $0x3d0] sm:$0xff]
        %v2392 = vld [vmem:[%s3 + $0x3d8] sm:$0xff]
        %v2393 = vld [vmem:[%s3 + $0x3e0] sm:$0xff]
        %v2394 = vld [vmem:[%s3 + $0x3e8] sm:$0xff]
        %v2395 = vld [vmem:[%s3 + $0x3f0] sm:$0xff]
        %v2396 = vld [vmem:[%s3 + $0x3f8] sm:$0xff]
        %v2397 = vld [vmem:[%s3 + $0x400] sm:$0xff]
        %v2398 = vld [vmem:[%s3 + $0x408] sm:$0xff]
        %v2399 = vld [vmem:[%s3 + $0x410] sm:$0xff]
        %v2400 = vld [vmem:[%s3 + $0x418] sm:$0xff]
        %v2401 = vld [vmem:[%s3 + $0x420] sm:$0xff]
        %v2402 = vld [vmem:[%s3 + $0x428] sm:$0xff]
        %v2403 = vld [vmem:[%s3 + $0x430] sm:$0xff]
        %v2404 = vld [vmem:[%s3 + $0x438] sm:$0xff]
        %v2405 = vld [vmem:[%s3 + $0x440] sm:$0xff]
        %v2406 = vld [vmem:[%s3 + $0x448] sm:$0xff]
        %v2407 = vld [vmem:[%s3 + $0x450] sm:$0xff]
        %v2408 = vld [vmem:[%s3 + $0x458] sm:$0xff]
        %v2409 = vld [vmem:[%s3 + $0x460] sm:$0xff]
        %v2410 = vld [vmem:[%s3 + $0x468] sm:$0xff]
        %v2411 = vld [vmem:[%s3 + $0x470] sm:$0xff]
        %v2412 = vld [vmem:[%s3 + $0x478] sm:$0xff]
        %v2413 = vld [vmem:[%s3 + $0x480] sm:$0xff]
        %v2414 = vld [vmem:[%s3 + $0x488] sm:$0xff]
        %v2415 = vld [vmem:[%s3 + $0x490] sm:$0xff]
        %v2416 = vld [vmem:[%s3 + $0x498] sm:$0xff]
        %v2417 = vld [vmem:[%s3 + $0x4a0] sm:$0xff]
        %v2418 = vld [vmem:[%s3 + $0x4a8] sm:$0xff]
        %v2419 = vld [vmem:[%s3 + $0x4b0] sm:$0xff]
        %v2420 = vld [vmem:[%s3 + $0x4b8] sm:$0xff]
        %v2421 = vld [vmem:[%s3 + $0x4c0] sm:$0xff]
        %v2422 = vld [vmem:[%s3 + $0x4c8] sm:$0xff]
        %v2423 = vld [vmem:[%s3 + $0x4d0] sm:$0xff]
        %v2424 = vld [vmem:[%s3 + $0x4d8] sm:$0xff]
        %v2425 = vld [vmem:[%s3 + $0x4e0] sm:$0xff]
        %v2426 = vld [vmem:[%s3 + $0x4e8] sm:$0xff]
        %v2427 = vld [vmem:[%s3 + $0x4f0] sm:$0xff]
        %v2428 = vld [vmem:[%s3 + $0x4f8] sm:$0xff]
        %v2429 = vld [vmem:[%s3 + $0x500] sm:$0xff]
        %v2430 = vld [vmem:[%s3 + $0x508] sm:$0xff]
        %v2431 = vld [vmem:[%s3 + $0x510] sm:$0xff]
        %v2432 = vld [vmem:[%s3 + $0x518] sm:$0xff]
        %v2433 = vld [vmem:[%s3 + $0x520] sm:$0xff]
        %v2434 = vld [vmem:[%s3 + $0x528] sm:$0xff]
        %v2435 = vld [vmem:[%s3 + $0x530] sm:$0xff]
        %v2436 = vld [vmem:[%s3 + $0x538] sm:$0xff]
        %v2437 = vld [vmem:[%s3 + $0x540] sm:$0xff]
        %v2438 = vld [vmem:[%s3 + $0x548] sm:$0xff]
        %v2439 = vld [vmem:[%s3 + $0x550] sm:$0xff]
        %v2440 = vld [vmem:[%s3 + $0x558] sm:$0xff]
        %v2441 = vld [vmem:[%s3 + $0x560] sm:$0xff]
        %v2442 = vld [vmem:[%s3 + $0x568] sm:$0xff]
        %v2443 = vld [vmem:[%s3 + $0x570] sm:$0xff]
        %v2444 = vld [vmem:[%s3 + $0x578] sm:$0xff]
        %v2445 = vld [vmem:[%s3 + $0x580] sm:$0xff]
        %v2446 = vld [vmem:[%s3 + $0x588] sm:$0xff]
        %v2447 = vld [vmem:[%s3 + $0x590] sm:$0xff]
        %v2448 = vld [vmem:[%s3 + $0x598] sm:$0xff]
        %v2449 = vld [vmem:[%s3 + $0x5a0] sm:$0xff]
        %v2450 = vld [vmem:[%s3 + $0x5a8] sm:$0xff]
        %v2451 = vld [vmem:[%s3 + $0x5b0] sm:$0xff]
        %v2452 = vld [vmem:[%s3 + $0x5b8] sm:$0xff]
        %v2453 = vld [vmem:[%s3 + $0x5c0] sm:$0xff]
        %v2454 = vld [vmem:[%s3 + $0x5c8] sm:$0xff]
        %v2455 = vld [vmem:[%s3 + $0x5d0] sm:$0xff]
        %v2456 = vld [vmem:[%s3 + $0x5d8] sm:$0xff]
        %v2457 = vld [vmem:[%s3 + $0x5e0] sm:$0xff]
        %v2458 = vld [vmem:[%s3 + $0x5e8] sm:$0xff]
        %v2459 = vld [vmem:[%s3 + $0x5f0] sm:$0xff]
        %v2460 = vld [vmem:[%s3 + $0x5f8] sm:$0xff]
        %v2461 = vld [vmem:[%s3 + $0x600] sm:$0xff]
        %v2462 = vld [vmem:[%s3 + $0x608] sm:$0xff]
        %v2463 = vld [vmem:[%s3 + $0x610] sm:$0xff]
        %v2464 = vld [vmem:[%s3 + $0x618] sm:$0xff]
        %v2465 = vld [vmem:[%s3 + $0x620] sm:$0xff]
        %v2466 = vld [vmem:[%s3 + $0x628] sm:$0xff]
        %v2467 = vld [vmem:[%s3 + $0x630] sm:$0xff]
        %v2468 = vld [vmem:[%s3 + $0x638] sm:$0xff]
        %v2469 = vld [vmem:[%s3 + $0x640] sm:$0xff]
        %v2470 = vld [vmem:[%s3 + $0x648] sm:$0xff]
        %v2471 = vld [vmem:[%s3 + $0x650] sm:$0xff]
        %v2472 = vld [vmem:[%s3 + $0x658] sm:$0xff]
        %v2473 = vld [vmem:[%s3 + $0x660] sm:$0xff]
        %v2474 = vld [vmem:[%s3 + $0x668] sm:$0xff]
        %v2475 = vld [vmem:[%s3 + $0x670] sm:$0xff]
        %v2476 = vld [vmem:[%s3 + $0x678] sm:$0xff]
        %v2477 = vld [vmem:[%s3 + $0x680] sm:$0xff]
        %v2478 = vld [vmem:[%s3 + $0x688] sm:$0xff]
        %v2479 = vld [vmem:[%s3 + $0x690] sm:$0xff]
        %v2480 = vld [vmem:[%s3 + $0x698] sm:$0xff]
        %v2481 = vld [vmem:[%s3 + $0x6a0] sm:$0xff]
        %v2482 = vld [vmem:[%s3 + $0x6a8] sm:$0xff]
        %v2483 = vld [vmem:[%s3 + $0x6b0] sm:$0xff]
        %v2484 = vld [vmem:[%s3 + $0x6b8] sm:$0xff]
        %v2485 = vld [vmem:[%s3 + $0x6c0] sm:$0xff]
        %v2486 = vld [vmem:[%s3 + $0x6c8] sm:$0xff]
        %v2487 = vld [vmem:[%s3 + $0x6d0] sm:$0xff]
        %v2488 = vld [vmem:[%s3 + $0x6d8] sm:$0xff]
        %v2489 = vld [vmem:[%s3 + $0x6e0] sm:$0xff]
        %v2490 = vld [vmem:[%s3 + $0x6e8] sm:$0xff]
        %v2491 = vld [vmem:[%s3 + $0x6f0] sm:$0xff]
        %v2492 = vld [vmem:[%s3 + $0x6f8] sm:$0xff]
        %v2493 = vld [vmem:[%s3 + $0x700] sm:$0xff]
        %v2494 = vld [vmem:[%s3 + $0x708] sm:$0xff]
        %v2495 = vld [vmem:[%s3 + $0x710] sm:$0xff]
        %v2496 = vld [vmem:[%s3 + $0x718] sm:$0xff]
        %v2497 = vld [vmem:[%s3 + $0x720] sm:$0xff]
        %v2498 = vld [vmem:[%s3 + $0x728] sm:$0xff]
        %v2499 = vld [vmem:[%s3 + $0x730] sm:$0xff]
        %v2500 = vld [vmem:[%s3 + $0x738] sm:$0xff]
        %v2501 = vld [vmem:[%s3 + $0x740] sm:$0xff]
        %v2502 = vld [vmem:[%s3 + $0x748] sm:$0xff]
        %v2503 = vld [vmem:[%s3 + $0x750] sm:$0xff]
        %v2504 = vld [vmem:[%s3 + $0x758] sm:$0xff]
        %v2505 = vld [vmem:[%s3 + $0x760] sm:$0xff]
        %v2506 = vld [vmem:[%s3 + $0x768] sm:$0xff]
        %v2507 = vld [vmem:[%s3 + $0x770] sm:$0xff]
        %v2508 = vld [vmem:[%s3 + $0x778] sm:$0xff]
        %v2509 = vld [vmem:[%s3 + $0x780] sm:$0xff]
        %v2510 = vld [vmem:[%s3 + $0x788] sm:$0xff]
        %v2511 = vld [vmem:[%s3 + $0x790] sm:$0xff]
        %v2512 = vld [vmem:[%s3 + $0x798] sm:$0xff]
        %v2513 = vld [vmem:[%s3 + $0x7a0] sm:$0xff]
        %v2514 = vld [vmem:[%s3 + $0x7a8] sm:$0xff]
        %v2515 = vld [vmem:[%s3 + $0x7b0] sm:$0xff]
        %v2516 = vld [vmem:[%s3 + $0x7b8] sm:$0xff]
        %v2517 = vld [vmem:[%s3 + $0x7c0] sm:$0xff]
        %v2518 = vld [vmem:[%s3 + $0x7c8] sm:$0xff]
        %v2519 = vld [vmem:[%s3 + $0x7d0] sm:$0xff]
        %v2520 = vld [vmem:[%s3 + $0x7d8] sm:$0xff]
        %v2521 = vld [vmem:[%s3 + $0x7e0] sm:$0xff]
        %v2522 = vld [vmem:[%s3 + $0x7e8] sm:$0xff]
        %v2523 = vld [vmem:[%s3 + $0x7f0] sm:$0xff]
        %v2524 = vld [vmem:[%s3 + $0x7f8] sm:$0xff]
        %v2525 = vld [vmem:[%s269] sm:$0x3]
        %v2527 = vlaneseq
        %v2528 = vshrl.u32 %v2527, 7
        %v2529 = vsub.s32 0, %v2528
        %v2530 = vrot.slane %v2525, %v2529
        %v2531 = vlaneseq
        %v2532 = vshrl.u32 %v2531, 7
        %v2533 = vsub.s32 1, %v2532
        %v2534 = vrot.slane %v2525, %v2533
        %2537 = vmatprep.subr.mxu0 %v2270
        %2538 = vmatpush1.msra.mxu0 %v2269
        %2539 = vmatprep.subr.mxu0 %v2272
        %2540 = vmatpush1.msra.mxu0 %v2271
        %2541 = vmatprep.subr.mxu0 %v2274
        %2542 = vmatpush1.msra.mxu0 %v2273
        %2543 = vmatprep.subr.mxu0 %v2276
        %2544 = vmatpush1.msra.mxu0 %v2275
        %2545 = vmatprep.subr.mxu0 %v2278
        %2546 = vmatpush1.msra.mxu0 %v2277
        %2547 = vmatprep.subr.mxu0 %v2280
        %2548 = vmatpush1.msra.mxu0 %v2279
        %2549 = vmatprep.subr.mxu0 %v2282
        %2550 = vmatpush1.msra.mxu0 %v2281
        %2551 = vmatprep.subr.mxu0 %v2284
        %2552 = vmatpush1.msra.mxu0 %v2283
        %2553 = vmatprep.subr.mxu0 %v2286
        %2554 = vmatpush1.msra.mxu0 %v2285
        %2555 = vmatprep.subr.mxu0 %v2288
        %2556 = vmatpush1.msra.mxu0 %v2287
        %2557 = vmatprep.subr.mxu0 %v2290
        %2558 = vmatpush1.msra.mxu0 %v2289
        %2559 = vmatprep.subr.mxu0 %v2292
        %2560 = vmatpush1.msra.mxu0 %v2291
        %2561 = vmatprep.subr.mxu0 %v2294
        %2562 = vmatpush1.msra.mxu0 %v2293
        %2563 = vmatprep.subr.mxu0 %v2296
        %2564 = vmatpush1.msra.mxu0 %v2295
        %2565 = vmatprep.subr.mxu0 %v2298
        %2566 = vmatpush1.msra.mxu0 %v2297
        %2567 = vmatprep.subr.mxu0 %v2300
        %2568 = vmatpush1.msra.mxu0 %v2299
        %2569 = vmatprep.subr.mxu0 %v2302
        %2570 = vmatpush1.msra.mxu0 %v2301
        %2571 = vmatprep.subr.mxu0 %v2304
        %2572 = vmatpush1.msra.mxu0 %v2303
        %2573 = vmatprep.subr.mxu0 %v2306
        %2574 = vmatpush1.msra.mxu0 %v2305
        %2575 = vmatprep.subr.mxu0 %v2308
        %2576 = vmatpush1.msra.mxu0 %v2307
        %2577 = vmatprep.subr.mxu0 %v2310
        %2578 = vmatpush1.msra.mxu0 %v2309
        %2579 = vmatprep.subr.mxu0 %v2312
        %2580 = vmatpush1.msra.mxu0 %v2311
        %2581 = vmatprep.subr.mxu0 %v2314
        %2582 = vmatpush1.msra.mxu0 %v2313
        %2583 = vmatprep.subr.mxu0 %v2316
        %2584 = vmatpush1.msra.mxu0 %v2315
        %2585 = vmatprep.subr.mxu0 %v2318
        %2586 = vmatpush1.msra.mxu0 %v2317
        %2587 = vmatprep.subr.mxu0 %v2320
        %2588 = vmatpush1.msra.mxu0 %v2319
        %2589 = vmatprep.subr.mxu0 %v2322
        %2590 = vmatpush1.msra.mxu0 %v2321
        %2591 = vmatprep.subr.mxu0 %v2324
        %2592 = vmatpush1.msra.mxu0 %v2323
        %2593 = vmatprep.subr.mxu0 %v2326
        %2594 = vmatpush1.msra.mxu0 %v2325
        %2595 = vmatprep.subr.mxu0 %v2328
        %2596 = vmatpush1.msra.mxu0 %v2327
        %2597 = vmatprep.subr.mxu0 %v2330
        %2598 = vmatpush1.msra.mxu0 %v2329
        %2599 = vmatprep.subr.mxu0 %v2332
        %2600 = vmatpush1.msra.mxu0 %v2331
        %2601 = vmatprep.mubr.f32.mxu0 %v2014
        %2602 = vmatmul.mubr.f32.gmra.mrb[0].mxu0 %v2013
        %v2603 = vpop.f32.mrb[0].mxu0
        %v2604 = vadd.f32 %v2530, %v2603
        %v2605 = vpop.f32.mrb[0].mxu0
        %v2606 = vadd.f32 %v2534, %v2605
        %2607 = vmatprep.mubr.f32.mxu0 %v2022
        %2608 = vmatmul.mubr.f32.gmra.mrb[0].mxu0 %v2021
        %v2609 = vpop.f32.mrb[0].mxu0
        %v2610 = vadd.f32 %v2530, %v2609
        %v2611 = vpop.f32.mrb[0].mxu0
        %v2612 = vadd.f32 %v2534, %v2611
        %2613 = vmatprep.mubr.f32.mxu0 %v2030
        %2614 = vmatmul.mubr.f32.gmra.mrb[0].mxu0 %v2029
        %v2615 = vpop.f32.mrb[0].mxu0
        %v2616 = vadd.f32 %v2530, %v2615
        %v2617 = vpop.f32.mrb[0].mxu0
        %v2618 = vadd.f32 %v2534, %v2617
        %2619 = vmatprep.mubr.f32.mxu0 %v2038
        %2620 = vmatmul.mubr.f32.gmra.mrb[0].mxu0 %v2037
        %v2621 = vpop.f32.mrb[0].mxu0
        %v2622 = vadd.f32 %v2530, %v2621
        %v2623 = vpop.f32.mrb[0].mxu0
        %v2624 = vadd.f32 %v2534, %v2623
        %2625 = vmatprep.mubr.f32.mxu0 %v2046
        %2626 = vmatmul.mubr.f32.gmra.mrb[0].mxu0 %v2045
        %v2627 = vpop.f32.mrb[0].mxu0
        %v2628 = vadd.f32 %v2530, %v2627
        %v2629 = vpop.f32.mrb[0].mxu0
        %v2630 = vadd.f32 %v2534, %v2629
        %2631 = vmatprep.mubr.f32.mxu0 %v2054
        %2632 = vmatmul.mubr.f32.gmra.mrb[0].mxu0 %v2053
        %v2633 = vpop.f32.mrb[0].mxu0
        %v2634 = vadd.f32 %v2530, %v2633
        %v2635 = vpop.f32.mrb[0].mxu0
        %v2636 = vadd.f32 %v2534, %v2635
        %2637 = vmatprep.mubr.f32.mxu0 %v2062
        %2638 = vmatmul.mubr.f32.gmra.mrb[0].mxu0 %v2061
        %v2639 = vpop.f32.mrb[0].mxu0
        %v2640 = vadd.f32 %v2530, %v2639
        %v2641 = vpop.f32.mrb[0].mxu0
        %v2642 = vadd.f32 %v2534, %v2641
        %2643 = vmatprep.mubr.f32.mxu0 %v2070
        %2644 = vmatmul.mubr.f32.gmra.mrb[0].mxu0 %v2069
        %v2645 = vpop.f32.mrb[0].mxu0
        %v2646 = vadd.f32 %v2530, %v2645
        %v2647 = vpop.f32.mrb[0].mxu0
        %v2648 = vadd.f32 %v2534, %v2647
        %2649 = vmatprep.mubr.f32.mxu0 %v2078
        %2650 = vmatmul.mubr.f32.gmra.mrb[0].mxu0 %v2077
        %v2651 = vpop.f32.mrb[0].mxu0
        %v2652 = vadd.f32 %v2530, %v2651
        %v2653 = vpop.f32.mrb[0].mxu0
        %v2654 = vadd.f32 %v2534, %v2653
        %2655 = vmatprep.mubr.f32.mxu0 %v2086
        %2656 = vmatmul.mubr.f32.gmra.mrb[0].mxu0 %v2085
        %v2657 = vpop.f32.mrb[0].mxu0
        %v2658 = vadd.f32 %v2530, %v2657
        %v2659 = vpop.f32.mrb[0].mxu0
        %v2660 = vadd.f32 %v2534, %v2659
        %2661 = vmatprep.mubr.f32.mxu0 %v2094
        %2662 = vmatmul.mubr.f32.gmra.mrb[0].mxu0 %v2093
        %v2663 = vpop.f32.mrb[0].mxu0
        %v2664 = vadd.f32 %v2530, %v2663
        %v2665 = vpop.f32.mrb[0].mxu0
        %v2666 = vadd.f32 %v2534, %v2665
        %2667 = vmatprep.mubr.f32.mxu0 %v2102
        %2668 = vmatmul.mubr.f32.gmra.mrb[0].mxu0 %v2101
        %v2669 = vpop.f32.mrb[0].mxu0
        %v2670 = vadd.f32 %v2530, %v2669
        %v2671 = vpop.f32.mrb[0].mxu0
        %v2672 = vadd.f32 %v2534, %v2671
        %2673 = vmatprep.mubr.f32.mxu0 %v2110
        %2674 = vmatmul.mubr.f32.gmra.mrb[0].mxu0 %v2109
        %v2675 = vpop.f32.mrb[0].mxu0
        %v2676 = vadd.f32 %v2530, %v2675
        %v2677 = vpop.f32.mrb[0].mxu0
        %v2678 = vadd.f32 %v2534, %v2677
        %2679 = vmatprep.mubr.f32.mxu0 %v2118
        %2680 = vmatmul.mubr.f32.gmra.mrb[0].mxu0 %v2117
        %v2681 = vpop.f32.mrb[0].mxu0
        %v2682 = vadd.f32 %v2530, %v2681
        %v2683 = vpop.f32.mrb[0].mxu0
        %v2684 = vadd.f32 %v2534, %v2683
        %2685 = vmatprep.mubr.f32.mxu0 %v2126
        %2686 = vmatmul.mubr.f32.gmra.mrb[0].mxu0 %v2125
        %v2687 = vpop.f32.mrb[0].mxu0
        %v2688 = vadd.f32 %v2530, %v2687
        %v2689 = vpop.f32.mrb[0].mxu0
        %v2690 = vadd.f32 %v2534, %v2689
        %2691 = vmatprep.mubr.f32.mxu0 %v2134
        %2692 = vmatmul.mubr.f32.gmra.mrb[0].mxu0 %v2133
        %v2693 = vpop.f32.mrb[0].mxu0
        %v2694 = vadd.f32 %v2530, %v2693
        %v2695 = vpop.f32.mrb[0].mxu0
        %v2696 = vadd.f32 %v2534, %v2695
        %2697 = vmatprep.mubr.f32.mxu0 %v2142
        %2698 = vmatmul.mubr.f32.gmra.mrb[0].mxu0 %v2141
        %v2699 = vpop.f32.mrb[0].mxu0
        %v2700 = vadd.f32 %v2530, %v2699
        %v2701 = vpop.f32.mrb[0].mxu0
        %v2702 = vadd.f32 %v2534, %v2701
        %2703 = vmatprep.mubr.f32.mxu0 %v2150
        %2704 = vmatmul.mubr.f32.gmra.mrb[0].mxu0 %v2149
        %v2705 = vpop.f32.mrb[0].mxu0
        %v2706 = vadd.f32 %v2530, %v2705
        %v2707 = vpop.f32.mrb[0].mxu0
        %v2708 = vadd.f32 %v2534, %v2707
        %2709 = vmatprep.mubr.f32.mxu0 %v2158
        %2710 = vmatmul.mubr.f32.gmra.mrb[0].mxu0 %v2157
        %v2711 = vpop.f32.mrb[0].mxu0
        %v2712 = vadd.f32 %v2530, %v2711
        %v2713 = vpop.f32.mrb[0].mxu0
        %v2714 = vadd.f32 %v2534, %v2713
        %2715 = vmatprep.mubr.f32.mxu0 %v2166
        %2716 = vmatmul.mubr.f32.gmra.mrb[0].mxu0 %v2165
        %v2717 = vpop.f32.mrb[0].mxu0
        %v2718 = vadd.f32 %v2530, %v2717
        %v2719 = vpop.f32.mrb[0].mxu0
        %v2720 = vadd.f32 %v2534, %v2719
        %2721 = vmatprep.mubr.f32.mxu0 %v2174
        %2722 = vmatmul.mubr.f32.gmra.mrb[0].mxu0 %v2173
        %v2723 = vpop.f32.mrb[0].mxu0
        %v2724 = vadd.f32 %v2530, %v2723
        %v2725 = vpop.f32.mrb[0].mxu0
        %v2726 = vadd.f32 %v2534, %v2725
        %2727 = vmatprep.mubr.f32.mxu0 %v2182
        %2728 = vmatmul.mubr.f32.gmra.mrb[0].mxu0 %v2181
        %v2729 = vpop.f32.mrb[0].mxu0
        %v2730 = vadd.f32 %v2530, %v2729
        %v2731 = vpop.f32.mrb[0].mxu0
        %v2732 = vadd.f32 %v2534, %v2731
        %2733 = vmatprep.mubr.f32.mxu0 %v2190
        %2734 = vmatmul.mubr.f32.gmra.mrb[0].mxu0 %v2189
        %v2735 = vpop.f32.mrb[0].mxu0
        %v2736 = vadd.f32 %v2530, %v2735
        %v2737 = vpop.f32.mrb[0].mxu0
        %v2738 = vadd.f32 %v2534, %v2737
        %2739 = vmatprep.mubr.f32.mxu0 %v2198
        %2740 = vmatmul.mubr.f32.gmra.mrb[0].mxu0 %v2197
        %v2741 = vpop.f32.mrb[0].mxu0
        %v2742 = vadd.f32 %v2530, %v2741
        %v2743 = vpop.f32.mrb[0].mxu0
        %v2744 = vadd.f32 %v2534, %v2743
        %2745 = vmatprep.mubr.f32.mxu0 %v2206
        %2746 = vmatmul.mubr.f32.gmra.mrb[0].mxu0 %v2205
        %v2747 = vpop.f32.mrb[0].mxu0
        %v2748 = vadd.f32 %v2530, %v2747
        %v2749 = vpop.f32.mrb[0].mxu0
        %v2750 = vadd.f32 %v2534, %v2749
        %2751 = vmatprep.mubr.f32.mxu0 %v2214
        %2752 = vmatmul.mubr.f32.gmra.mrb[0].mxu0 %v2213
        %v2753 = vpop.f32.mrb[0].mxu0
        %v2754 = vadd.f32 %v2530, %v2753
        %v2755 = vpop.f32.mrb[0].mxu0
        %v2756 = vadd.f32 %v2534, %v2755
        %2757 = vmatprep.mubr.f32.mxu0 %v2222
        %2758 = vmatmul.mubr.f32.gmra.mrb[0].mxu0 %v2221
        %v2759 = vpop.f32.mrb[0].mxu0
        %v2760 = vadd.f32 %v2530, %v2759
        %v2761 = vpop.f32.mrb[0].mxu0
        %v2762 = vadd.f32 %v2534, %v2761
        %2763 = vmatprep.mubr.f32.mxu0 %v2230
        %2764 = vmatmul.mubr.f32.gmra.mrb[0].mxu0 %v2229
        %v2765 = vpop.f32.mrb[0].mxu0
        %v2766 = vadd.f32 %v2530, %v2765
        %v2767 = vpop.f32.mrb[0].mxu0
        %v2768 = vadd.f32 %v2534, %v2767
        %2769 = vmatprep.mubr.f32.mxu0 %v2238
        %2770 = vmatmul.mubr.f32.gmra.mrb[0].mxu0 %v2237
        %v2771 = vpop.f32.mrb[0].mxu0
        %v2772 = vadd.f32 %v2530, %v2771
        %v2773 = vpop.f32.mrb[0].mxu0
        %v2774 = vadd.f32 %v2534, %v2773
        %2775 = vmatprep.mubr.f32.mxu0 %v2246
        %2776 = vmatmul.mubr.f32.gmra.mrb[0].mxu0 %v2245
        %v2777 = vpop.f32.mrb[0].mxu0
        %v2778 = vadd.f32 %v2530, %v2777
        %v2779 = vpop.f32.mrb[0].mxu0
        %v2780 = vadd.f32 %v2534, %v2779
        %2781 = vmatprep.mubr.f32.mxu0 %v2254
        %2782 = vmatmul.mubr.f32.gmra.mrb[0].mxu0 %v2253
        %v2783 = vpop.f32.mrb[0].mxu0
        %v2784 = vadd.f32 %v2530, %v2783
        %v2785 = vpop.f32.mrb[0].mxu0
        %v2786 = vadd.f32 %v2534, %v2785
        %2787 = vmatprep.mubr.f32.mxu0 %v2262
        %2788 = vmatmul.mubr.f32.gmra.mrb[0].mxu0 %v2261
        %v2789 = vpop.f32.mrb[0].mxu0
        %v2790 = vadd.f32 %v2530, %v2789
        %v2791 = vpop.f32.mrb[0].mxu0
        %v2792 = vadd.f32 %v2534, %v2791
        %2793 = vdwg.mxu0
        %2794 = vmatprep.subr.mxu0 %v2334
        %2795 = vmatpush1.msra.mxu0 %v2333
        %2796 = vmatprep.subr.mxu0 %v2336
        %2797 = vmatpush1.msra.mxu0 %v2335
        %2798 = vmatprep.subr.mxu0 %v2338
        %2799 = vmatpush1.msra.mxu0 %v2337
        %2800 = vmatprep.subr.mxu0 %v2340
        %2801 = vmatpush1.msra.mxu0 %v2339
        %2802 = vmatprep.subr.mxu0 %v2342
        %2803 = vmatpush1.msra.mxu0 %v2341
        %2804 = vmatprep.subr.mxu0 %v2344
        %2805 = vmatpush1.msra.mxu0 %v2343
        %2806 = vmatprep.subr.mxu0 %v2346
        %2807 = vmatpush1.msra.mxu0 %v2345
        %2808 = vmatprep.subr.mxu0 %v2348
        %2809 = vmatpush1.msra.mxu0 %v2347
        %2810 = vmatprep.subr.mxu0 %v2350
        %2811 = vmatpush1.msra.mxu0 %v2349
        %2812 = vmatprep.subr.mxu0 %v2352
        %2813 = vmatpush1.msra.mxu0 %v2351
        %2814 = vmatprep.subr.mxu0 %v2354
        %2815 = vmatpush1.msra.mxu0 %v2353
        %2816 = vmatprep.subr.mxu0 %v2356
        %2817 = vmatpush1.msra.mxu0 %v2355
        %2818 = vmatprep.subr.mxu0 %v2358
        %2819 = vmatpush1.msra.mxu0 %v2357
        %2820 = vmatprep.subr.mxu0 %v2360
        %2821 = vmatpush1.msra.mxu0 %v2359
        %2822 = vmatprep.subr.mxu0 %v2362
        %2823 = vmatpush1.msra.mxu0 %v2361
        %2824 = vmatprep.subr.mxu0 %v2364
        %2825 = vmatpush1.msra.mxu0 %v2363
        %2826 = vmatprep.subr.mxu0 %v2366
        %2827 = vmatpush1.msra.mxu0 %v2365
        %2828 = vmatprep.subr.mxu0 %v2368
        %2829 = vmatpush1.msra.mxu0 %v2367
        %2830 = vmatprep.subr.mxu0 %v2370
        %2831 = vmatpush1.msra.mxu0 %v2369
        %2832 = vmatprep.subr.mxu0 %v2372
        %2833 = vmatpush1.msra.mxu0 %v2371
        %2834 = vmatprep.subr.mxu0 %v2374
        %2835 = vmatpush1.msra.mxu0 %v2373
        %2836 = vmatprep.subr.mxu0 %v2376
        %2837 = vmatpush1.msra.mxu0 %v2375
        %2838 = vmatprep.subr.mxu0 %v2378
        %2839 = vmatpush1.msra.mxu0 %v2377
        %2840 = vmatprep.subr.mxu0 %v2380
        %2841 = vmatpush1.msra.mxu0 %v2379
        %2842 = vmatprep.subr.mxu0 %v2382
        %2843 = vmatpush1.msra.mxu0 %v2381
        %2844 = vmatprep.subr.mxu0 %v2384
        %2845 = vmatpush1.msra.mxu0 %v2383
        %2846 = vmatprep.subr.mxu0 %v2386
        %2847 = vmatpush1.msra.mxu0 %v2385
        %2848 = vmatprep.subr.mxu0 %v2388
        %2849 = vmatpush1.msra.mxu0 %v2387
        %2850 = vmatprep.subr.mxu0 %v2390
        %2851 = vmatpush1.msra.mxu0 %v2389
        %2852 = vmatprep.subr.mxu0 %v2392
        %2853 = vmatpush1.msra.mxu0 %v2391
        %2854 = vmatprep.subr.mxu0 %v2394
        %2855 = vmatpush1.msra.mxu0 %v2393
        %2856 = vmatprep.subr.mxu0 %v2396
        %2857 = vmatpush1.msra.mxu0 %v2395
        %2858 = vmatprep.mubr.f32.mxu0 %v2016
        %2859 = vmatmul.mubr.f32.gmra.mrb[0].mxu0 %v2015
        %v2860 = vpop.f32.mrb[0].mxu0
        %v2861 = vadd.f32 %v2604, %v2860
        %v2862 = vpop.f32.mrb[0].mxu0
        %v2863 = vadd.f32 %v2606, %v2862
        %2864 = vmatprep.mubr.f32.mxu0 %v2024
        %2865 = vmatmul.mubr.f32.gmra.mrb[0].mxu0 %v2023
        %v2866 = vpop.f32.mrb[0].mxu0
        %v2867 = vadd.f32 %v2610, %v2866
        %v2868 = vpop.f32.mrb[0].mxu0
        %v2869 = vadd.f32 %v2612, %v2868
        %2870 = vmatprep.mubr.f32.mxu0 %v2032
        %2871 = vmatmul.mubr.f32.gmra.mrb[0].mxu0 %v2031
        %v2872 = vpop.f32.mrb[0].mxu0
        %v2873 = vadd.f32 %v2616, %v2872
        %v2874 = vpop.f32.mrb[0].mxu0
        %v2875 = vadd.f32 %v2618, %v2874
        %2876 = vmatprep.mubr.f32.mxu0 %v2040
        %2877 = vmatmul.mubr.f32.gmra.mrb[0].mxu0 %v2039
        %v2878 = vpop.f32.mrb[0].mxu0
        %v2879 = vadd.f32 %v2622, %v2878
        %v2880 = vpop.f32.mrb[0].mxu0
        %v2881 = vadd.f32 %v2624, %v2880
        %2882 = vmatprep.mubr.f32.mxu0 %v2048
        %2883 = vmatmul.mubr.f32.gmra.mrb[0].mxu0 %v2047
        %v2884 = vpop.f32.mrb[0].mxu0
        %v2885 = vadd.f32 %v2628, %v2884
        %v2886 = vpop.f32.mrb[0].mxu0
        %v2887 = vadd.f32 %v2630, %v2886
        %2888 = vmatprep.mubr.f32.mxu0 %v2056
        %2889 = vmatmul.mubr.f32.gmra.mrb[0].mxu0 %v2055
        %v2890 = vpop.f32.mrb[0].mxu0
        %v2891 = vadd.f32 %v2634, %v2890
        %v2892 = vpop.f32.mrb[0].mxu0
        %v2893 = vadd.f32 %v2636, %v2892
        %2894 = vmatprep.mubr.f32.mxu0 %v2064
        %2895 = vmatmul.mubr.f32.gmra.mrb[0].mxu0 %v2063
        %v2896 = vpop.f32.mrb[0].mxu0
        %v2897 = vadd.f32 %v2640, %v2896
        %v2898 = vpop.f32.mrb[0].mxu0
        %v2899 = vadd.f32 %v2642, %v2898
        %2900 = vmatprep.mubr.f32.mxu0 %v2072
        %2901 = vmatmul.mubr.f32.gmra.mrb[0].mxu0 %v2071
        %v2902 = vpop.f32.mrb[0].mxu0
        %v2903 = vadd.f32 %v2646, %v2902
        %v2904 = vpop.f32.mrb[0].mxu0
        %v2905 = vadd.f32 %v2648, %v2904
        %2906 = vmatprep.mubr.f32.mxu0 %v2080
        %2907 = vmatmul.mubr.f32.gmra.mrb[0].mxu0 %v2079
        %v2908 = vpop.f32.mrb[0].mxu0
        %v2909 = vadd.f32 %v2652, %v2908
        %v2910 = vpop.f32.mrb[0].mxu0
        %v2911 = vadd.f32 %v2654, %v2910
        %2912 = vmatprep.mubr.f32.mxu0 %v2088
        %2913 = vmatmul.mubr.f32.gmra.mrb[0].mxu0 %v2087
        %v2914 = vpop.f32.mrb[0].mxu0
        %v2915 = vadd.f32 %v2658, %v2914
        %v2916 = vpop.f32.mrb[0].mxu0
        %v2917 = vadd.f32 %v2660, %v2916
        %2918 = vmatprep.mubr.f32.mxu0 %v2096
        %2919 = vmatmul.mubr.f32.gmra.mrb[0].mxu0 %v2095
        %v2920 = vpop.f32.mrb[0].mxu0
        %v2921 = vadd.f32 %v2664, %v2920
        %v2922 = vpop.f32.mrb[0].mxu0
        %v2923 = vadd.f32 %v2666, %v2922
        %2924 = vmatprep.mubr.f32.mxu0 %v2104
        %2925 = vmatmul.mubr.f32.gmra.mrb[0].mxu0 %v2103
        %v2926 = vpop.f32.mrb[0].mxu0
        %v2927 = vadd.f32 %v2670, %v2926
        %v2928 = vpop.f32.mrb[0].mxu0
        %v2929 = vadd.f32 %v2672, %v2928
        %2930 = vmatprep.mubr.f32.mxu0 %v2112
        %2931 = vmatmul.mubr.f32.gmra.mrb[0].mxu0 %v2111
        %v2932 = vpop.f32.mrb[0].mxu0
        %v2933 = vadd.f32 %v2676, %v2932
        %v2934 = vpop.f32.mrb[0].mxu0
        %v2935 = vadd.f32 %v2678, %v2934
        %2936 = vmatprep.mubr.f32.mxu0 %v2120
        %2937 = vmatmul.mubr.f32.gmra.mrb[0].mxu0 %v2119
        %v2938 = vpop.f32.mrb[0].mxu0
        %v2939 = vadd.f32 %v2682, %v2938
        %v2940 = vpop.f32.mrb[0].mxu0
        %v2941 = vadd.f32 %v2684, %v2940
        %2942 = vmatprep.mubr.f32.mxu0 %v2128
        %2943 = vmatmul.mubr.f32.gmra.mrb[0].mxu0 %v2127
        %v2944 = vpop.f32.mrb[0].mxu0
        %v2945 = vadd.f32 %v2688, %v2944
        %v2946 = vpop.f32.mrb[0].mxu0
        %v2947 = vadd.f32 %v2690, %v2946
        %2948 = vmatprep.mubr.f32.mxu0 %v2136
        %2949 = vmatmul.mubr.f32.gmra.mrb[0].mxu0 %v2135
        %v2950 = vpop.f32.mrb[0].mxu0
        %v2951 = vadd.f32 %v2694, %v2950
        %v2952 = vpop.f32.mrb[0].mxu0
        %v2953 = vadd.f32 %v2696, %v2952
        %2954 = vmatprep.mubr.f32.mxu0 %v2144
        %2955 = vmatmul.mubr.f32.gmra.mrb[0].mxu0 %v2143
        %v2956 = vpop.f32.mrb[0].mxu0
        %v2957 = vadd.f32 %v2700, %v2956
        %v2958 = vpop.f32.mrb[0].mxu0
        %v2959 = vadd.f32 %v2702, %v2958
        %2960 = vmatprep.mubr.f32.mxu0 %v2152
        %2961 = vmatmul.mubr.f32.gmra.mrb[0].mxu0 %v2151
        %v2962 = vpop.f32.mrb[0].mxu0
        %v2963 = vadd.f32 %v2706, %v2962
        %v2964 = vpop.f32.mrb[0].mxu0
        %v2965 = vadd.f32 %v2708, %v2964
        %2966 = vmatprep.mubr.f32.mxu0 %v2160
        %2967 = vmatmul.mubr.f32.gmra.mrb[0].mxu0 %v2159
        %v2968 = vpop.f32.mrb[0].mxu0
        %v2969 = vadd.f32 %v2712, %v2968
        %v2970 = vpop.f32.mrb[0].mxu0
        %v2971 = vadd.f32 %v2714, %v2970
        %2972 = vmatprep.mubr.f32.mxu0 %v2168
        %2973 = vmatmul.mubr.f32.gmra.mrb[0].mxu0 %v2167
        %v2974 = vpop.f32.mrb[0].mxu0
        %v2975 = vadd.f32 %v2718, %v2974
        %v2976 = vpop.f32.mrb[0].mxu0
        %v2977 = vadd.f32 %v2720, %v2976
        %2978 = vmatprep.mubr.f32.mxu0 %v2176
        %2979 = vmatmul.mubr.f32.gmra.mrb[0].mxu0 %v2175
        %v2980 = vpop.f32.mrb[0].mxu0
        %v2981 = vadd.f32 %v2724, %v2980
        %v2982 = vpop.f32.mrb[0].mxu0
        %v2983 = vadd.f32 %v2726, %v2982
        %2984 = vmatprep.mubr.f32.mxu0 %v2184
        %2985 = vmatmul.mubr.f32.gmra.mrb[0].mxu0 %v2183
        %v2986 = vpop.f32.mrb[0].mxu0
        %v2987 = vadd.f32 %v2730, %v2986
        %v2988 = vpop.f32.mrb[0].mxu0
        %v2989 = vadd.f32 %v2732, %v2988
        %2990 = vmatprep.mubr.f32.mxu0 %v2192
        %2991 = vmatmul.mubr.f32.gmra.mrb[0].mxu0 %v2191
        %v2992 = vpop.f32.mrb[0].mxu0
        %v2993 = vadd.f32 %v2736, %v2992
        %v2994 = vpop.f32.mrb[0].mxu0
        %v2995 = vadd.f32 %v2738, %v2994
        %2996 = vmatprep.mubr.f32.mxu0 %v2200
        %2997 = vmatmul.mubr.f32.gmra.mrb[0].mxu0 %v2199
        %v2998 = vpop.f32.mrb[0].mxu0
        %v2999 = vadd.f32 %v2742, %v2998
        %v3000 = vpop.f32.mrb[0].mxu0
        %v3001 = vadd.f32 %v2744, %v3000
        %3002 = vmatprep.mubr.f32.mxu0 %v2208
        %3003 = vmatmul.mubr.f32.gmra.mrb[0].mxu0 %v2207
        %v3004 = vpop.f32.mrb[0].mxu0
        %v3005 = vadd.f32 %v2748, %v3004
        %v3006 = vpop.f32.mrb[0].mxu0
        %v3007 = vadd.f32 %v2750, %v3006
        %3008 = vmatprep.mubr.f32.mxu0 %v2216
        %3009 = vmatmul.mubr.f32.gmra.mrb[0].mxu0 %v2215
        %v3010 = vpop.f32.mrb[0].mxu0
        %v3011 = vadd.f32 %v2754, %v3010
        %v3012 = vpop.f32.mrb[0].mxu0
        %v3013 = vadd.f32 %v2756, %v3012
        %3014 = vmatprep.mubr.f32.mxu0 %v2224
        %3015 = vmatmul.mubr.f32.gmra.mrb[0].mxu0 %v2223
        %v3016 = vpop.f32.mrb[0].mxu0
        %v3017 = vadd.f32 %v2760, %v3016
        %v3018 = vpop.f32.mrb[0].mxu0
        %v3019 = vadd.f32 %v2762, %v3018
        %3020 = vmatprep.mubr.f32.mxu0 %v2232
        %3021 = vmatmul.mubr.f32.gmra.mrb[0].mxu0 %v2231
        %v3022 = vpop.f32.mrb[0].mxu0
        %v3023 = vadd.f32 %v2766, %v3022
        %v3024 = vpop.f32.mrb[0].mxu0
        %v3025 = vadd.f32 %v2768, %v3024
        %3026 = vmatprep.mubr.f32.mxu0 %v2240
        %3027 = vmatmul.mubr.f32.gmra.mrb[0].mxu0 %v2239
        %v3028 = vpop.f32.mrb[0].mxu0
        %v3029 = vadd.f32 %v2772, %v3028
        %v3030 = vpop.f32.mrb[0].mxu0
        %v3031 = vadd.f32 %v2774, %v3030
        %3032 = vmatprep.mubr.f32.mxu0 %v2248
        %3033 = vmatmul.mubr.f32.gmra.mrb[0].mxu0 %v2247
        %v3034 = vpop.f32.mrb[0].mxu0
        %v3035 = vadd.f32 %v2778, %v3034
        %v3036 = vpop.f32.mrb[0].mxu0
        %v3037 = vadd.f32 %v2780, %v3036
        %3038 = vmatprep.mubr.f32.mxu0 %v2256
        %3039 = vmatmul.mubr.f32.gmra.mrb[0].mxu0 %v2255
        %v3040 = vpop.f32.mrb[0].mxu0
        %v3041 = vadd.f32 %v2784, %v3040
        %v3042 = vpop.f32.mrb[0].mxu0
        %v3043 = vadd.f32 %v2786, %v3042
        %3044 = vmatprep.mubr.f32.mxu0 %v2264
        %3045 = vmatmul.mubr.f32.gmra.mrb[0].mxu0 %v2263
        %v3046 = vpop.f32.mrb[0].mxu0
        %v3047 = vadd.f32 %v2790, %v3046
        %v3048 = vpop.f32.mrb[0].mxu0
        %v3049 = vadd.f32 %v2792, %v3048
        %3050 = vdwg.mxu0
        %3051 = vmatprep.subr.mxu0 %v2398
        %3052 = vmatpush1.msra.mxu0 %v2397
        %3053 = vmatprep.subr.mxu0 %v2400
        %3054 = vmatpush1.msra.mxu0 %v2399
        %3055 = vmatprep.subr.mxu0 %v2402
        %3056 = vmatpush1.msra.mxu0 %v2401
        %3057 = vmatprep.subr.mxu0 %v2404
        %3058 = vmatpush1.msra.mxu0 %v2403
        %3059 = vmatprep.subr.mxu0 %v2406
        %3060 = vmatpush1.msra.mxu0 %v2405
        %3061 = vmatprep.subr.mxu0 %v2408
        %3062 = vmatpush1.msra.mxu0 %v2407
        %3063 = vmatprep.subr.mxu0 %v2410
        %3064 = vmatpush1.msra.mxu0 %v2409
        %3065 = vmatprep.subr.mxu0 %v2412
        %3066 = vmatpush1.msra.mxu0 %v2411
        %3067 = vmatprep.subr.mxu0 %v2414
        %3068 = vmatpush1.msra.mxu0 %v2413
        %3069 = vmatprep.subr.mxu0 %v2416
        %3070 = vmatpush1.msra.mxu0 %v2415
        %3071 = vmatprep.subr.mxu0 %v2418
        %3072 = vmatpush1.msra.mxu0 %v2417
        %3073 = vmatprep.subr.mxu0 %v2420
        %3074 = vmatpush1.msra.mxu0 %v2419
        %3075 = vmatprep.subr.mxu0 %v2422
        %3076 = vmatpush1.msra.mxu0 %v2421
        %3077 = vmatprep.subr.mxu0 %v2424
        %3078 = vmatpush1.msra.mxu0 %v2423
        %3079 = vmatprep.subr.mxu0 %v2426
        %3080 = vmatpush1.msra.mxu0 %v2425
        %3081 = vmatprep.subr.mxu0 %v2428
        %3082 = vmatpush1.msra.mxu0 %v2427
        %3083 = vmatprep.subr.mxu0 %v2430
        %3084 = vmatpush1.msra.mxu0 %v2429
        %3085 = vmatprep.subr.mxu0 %v2432
        %3086 = vmatpush1.msra.mxu0 %v2431
        %3087 = vmatprep.subr.mxu0 %v2434
        %3088 = vmatpush1.msra.mxu0 %v2433
        %3089 = vmatprep.subr.mxu0 %v2436
        %3090 = vmatpush1.msra.mxu0 %v2435
        %3091 = vmatprep.subr.mxu0 %v2438
        %3092 = vmatpush1.msra.mxu0 %v2437
        %3093 = vmatprep.subr.mxu0 %v2440
        %3094 = vmatpush1.msra.mxu0 %v2439
        %3095 = vmatprep.subr.mxu0 %v2442
        %3096 = vmatpush1.msra.mxu0 %v2441
        %3097 = vmatprep.subr.mxu0 %v2444
        %3098 = vmatpush1.msra.mxu0 %v2443
        %3099 = vmatprep.subr.mxu0 %v2446
        %3100 = vmatpush1.msra.mxu0 %v2445
        %3101 = vmatprep.subr.mxu0 %v2448
        %3102 = vmatpush1.msra.mxu0 %v2447
        %3103 = vmatprep.subr.mxu0 %v2450
        %3104 = vmatpush1.msra.mxu0 %v2449
        %3105 = vmatprep.subr.mxu0 %v2452
        %3106 = vmatpush1.msra.mxu0 %v2451
        %3107 = vmatprep.subr.mxu0 %v2454
        %3108 = vmatpush1.msra.mxu0 %v2453
        %3109 = vmatprep.subr.mxu0 %v2456
        %3110 = vmatpush1.msra.mxu0 %v2455
        %3111 = vmatprep.subr.mxu0 %v2458
        %3112 = vmatpush1.msra.mxu0 %v2457
        %3113 = vmatprep.subr.mxu0 %v2460
        %3114 = vmatpush1.msra.mxu0 %v2459
        %3115 = vmatprep.mubr.f32.mxu0 %v2018
        %3116 = vmatmul.mubr.f32.gmra.mrb[0].mxu0 %v2017
        %v3117 = vpop.f32.mrb[0].mxu0
        %v3118 = vadd.f32 %v2861, %v3117
        %v3119 = vpop.f32.mrb[0].mxu0
        %v3120 = vadd.f32 %v2863, %v3119
        %3121 = vmatprep.mubr.f32.mxu0 %v2026
        %3122 = vmatmul.mubr.f32.gmra.mrb[0].mxu0 %v2025
        %v3123 = vpop.f32.mrb[0].mxu0
        %v3124 = vadd.f32 %v2867, %v3123
        %v3125 = vpop.f32.mrb[0].mxu0
        %v3126 = vadd.f32 %v2869, %v3125
        %3127 = vmatprep.mubr.f32.mxu0 %v2034
        %3128 = vmatmul.mubr.f32.gmra.mrb[0].mxu0 %v2033
        %v3129 = vpop.f32.mrb[0].mxu0
        %v3130 = vadd.f32 %v2873, %v3129
        %v3131 = vpop.f32.mrb[0].mxu0
        %v3132 = vadd.f32 %v2875, %v3131
        %3133 = vmatprep.mubr.f32.mxu0 %v2042
        %3134 = vmatmul.mubr.f32.gmra.mrb[0].mxu0 %v2041
        %v3135 = vpop.f32.mrb[0].mxu0
        %v3136 = vadd.f32 %v2879, %v3135
        %v3137 = vpop.f32.mrb[0].mxu0
        %v3138 = vadd.f32 %v2881, %v3137
        %3139 = vmatprep.mubr.f32.mxu0 %v2050
        %3140 = vmatmul.mubr.f32.gmra.mrb[0].mxu0 %v2049
        %v3141 = vpop.f32.mrb[0].mxu0
        %v3142 = vadd.f32 %v2885, %v3141
        %v3143 = vpop.f32.mrb[0].mxu0
        %v3144 = vadd.f32 %v2887, %v3143
        %3145 = vmatprep.mubr.f32.mxu0 %v2058
        %3146 = vmatmul.mubr.f32.gmra.mrb[0].mxu0 %v2057
        %v3147 = vpop.f32.mrb[0].mxu0
        %v3148 = vadd.f32 %v2891, %v3147
        %v3149 = vpop.f32.mrb[0].mxu0
        %v3150 = vadd.f32 %v2893, %v3149
        %3151 = vmatprep.mubr.f32.mxu0 %v2066
        %3152 = vmatmul.mubr.f32.gmra.mrb[0].mxu0 %v2065
        %v3153 = vpop.f32.mrb[0].mxu0
        %v3154 = vadd.f32 %v2897, %v3153
        %v3155 = vpop.f32.mrb[0].mxu0
        %v3156 = vadd.f32 %v2899, %v3155
        %3157 = vmatprep.mubr.f32.mxu0 %v2074
        %3158 = vmatmul.mubr.f32.gmra.mrb[0].mxu0 %v2073
        %v3159 = vpop.f32.mrb[0].mxu0
        %v3160 = vadd.f32 %v2903, %v3159
        %v3161 = vpop.f32.mrb[0].mxu0
        %v3162 = vadd.f32 %v2905, %v3161
        %3163 = vmatprep.mubr.f32.mxu0 %v2082
        %3164 = vmatmul.mubr.f32.gmra.mrb[0].mxu0 %v2081
        %v3165 = vpop.f32.mrb[0].mxu0
        %v3166 = vadd.f32 %v2909, %v3165
        %v3167 = vpop.f32.mrb[0].mxu0
        %v3168 = vadd.f32 %v2911, %v3167
        %3169 = vmatprep.mubr.f32.mxu0 %v2090
        %3170 = vmatmul.mubr.f32.gmra.mrb[0].mxu0 %v2089
        %v3171 = vpop.f32.mrb[0].mxu0
        %v3172 = vadd.f32 %v2915, %v3171
        %v3173 = vpop.f32.mrb[0].mxu0
        %v3174 = vadd.f32 %v2917, %v3173
        %3175 = vmatprep.mubr.f32.mxu0 %v2098
        %3176 = vmatmul.mubr.f32.gmra.mrb[0].mxu0 %v2097
        %v3177 = vpop.f32.mrb[0].mxu0
        %v3178 = vadd.f32 %v2921, %v3177
        %v3179 = vpop.f32.mrb[0].mxu0
        %v3180 = vadd.f32 %v2923, %v3179
        %3181 = vmatprep.mubr.f32.mxu0 %v2106
        %3182 = vmatmul.mubr.f32.gmra.mrb[0].mxu0 %v2105
        %v3183 = vpop.f32.mrb[0].mxu0
        %v3184 = vadd.f32 %v2927, %v3183
        %v3185 = vpop.f32.mrb[0].mxu0
        %v3186 = vadd.f32 %v2929, %v3185
        %3187 = vmatprep.mubr.f32.mxu0 %v2114
        %3188 = vmatmul.mubr.f32.gmra.mrb[0].mxu0 %v2113
        %v3189 = vpop.f32.mrb[0].mxu0
        %v3190 = vadd.f32 %v2933, %v3189
        %v3191 = vpop.f32.mrb[0].mxu0
        %v3192 = vadd.f32 %v2935, %v3191
        %3193 = vmatprep.mubr.f32.mxu0 %v2122
        %3194 = vmatmul.mubr.f32.gmra.mrb[0].mxu0 %v2121
        %v3195 = vpop.f32.mrb[0].mxu0
        %v3196 = vadd.f32 %v2939, %v3195
        %v3197 = vpop.f32.mrb[0].mxu0
        %v3198 = vadd.f32 %v2941, %v3197
        %3199 = vmatprep.mubr.f32.mxu0 %v2130
        %3200 = vmatmul.mubr.f32.gmra.mrb[0].mxu0 %v2129
        %v3201 = vpop.f32.mrb[0].mxu0
        %v3202 = vadd.f32 %v2945, %v3201
        %v3203 = vpop.f32.mrb[0].mxu0
        %v3204 = vadd.f32 %v2947, %v3203
        %3205 = vmatprep.mubr.f32.mxu0 %v2138
        %3206 = vmatmul.mubr.f32.gmra.mrb[0].mxu0 %v2137
        %v3207 = vpop.f32.mrb[0].mxu0
        %v3208 = vadd.f32 %v2951, %v3207
        %v3209 = vpop.f32.mrb[0].mxu0
        %v3210 = vadd.f32 %v2953, %v3209
        %3211 = vmatprep.mubr.f32.mxu0 %v2146
        %3212 = vmatmul.mubr.f32.gmra.mrb[0].mxu0 %v2145
        %v3213 = vpop.f32.mrb[0].mxu0
        %v3214 = vadd.f32 %v2957, %v3213
        %v3215 = vpop.f32.mrb[0].mxu0
        %v3216 = vadd.f32 %v2959, %v3215
        %3217 = vmatprep.mubr.f32.mxu0 %v2154
        %3218 = vmatmul.mubr.f32.gmra.mrb[0].mxu0 %v2153
        %v3219 = vpop.f32.mrb[0].mxu0
        %v3220 = vadd.f32 %v2963, %v3219
        %v3221 = vpop.f32.mrb[0].mxu0
        %v3222 = vadd.f32 %v2965, %v3221
        %3223 = vmatprep.mubr.f32.mxu0 %v2162
        %3224 = vmatmul.mubr.f32.gmra.mrb[0].mxu0 %v2161
        %v3225 = vpop.f32.mrb[0].mxu0
        %v3226 = vadd.f32 %v2969, %v3225
        %v3227 = vpop.f32.mrb[0].mxu0
        %v3228 = vadd.f32 %v2971, %v3227
        %3229 = vmatprep.mubr.f32.mxu0 %v2170
        %3230 = vmatmul.mubr.f32.gmra.mrb[0].mxu0 %v2169
        %v3231 = vpop.f32.mrb[0].mxu0
        %v3232 = vadd.f32 %v2975, %v3231
        %v3233 = vpop.f32.mrb[0].mxu0
        %v3234 = vadd.f32 %v2977, %v3233
        %3235 = vmatprep.mubr.f32.mxu0 %v2178
        %3236 = vmatmul.mubr.f32.gmra.mrb[0].mxu0 %v2177
        %v3237 = vpop.f32.mrb[0].mxu0
        %v3238 = vadd.f32 %v2981, %v3237
        %v3239 = vpop.f32.mrb[0].mxu0
        %v3240 = vadd.f32 %v2983, %v3239
        %3241 = vmatprep.mubr.f32.mxu0 %v2186
        %3242 = vmatmul.mubr.f32.gmra.mrb[0].mxu0 %v2185
        %v3243 = vpop.f32.mrb[0].mxu0
        %v3244 = vadd.f32 %v2987, %v3243
        %v3245 = vpop.f32.mrb[0].mxu0
        %v3246 = vadd.f32 %v2989, %v3245
        %3247 = vmatprep.mubr.f32.mxu0 %v2194
        %3248 = vmatmul.mubr.f32.gmra.mrb[0].mxu0 %v2193
        %v3249 = vpop.f32.mrb[0].mxu0
        %v3250 = vadd.f32 %v2993, %v3249
        %v3251 = vpop.f32.mrb[0].mxu0
        %v3252 = vadd.f32 %v2995, %v3251
        %3253 = vmatprep.mubr.f32.mxu0 %v2202
        %3254 = vmatmul.mubr.f32.gmra.mrb[0].mxu0 %v2201
        %v3255 = vpop.f32.mrb[0].mxu0
        %v3256 = vadd.f32 %v2999, %v3255
        %v3257 = vpop.f32.mrb[0].mxu0
        %v3258 = vadd.f32 %v3001, %v3257
        %3259 = vmatprep.mubr.f32.mxu0 %v2210
        %3260 = vmatmul.mubr.f32.gmra.mrb[0].mxu0 %v2209
        %v3261 = vpop.f32.mrb[0].mxu0
        %v3262 = vadd.f32 %v3005, %v3261
        %v3263 = vpop.f32.mrb[0].mxu0
        %v3264 = vadd.f32 %v3007, %v3263
        %3265 = vmatprep.mubr.f32.mxu0 %v2218
        %3266 = vmatmul.mubr.f32.gmra.mrb[0].mxu0 %v2217
        %v3267 = vpop.f32.mrb[0].mxu0
        %v3268 = vadd.f32 %v3011, %v3267
        %v3269 = vpop.f32.mrb[0].mxu0
        %v3270 = vadd.f32 %v3013, %v3269
        %3271 = vmatprep.mubr.f32.mxu0 %v2226
        %3272 = vmatmul.mubr.f32.gmra.mrb[0].mxu0 %v2225
        %v3273 = vpop.f32.mrb[0].mxu0
        %v3274 = vadd.f32 %v3017, %v3273
        %v3275 = vpop.f32.mrb[0].mxu0
        %v3276 = vadd.f32 %v3019, %v3275
        %3277 = vmatprep.mubr.f32.mxu0 %v2234
        %3278 = vmatmul.mubr.f32.gmra.mrb[0].mxu0 %v2233
        %v3279 = vpop.f32.mrb[0].mxu0
        %v3280 = vadd.f32 %v3023, %v3279
        %v3281 = vpop.f32.mrb[0].mxu0
        %v3282 = vadd.f32 %v3025, %v3281
        %3283 = vmatprep.mubr.f32.mxu0 %v2242
        %3284 = vmatmul.mubr.f32.gmra.mrb[0].mxu0 %v2241
        %v3285 = vpop.f32.mrb[0].mxu0
        %v3286 = vadd.f32 %v3029, %v3285
        %v3287 = vpop.f32.mrb[0].mxu0
        %v3288 = vadd.f32 %v3031, %v3287
        %3289 = vmatprep.mubr.f32.mxu0 %v2250
        %3290 = vmatmul.mubr.f32.gmra.mrb[0].mxu0 %v2249
        %v3291 = vpop.f32.mrb[0].mxu0
        %v3292 = vadd.f32 %v3035, %v3291
        %v3293 = vpop.f32.mrb[0].mxu0
        %v3294 = vadd.f32 %v3037, %v3293
        %3295 = vmatprep.mubr.f32.mxu0 %v2258
        %3296 = vmatmul.mubr.f32.gmra.mrb[0].mxu0 %v2257
        %v3297 = vpop.f32.mrb[0].mxu0
        %v3298 = vadd.f32 %v3041, %v3297
        %v3299 = vpop.f32.mrb[0].mxu0
        %v3300 = vadd.f32 %v3043, %v3299
        %3301 = vmatprep.mubr.f32.mxu0 %v2266
        %3302 = vmatmul.mubr.f32.gmra.mrb[0].mxu0 %v2265
        %v3303 = vpop.f32.mrb[0].mxu0
        %v3304 = vadd.f32 %v3047, %v3303
        %v3305 = vpop.f32.mrb[0].mxu0
        %v3306 = vadd.f32 %v3049, %v3305
        %3307 = vdwg.mxu0
        %3308 = vmatprep.subr.mxu0 %v2462
        %3309 = vmatpush1.msra.mxu0 %v2461
        %3310 = vmatprep.subr.mxu0 %v2464
        %3311 = vmatpush1.msra.mxu0 %v2463
        %3312 = vmatprep.subr.mxu0 %v2466
        %3313 = vmatpush1.msra.mxu0 %v2465
        %3314 = vmatprep.subr.mxu0 %v2468
        %3315 = vmatpush1.msra.mxu0 %v2467
        %3316 = vmatprep.subr.mxu0 %v2470
        %3317 = vmatpush1.msra.mxu0 %v2469
        %3318 = vmatprep.subr.mxu0 %v2472
        %3319 = vmatpush1.msra.mxu0 %v2471
        %3320 = vmatprep.subr.mxu0 %v2474
        %3321 = vmatpush1.msra.mxu0 %v2473
        %3322 = vmatprep.subr.mxu0 %v2476
        %3323 = vmatpush1.msra.mxu0 %v2475
        %3324 = vmatprep.subr.mxu0 %v2478
        %3325 = vmatpush1.msra.mxu0 %v2477
        %3326 = vmatprep.subr.mxu0 %v2480
        %3327 = vmatpush1.msra.mxu0 %v2479
        %3328 = vmatprep.subr.mxu0 %v2482
        %3329 = vmatpush1.msra.mxu0 %v2481
        %3330 = vmatprep.subr.mxu0 %v2484
        %3331 = vmatpush1.msra.mxu0 %v2483
        %3332 = vmatprep.subr.mxu0 %v2486
        %3333 = vmatpush1.msra.mxu0 %v2485
        %3334 = vmatprep.subr.mxu0 %v2488
        %3335 = vmatpush1.msra.mxu0 %v2487
        %3336 = vmatprep.subr.mxu0 %v2490
        %3337 = vmatpush1.msra.mxu0 %v2489
        %3338 = vmatprep.subr.mxu0 %v2492
        %3339 = vmatpush1.msra.mxu0 %v2491
        %3340 = vmatprep.subr.mxu0 %v2494
        %3341 = vmatpush1.msra.mxu0 %v2493
        %3342 = vmatprep.subr.mxu0 %v2496
        %3343 = vmatpush1.msra.mxu0 %v2495
        %3344 = vmatprep.subr.mxu0 %v2498
        %3345 = vmatpush1.msra.mxu0 %v2497
        %3346 = vmatprep.subr.mxu0 %v2500
        %3347 = vmatpush1.msra.mxu0 %v2499
        %3348 = vmatprep.subr.mxu0 %v2502
        %3349 = vmatpush1.msra.mxu0 %v2501
        %3350 = vmatprep.subr.mxu0 %v2504
        %3351 = vmatpush1.msra.mxu0 %v2503
        %3352 = vmatprep.subr.mxu0 %v2506
        %3353 = vmatpush1.msra.mxu0 %v2505
        %3354 = vmatprep.subr.mxu0 %v2508
        %3355 = vmatpush1.msra.mxu0 %v2507
        %3356 = vmatprep.subr.mxu0 %v2510
        %3357 = vmatpush1.msra.mxu0 %v2509
        %3358 = vmatprep.subr.mxu0 %v2512
        %3359 = vmatpush1.msra.mxu0 %v2511
        %3360 = vmatprep.subr.mxu0 %v2514
        %3361 = vmatpush1.msra.mxu0 %v2513
        %3362 = vmatprep.subr.mxu0 %v2516
        %3363 = vmatpush1.msra.mxu0 %v2515
        %3364 = vmatprep.subr.mxu0 %v2518
        %3365 = vmatpush1.msra.mxu0 %v2517
        %3366 = vmatprep.subr.mxu0 %v2520
        %3367 = vmatpush1.msra.mxu0 %v2519
        %3368 = vmatprep.subr.mxu0 %v2522
        %3369 = vmatpush1.msra.mxu0 %v2521
        %3370 = vmatprep.subr.mxu0 %v2524
        %3371 = vmatpush1.msra.mxu0 %v2523
        %3372 = vmatprep.mubr.f32.mxu0 %v2020
        %3373 = vmatmul.mubr.f32.gmra.mrb[0].mxu0 %v2019
        %v3374 = vpop.f32.mrb[0].mxu0
        %v3375 = vadd.f32 %v3118, %v3374
        %v3376 = vpop.f32.mrb[0].mxu0
        %v3377 = vadd.f32 %v3120, %v3376
        %3378 = vmatprep.mubr.f32.mxu0 %v2028
        %3379 = vmatmul.mubr.f32.gmra.mrb[0].mxu0 %v2027
        %v3380 = vpop.f32.mrb[0].mxu0
        %v3381 = vadd.f32 %v3124, %v3380
        %v3382 = vpop.f32.mrb[0].mxu0
        %v3383 = vadd.f32 %v3126, %v3382
        %3384 = vmatprep.mubr.f32.mxu0 %v2036
        %3385 = vmatmul.mubr.f32.gmra.mrb[0].mxu0 %v2035
        %v3386 = vpop.f32.mrb[0].mxu0
        %v3387 = vadd.f32 %v3130, %v3386
        %v3388 = vpop.f32.mrb[0].mxu0
        %v3389 = vadd.f32 %v3132, %v3388
        %3390 = vmatprep.mubr.f32.mxu0 %v2044
        %3391 = vmatmul.mubr.f32.gmra.mrb[0].mxu0 %v2043
        %v3392 = vpop.f32.mrb[0].mxu0
        %v3393 = vadd.f32 %v3136, %v3392
        %v3394 = vpop.f32.mrb[0].mxu0
        %v3395 = vadd.f32 %v3138, %v3394
        %3396 = vmatprep.mubr.f32.mxu0 %v2052
        %3397 = vmatmul.mubr.f32.gmra.mrb[0].mxu0 %v2051
        %v3398 = vpop.f32.mrb[0].mxu0
        %v3399 = vadd.f32 %v3142, %v3398
        %v3400 = vpop.f32.mrb[0].mxu0
        %v3401 = vadd.f32 %v3144, %v3400
        %3402 = vmatprep.mubr.f32.mxu0 %v2060
        %3403 = vmatmul.mubr.f32.gmra.mrb[0].mxu0 %v2059
        %v3404 = vpop.f32.mrb[0].mxu0
        %v3405 = vadd.f32 %v3148, %v3404
        %v3406 = vpop.f32.mrb[0].mxu0
        %v3407 = vadd.f32 %v3150, %v3406
        %3408 = vmatprep.mubr.f32.mxu0 %v2068
        %3409 = vmatmul.mubr.f32.gmra.mrb[0].mxu0 %v2067
        %v3410 = vpop.f32.mrb[0].mxu0
        %v3411 = vadd.f32 %v3154, %v3410
        %v3412 = vpop.f32.mrb[0].mxu0
        %v3413 = vadd.f32 %v3156, %v3412
        %3414 = vmatprep.mubr.f32.mxu0 %v2076
        %3415 = vmatmul.mubr.f32.gmra.mrb[0].mxu0 %v2075
        %v3416 = vpop.f32.mrb[0].mxu0
        %v3417 = vadd.f32 %v3160, %v3416
        %v3418 = vpop.f32.mrb[0].mxu0
        %v3419 = vadd.f32 %v3162, %v3418
        %3420 = vmatprep.mubr.f32.mxu0 %v2084
        %3421 = vmatmul.mubr.f32.gmra.mrb[0].mxu0 %v2083
        %v3422 = vpop.f32.mrb[0].mxu0
        %v3423 = vadd.f32 %v3166, %v3422
        %v3424 = vpop.f32.mrb[0].mxu0
        %v3425 = vadd.f32 %v3168, %v3424
        %3426 = vmatprep.mubr.f32.mxu0 %v2092
        %3427 = vmatmul.mubr.f32.gmra.mrb[0].mxu0 %v2091
        %v3428 = vpop.f32.mrb[0].mxu0
        %v3429 = vadd.f32 %v3172, %v3428
        %v3430 = vpop.f32.mrb[0].mxu0
        %v3431 = vadd.f32 %v3174, %v3430
        %3432 = vmatprep.mubr.f32.mxu0 %v2100
        %3433 = vmatmul.mubr.f32.gmra.mrb[0].mxu0 %v2099
        %v3434 = vpop.f32.mrb[0].mxu0
        %v3435 = vadd.f32 %v3178, %v3434
        %v3436 = vpop.f32.mrb[0].mxu0
        %v3437 = vadd.f32 %v3180, %v3436
        %3438 = vmatprep.mubr.f32.mxu0 %v2108
        %3439 = vmatmul.mubr.f32.gmra.mrb[0].mxu0 %v2107
        %v3440 = vpop.f32.mrb[0].mxu0
        %v3441 = vadd.f32 %v3184, %v3440
        %v3442 = vpop.f32.mrb[0].mxu0
        %v3443 = vadd.f32 %v3186, %v3442
        %3444 = vmatprep.mubr.f32.mxu0 %v2116
        %3445 = vmatmul.mubr.f32.gmra.mrb[0].mxu0 %v2115
        %v3446 = vpop.f32.mrb[0].mxu0
        %v3447 = vadd.f32 %v3190, %v3446
        %v3448 = vpop.f32.mrb[0].mxu0
        %v3449 = vadd.f32 %v3192, %v3448
        %3450 = vmatprep.mubr.f32.mxu0 %v2124
        %3451 = vmatmul.mubr.f32.gmra.mrb[0].mxu0 %v2123
        %v3452 = vpop.f32.mrb[0].mxu0
        %v3453 = vadd.f32 %v3196, %v3452
        %v3454 = vpop.f32.mrb[0].mxu0
        %v3455 = vadd.f32 %v3198, %v3454
        %3456 = vmatprep.mubr.f32.mxu0 %v2132
        %3457 = vmatmul.mubr.f32.gmra.mrb[0].mxu0 %v2131
        %v3458 = vpop.f32.mrb[0].mxu0
        %v3459 = vadd.f32 %v3202, %v3458
        %v3460 = vpop.f32.mrb[0].mxu0
        %v3461 = vadd.f32 %v3204, %v3460
        %3462 = vmatprep.mubr.f32.mxu0 %v2140
        %3463 = vmatmul.mubr.f32.gmra.mrb[0].mxu0 %v2139
        %v3464 = vpop.f32.mrb[0].mxu0
        %v3465 = vadd.f32 %v3208, %v3464
        %v3466 = vpop.f32.mrb[0].mxu0
        %v3467 = vadd.f32 %v3210, %v3466
        %3468 = vmatprep.mubr.f32.mxu0 %v2148
        %3469 = vmatmul.mubr.f32.gmra.mrb[0].mxu0 %v2147
        %v3470 = vpop.f32.mrb[0].mxu0
        %v3471 = vadd.f32 %v3214, %v3470
        %v3472 = vpop.f32.mrb[0].mxu0
        %v3473 = vadd.f32 %v3216, %v3472
        %3474 = vmatprep.mubr.f32.mxu0 %v2156
        %3475 = vmatmul.mubr.f32.gmra.mrb[0].mxu0 %v2155
        %v3476 = vpop.f32.mrb[0].mxu0
        %v3477 = vadd.f32 %v3220, %v3476
        %v3478 = vpop.f32.mrb[0].mxu0
        %v3479 = vadd.f32 %v3222, %v3478
        %3480 = vmatprep.mubr.f32.mxu0 %v2164
        %3481 = vmatmul.mubr.f32.gmra.mrb[0].mxu0 %v2163
        %v3482 = vpop.f32.mrb[0].mxu0
        %v3483 = vadd.f32 %v3226, %v3482
        %v3484 = vpop.f32.mrb[0].mxu0
        %v3485 = vadd.f32 %v3228, %v3484
        %3486 = vmatprep.mubr.f32.mxu0 %v2172
        %3487 = vmatmul.mubr.f32.gmra.mrb[0].mxu0 %v2171
        %v3488 = vpop.f32.mrb[0].mxu0
        %v3489 = vadd.f32 %v3232, %v3488
        %v3490 = vpop.f32.mrb[0].mxu0
        %v3491 = vadd.f32 %v3234, %v3490
        %3492 = vmatprep.mubr.f32.mxu0 %v2180
        %3493 = vmatmul.mubr.f32.gmra.mrb[0].mxu0 %v2179
        %v3494 = vpop.f32.mrb[0].mxu0
        %v3495 = vadd.f32 %v3238, %v3494
        %v3496 = vpop.f32.mrb[0].mxu0
        %v3497 = vadd.f32 %v3240, %v3496
        %3498 = vmatprep.mubr.f32.mxu0 %v2188
        %3499 = vmatmul.mubr.f32.gmra.mrb[0].mxu0 %v2187
        %v3500 = vpop.f32.mrb[0].mxu0
        %v3501 = vadd.f32 %v3244, %v3500
        %v3502 = vpop.f32.mrb[0].mxu0
        %v3503 = vadd.f32 %v3246, %v3502
        %3504 = vmatprep.mubr.f32.mxu0 %v2196
        %3505 = vmatmul.mubr.f32.gmra.mrb[0].mxu0 %v2195
        %v3506 = vpop.f32.mrb[0].mxu0
        %v3507 = vadd.f32 %v3250, %v3506
        %v3508 = vpop.f32.mrb[0].mxu0
        %v3509 = vadd.f32 %v3252, %v3508
        %3510 = vmatprep.mubr.f32.mxu0 %v2204
        %3511 = vmatmul.mubr.f32.gmra.mrb[0].mxu0 %v2203
        %v3512 = vpop.f32.mrb[0].mxu0
        %v3513 = vadd.f32 %v3256, %v3512
        %v3514 = vpop.f32.mrb[0].mxu0
        %v3515 = vadd.f32 %v3258, %v3514
        %3516 = vmatprep.mubr.f32.mxu0 %v2212
        %3517 = vmatmul.mubr.f32.gmra.mrb[0].mxu0 %v2211
        %v3518 = vpop.f32.mrb[0].mxu0
        %v3519 = vadd.f32 %v3262, %v3518
        %v3520 = vpop.f32.mrb[0].mxu0
        %v3521 = vadd.f32 %v3264, %v3520
        %3522 = vmatprep.mubr.f32.mxu0 %v2220
        %3523 = vmatmul.mubr.f32.gmra.mrb[0].mxu0 %v2219
        %v3524 = vpop.f32.mrb[0].mxu0
        %v3525 = vadd.f32 %v3268, %v3524
        %v3526 = vpop.f32.mrb[0].mxu0
        %v3527 = vadd.f32 %v3270, %v3526
        %3528 = vmatprep.mubr.f32.mxu0 %v2228
        %3529 = vmatmul.mubr.f32.gmra.mrb[0].mxu0 %v2227
        %v3530 = vpop.f32.mrb[0].mxu0
        %v3531 = vadd.f32 %v3274, %v3530
        %v3532 = vpop.f32.mrb[0].mxu0
        %v3533 = vadd.f32 %v3276, %v3532
        %3534 = vmatprep.mubr.f32.mxu0 %v2236
        %3535 = vmatmul.mubr.f32.gmra.mrb[0].mxu0 %v2235
        %v3536 = vpop.f32.mrb[0].mxu0
        %v3537 = vadd.f32 %v3280, %v3536
        %v3538 = vpop.f32.mrb[0].mxu0
        %v3539 = vadd.f32 %v3282, %v3538
        %3540 = vmatprep.mubr.f32.mxu0 %v2244
        %3541 = vmatmul.mubr.f32.gmra.mrb[0].mxu0 %v2243
        %v3542 = vpop.f32.mrb[0].mxu0
        %v3543 = vadd.f32 %v3286, %v3542
        %v3544 = vpop.f32.mrb[0].mxu0
        %v3545 = vadd.f32 %v3288, %v3544
        %3546 = vmatprep.mubr.f32.mxu0 %v2252
        %3547 = vmatmul.mubr.f32.gmra.mrb[0].mxu0 %v2251
        %v3548 = vpop.f32.mrb[0].mxu0
        %v3549 = vadd.f32 %v3292, %v3548
        %v3550 = vpop.f32.mrb[0].mxu0
        %v3551 = vadd.f32 %v3294, %v3550
        %3552 = vmatprep.mubr.f32.mxu0 %v2260
        %3553 = vmatmul.mubr.f32.gmra.mrb[0].mxu0 %v2259
        %v3554 = vpop.f32.mrb[0].mxu0
        %v3555 = vadd.f32 %v3298, %v3554
        %v3556 = vpop.f32.mrb[0].mxu0
        %v3557 = vadd.f32 %v3300, %v3556
        %3558 = vmatprep.mubr.f32.mxu0 %v2268
        %3559 = vmatmul.mubr.f32.gmra.mrb[0].mxu0 %v2267
        %v3560 = vpop.f32.mrb[0].mxu0
        %v3561 = vadd.f32 %v3304, %v3560
        %v3562 = vpop.f32.mrb[0].mxu0
        %v3563 = vadd.f32 %v3306, %v3562
        %3564 = vdwg.mxu0
        %v3565 = vmax.f32 %v3375, 0.0
        %v3566 = vmax.f32 %v3377, 0.0
        %v3567 = vmax.f32 %v3381, 0.0
        %v3568 = vmax.f32 %v3383, 0.0
        %v3569 = vmax.f32 %v3387, 0.0
        %v3570 = vmax.f32 %v3389, 0.0
        %v3571 = vmax.f32 %v3393, 0.0
        %v3572 = vmax.f32 %v3395, 0.0
        %v3573 = vmax.f32 %v3399, 0.0
        %v3574 = vmax.f32 %v3401, 0.0
        %v3575 = vmax.f32 %v3405, 0.0
        %v3576 = vmax.f32 %v3407, 0.0
        %v3577 = vmax.f32 %v3411, 0.0
        %v3578 = vmax.f32 %v3413, 0.0
        %v3579 = vmax.f32 %v3417, 0.0
        %v3580 = vmax.f32 %v3419, 0.0
        %v3581 = vmax.f32 %v3423, 0.0
        %v3582 = vmax.f32 %v3425, 0.0
        %v3583 = vmax.f32 %v3429, 0.0
        %v3584 = vmax.f32 %v3431, 0.0
        %v3585 = vmax.f32 %v3435, 0.0
        %v3586 = vmax.f32 %v3437, 0.0
        %v3587 = vmax.f32 %v3441, 0.0
        %v3588 = vmax.f32 %v3443, 0.0
        %v3589 = vmax.f32 %v3447, 0.0
        %v3590 = vmax.f32 %v3449, 0.0
        %v3591 = vmax.f32 %v3453, 0.0
        %v3592 = vmax.f32 %v3455, 0.0
        %v3593 = vmax.f32 %v3459, 0.0
        %v3594 = vmax.f32 %v3461, 0.0
        %v3595 = vmax.f32 %v3465, 0.0
        %v3596 = vmax.f32 %v3467, 0.0
        %v3597 = vmax.f32 %v3471, 0.0
        %v3598 = vmax.f32 %v3473, 0.0
        %v3599 = vmax.f32 %v3477, 0.0
        %v3600 = vmax.f32 %v3479, 0.0
        %v3601 = vmax.f32 %v3483, 0.0
        %v3602 = vmax.f32 %v3485, 0.0
        %v3603 = vmax.f32 %v3489, 0.0
        %v3604 = vmax.f32 %v3491, 0.0
        %v3605 = vmax.f32 %v3495, 0.0
        %v3606 = vmax.f32 %v3497, 0.0
        %v3607 = vmax.f32 %v3501, 0.0
        %v3608 = vmax.f32 %v3503, 0.0
        %v3609 = vmax.f32 %v3507, 0.0
        %v3610 = vmax.f32 %v3509, 0.0
        %v3611 = vmax.f32 %v3513, 0.0
        %v3612 = vmax.f32 %v3515, 0.0
        %v3613 = vmax.f32 %v3519, 0.0
        %v3614 = vmax.f32 %v3521, 0.0
        %v3615 = vmax.f32 %v3525, 0.0
        %v3616 = vmax.f32 %v3527, 0.0
        %v3617 = vmax.f32 %v3531, 0.0
        %v3618 = vmax.f32 %v3533, 0.0
        %v3619 = vmax.f32 %v3537, 0.0
        %v3620 = vmax.f32 %v3539, 0.0
        %v3621 = vmax.f32 %v3543, 0.0
        %v3622 = vmax.f32 %v3545, 0.0
        %v3623 = vmax.f32 %v3549, 0.0
        %v3624 = vmax.f32 %v3551, 0.0
        %v3625 = vmax.f32 %v3555, 0.0
        %v3626 = vmax.f32 %v3557, 0.0
        %v3627 = vmax.f32 %v3561, 0.0
        %v3628 = vmax.f32 %v3563, 0.0
        %3629 = vst [vmem:[%s255] sm:$0xff] %v3565
        %3630 = vst [vmem:[%s255 + $0x8] sm:$0xff] %v3566
        %3631 = vst [vmem:[%s255 + $0x10] sm:$0xff] %v3567
        %3632 = vst [vmem:[%s255 + $0x18] sm:$0xff] %v3568
        %3633 = vst [vmem:[%s255 + $0x20] sm:$0xff] %v3569
        %3634 = vst [vmem:[%s255 + $0x28] sm:$0xff] %v3570
        %3635 = vst [vmem:[%s255 + $0x30] sm:$0xff] %v3571
        %3636 = vst [vmem:[%s255 + $0x38] sm:$0xff] %v3572
        %3637 = vst [vmem:[%s255 + $0x40] sm:$0xff] %v3573
        %3638 = vst [vmem:[%s255 + $0x48] sm:$0xff] %v3574
        %3639 = vst [vmem:[%s255 + $0x50] sm:$0xff] %v3575
        %3640 = vst [vmem:[%s255 + $0x58] sm:$0xff] %v3576
        %3641 = vst [vmem:[%s255 + $0x60] sm:$0xff] %v3577
        %3642 = vst [vmem:[%s255 + $0x68] sm:$0xff] %v3578
        %3643 = vst [vmem:[%s255 + $0x70] sm:$0xff] %v3579
        %3644 = vst [vmem:[%s255 + $0x78] sm:$0xff] %v3580
        %3645 = vst [vmem:[%s255 + $0x80] sm:$0xff] %v3581
        %3646 = vst [vmem:[%s255 + $0x88] sm:$0xff] %v3582
        %3647 = vst [vmem:[%s255 + $0x90] sm:$0xff] %v3583
        %3648 = vst [vmem:[%s255 + $0x98] sm:$0xff] %v3584
        %3649 = vst [vmem:[%s255 + $0xa0] sm:$0xff] %v3585
        %3650 = vst [vmem:[%s255 + $0xa8] sm:$0xff] %v3586
        %3651 = vst [vmem:[%s255 + $0xb0] sm:$0xff] %v3587
        %3652 = vst [vmem:[%s255 + $0xb8] sm:$0xff] %v3588
        %3653 = vst [vmem:[%s255 + $0xc0] sm:$0xff] %v3589
        %3654 = vst [vmem:[%s255 + $0xc8] sm:$0xff] %v3590
        %3655 = vst [vmem:[%s255 + $0xd0] sm:$0xff] %v3591
        %3656 = vst [vmem:[%s255 + $0xd8] sm:$0xff] %v3592
        %3657 = vst [vmem:[%s255 + $0xe0] sm:$0xff] %v3593
        %3658 = vst [vmem:[%s255 + $0xe8] sm:$0xff] %v3594
        %3659 = vst [vmem:[%s255 + $0xf0] sm:$0xff] %v3595
        %3660 = vst [vmem:[%s255 + $0xf8] sm:$0xff] %v3596
        %3661 = vst [vmem:[%s255 + $0x100] sm:$0xff] %v3597
        %3662 = vst [vmem:[%s255 + $0x108] sm:$0xff] %v3598
        %3663 = vst [vmem:[%s255 + $0x110] sm:$0xff] %v3599
        %3664 = vst [vmem:[%s255 + $0x118] sm:$0xff] %v3600
        %3665 = vst [vmem:[%s255 + $0x120] sm:$0xff] %v3601
        %3666 = vst [vmem:[%s255 + $0x128] sm:$0xff] %v3602
        %3667 = vst [vmem:[%s255 + $0x130] sm:$0xff] %v3603
        %3668 = vst [vmem:[%s255 + $0x138] sm:$0xff] %v3604
        %3669 = vst [vmem:[%s255 + $0x140] sm:$0xff] %v3605
        %3670 = vst [vmem:[%s255 + $0x148] sm:$0xff] %v3606
        %3671 = vst [vmem:[%s255 + $0x150] sm:$0xff] %v3607
        %3672 = vst [vmem:[%s255 + $0x158] sm:$0xff] %v3608
        %3673 = vst [vmem:[%s255 + $0x160] sm:$0xff] %v3609
        %3674 = vst [vmem:[%s255 + $0x168] sm:$0xff] %v3610
        %3675 = vst [vmem:[%s255 + $0x170] sm:$0xff] %v3611
        %3676 = vst [vmem:[%s255 + $0x178] sm:$0xff] %v3612
        %3677 = vst [vmem:[%s255 + $0x180] sm:$0xff] %v3613
        %3678 = vst [vmem:[%s255 + $0x188] sm:$0xff] %v3614
        %3679 = vst [vmem:[%s255 + $0x190] sm:$0xff] %v3615
        %3680 = vst [vmem:[%s255 + $0x198] sm:$0xff] %v3616
        %3681 = vst [vmem:[%s255 + $0x1a0] sm:$0xff] %v3617
        %3682 = vst [vmem:[%s255 + $0x1a8] sm:$0xff] %v3618
        %3683 = vst [vmem:[%s255 + $0x1b0] sm:$0xff] %v3619
        %3684 = vst [vmem:[%s255 + $0x1b8] sm:$0xff] %v3620
        %3685 = vst [vmem:[%s255 + $0x1c0] sm:$0xff] %v3621
        %3686 = vst [vmem:[%s255 + $0x1c8] sm:$0xff] %v3622
        %3687 = vst [vmem:[%s255 + $0x1d0] sm:$0xff] %v3623
        %3688 = vst [vmem:[%s255 + $0x1d8] sm:$0xff] %v3624
        %3689 = vst [vmem:[%s255 + $0x1e0] sm:$0xff] %v3625
        %3690 = vst [vmem:[%s255 + $0x1e8] sm:$0xff] %v3626
        %3691 = vst [vmem:[%s255 + $0x1f0] sm:$0xff] %v3627
        %3692 = vst [vmem:[%s255 + $0x1f8] sm:$0xff] %v3628
        %s3693 = sand.u32 %s158, 1
        %s3694 = scalar_lea.sflag [#allocation4], %s3693
        %s3695 = sand.u32 %s158, 1
        %s3696 = smul.addr %s3695, 512
        %s3697 = scalar_lea.vmem [#allocation3], %s3696
        // Predicated region
        $region41: #{aspp_forward.1} parent=39 // pred_check
          %p3698 = pneg %p168
        $region42: #{aspp_forward.1} parent=39 // pred_check_branch
          %3700 = sbr.rel (%p3698) target = $region44
        $region43: #{aspp_forward.1} parent=39 // pred_region
          %s3701 = smul.u32 32, %s24
          %s3703 = ssub.s32 8192, 8192
          %3704 = vsyncadd %s3694, %s3703
          %s3705 = smul.addr %s3701, 2
          %s3706 = smul.addr %s23, 64
          %s3707 = sadd.s32 %s3705, %s3706
          %s3708 = smul.addr %s3707, 128
          %s3709 = scalar_lea.hbm %s5, %s3708
          %s3710 = sshll.u32 %s3697, 4
          %s3711 = int_to_ptr.vmem [resolvable:$true] %s3710
          %3716 = dma.vmem_to_hbm [thread:$0]  %s3711, 8192, %s3709, %s3694, 256, 256, 16
        $region44: #{aspp_forward.1} parent=39 // pred_fallthru
          _
      $region40: #{aspp_forward.1} parent=5 // pred_fallthru
        _
      %p3717 = scmp.le.s32.totalorder 2, %s14
      // Predicated region
      $region45: #{aspp_forward.1} parent=5 // pred_check
        %p3718 = pneg %p3717
      $region46: #{aspp_forward.1} parent=5 // pred_check_branch
        %3720 = sbr.rel (%p3718) target = $region48
      $region47: #{aspp_forward.1} parent=5 // pred_region
        %s3721 = ssub.s32 %s14, 2
        // Predicated region
        $region49: #{aspp_forward.1} parent=47 // pred_check
          %p3722 = pneg %p174
        $region50: #{aspp_forward.1} parent=47 // pred_check_branch
          %3724 = sbr.rel (%p3722) target = $region52
        $region51: #{aspp_forward.1} parent=47 // pred_region
          %s3725 = sand.u32 %s159, 1
          %s3726 = scalar_lea.sflag [#allocation4], %s3725
          %s3727 = sand.u32 %s159, 1
          %s3728 = smul.addr %s3727, 512
          %s3729 = scalar_lea.vmem [#allocation3], %s3728
          %3730 = dma.done %s3726, 8192
        $region52: #{aspp_forward.1} parent=47 // pred_fallthru
          _
      $region48: #{aspp_forward.1} parent=5 // pred_fallthru
        _
    $region6: #{aspp_forward.1} parent=1 // loop_footer
      %s18 = sadd.s32 1, %s14
    $region7: #{aspp_forward.1} parent=1 // loop_footer_branch
      %13 = sbr.rel target = $region3
    $region8: #{aspp_forward.1} parent=1 // loop_exit
      _
    %3731 = vsyncpa [#allocation4], 1
    %s3732 = scalar_lea.sflag [#allocation4], 1
    %3733 = vsyncpa %s3732, 1

</llo_original>
